<compile_context>
chip_gen: v6e
topology: v6e:2x2x1
jax: 0.10.0
libtpu: 0.0.40
codegen_flags: <defaults>
</compile_context>

<pallas_src>
import functools

import jax
import jax.numpy as jnp
from jax.experimental import pallas as pl
from jax.experimental.pallas import tpu as pltpu

# ---------------- small BERT config ----------------
VOCAB = 64
HIDDEN = 32
N_LAYERS = 2
N_HEADS = 2
HEAD_DIM = HIDDEN // N_HEADS
INTERMEDIATE = 64
MAX_POS = 16
TYPE_VOCAB = 2
N_CLASSES = [3, 5]
LN_EPS = 1e-12

EMB_PAD = 128      # combined embedding table rows (VOCAB+MAX_POS+TYPE_VOCAB=82) padded to 128
N_CLS_PAD = 128    # classifier output lanes padded to 128 (lane-dense stores)


def _full_spec(shape):
    n = len(shape)
    return pl.BlockSpec(shape, lambda i, n=n: (0,) * n)


# ---------------- fused encoder kernel ----------------
def _encoder_kernel(widx_ref, pidx_ref, tidx_ref, mask_ref,
                    emb_tab_ref, eg_ref, eb_ref,
                    wqkv_ref, bqkv_ref, wo_ref, bo_ref, ag_ref, ab_ref,
                    w1_ref, b1_ref, w2_ref, b2_ref, fg_ref, fb_ref,
                    wc_ref, bc_ref, logits_ref, *, batch, seq):
    B, S, H, nh, dh = batch, seq, HIDDEN, N_HEADS, HEAD_DIM
    BS = B * S

    def ln(y, g, b):
        # single-pass LayerNorm: the two lane reductions (sum y, sum y*y) are independent
        mu = jnp.mean(y, axis=-1, keepdims=True)
        ms = jnp.mean(y * y, axis=-1, keepdims=True)
        var = jnp.maximum(ms - mu * mu, 0.0)
        return (y - mu) * jax.lax.rsqrt(var + LN_EPS) * g + b

    # ---- fused embedding gather: one-hot matmul against the combined table (idle MXU) ----
    iota = jax.lax.broadcasted_iota(jnp.int32, (BS, EMB_PAD), 1)
    onehot = ((iota == widx_ref[...]) | (iota == pidx_ref[...]) | (iota == tidx_ref[...]))
    x = jnp.dot(onehot.astype(jnp.float32), emb_tab_ref[...],
                preferred_element_type=jnp.float32)                   # (BS, H)
    x = ln(x, eg_ref[...], eb_ref[...])

    # ---- additive attention mask, built once and hoisted out of the layer/head loops ----
    am = (1.0 - mask_ref[...]) * -10000.0                             # (B, S)
    am_b = jnp.broadcast_to(am[:, None, :], (B, S, S))                # (B, S, S)
    add_mask = jnp.concatenate([am_b] * nh, axis=0)                   # (nh*B, S, S), head-major

    for l in range(N_LAYERS):                                         # unrolled: N_LAYERS = 2
        # fused QKV projection (Wq/bq pre-scaled by 1/sqrt(dh) at pack time)
        qkv = jnp.dot(x, wqkv_ref[l], preferred_element_type=jnp.float32) + bqkv_ref[l]

        # head-major batched tensors: (nh*B, S, dh)
        q_all = jnp.concatenate(
            [qkv[:, h * dh:(h + 1) * dh].reshape(B, S, dh) for h in range(nh)], axis=0)
        k_all = jnp.concatenate(
            [qkv[:, H + h * dh:H + (h + 1) * dh].reshape(B, S, dh) for h in range(nh)], axis=0)
        v_all = jnp.concatenate(
            [qkv[:, 2 * H + h * dh:2 * H + (h + 1) * dh].reshape(B, S, dh) for h in range(nh)],
            axis=0)

        # one batched score matmul + ONE softmax for all heads
        s = jnp.einsum("bqd,bkd->bqk", q_all, k_all, preferred_element_type=jnp.float32)
        s = s + add_mask
        s = s - jnp.max(s, axis=-1, keepdims=True)
        p = jnp.exp(s)
        p = p * pl.reciprocal(jnp.sum(p, axis=-1, keepdims=True), approx=True)
        ctx = jnp.einsum("bqk,bkd->bqd", p, v_all, preferred_element_type=jnp.float32)

        # head-merge (single lane concat) + single O-projection matmul
        ctx_cat = jnp.concatenate(
            [ctx[h * B:(h + 1) * B].reshape(BS, dh) for h in range(nh)], axis=1)   # (BS, H)
        attn_out = jnp.dot(ctx_cat, wo_ref[l], preferred_element_type=jnp.float32) + bo_ref[l]
        x = ln(x + attn_out, ag_ref[l], ab_ref[l])                    # residual + post-attn LN

        ffn = jnp.dot(x, w1_ref[l], preferred_element_type=jnp.float32) + b1_ref[l]
        # TODO(synk): HF BERT default is exact erf-GELU; tanh approximation used in-kernel.
        ffn = jax.nn.gelu(ffn, approximate=True)
        ffn = jnp.dot(ffn, w2_ref[l], preferred_element_type=jnp.float32) + b2_ref[l]
        x = ln(x + ffn, fg_ref[l], fb_ref[l])                         # residual + post-FFN LN

    # CLS token rows (row 0 of every sequence) -> concatenated (lane-padded) classifier heads
    cls = x.reshape(B, S, H)[:, 0, :]                                 # (B, H)
    logits = jnp.dot(cls, wc_ref[...], preferred_element_type=jnp.float32) + bc_ref[...]
    logits_ref[...] = logits.astype(logits_ref.dtype)                 # (B, 128) lane-dense


def fused_encoder(widx, pidx, tidx, mask, packed, batch, seq):
    args = (widx, pidx, tidx, mask,
            packed["emb_tab"], packed["emb_ln_g"], packed["emb_ln_b"],
            packed["wqkv"], packed["bqkv"], packed["wo"], packed["bo"],
            packed["aln_g"], packed["aln_b"],
            packed["w1"], packed["b1"], packed["w2"], packed["b2"],
            packed["fln_g"], packed["fln_b"],
            packed["wc"], packed["bc"])
    return pl.pallas_call(
        functools.partial(_encoder_kernel, batch=batch, seq=seq),
        out_shape=jax.ShapeDtypeStruct((batch, N_CLS_PAD), jnp.float32),
        grid=(1,),
        in_specs=[_full_spec(a.shape) for a in args],
        out_specs=_full_spec((batch, N_CLS_PAD)),
        compiler_params=pltpu.CompilerParams(dimension_semantics=("arbitrary",)),
    )(*args)


# ---------------- parameter init (deterministic, synthetic) ----------------
def init_params(key):
    keys = iter(jax.random.split(key, 256))

    def w(shape, scale=0.02):
        return (scale * jax.random.normal(next(keys), shape)).astype(jnp.float32)

    params = {
        "word_emb": w((VOCAB, HIDDEN)),
        "pos_emb": w((MAX_POS, HIDDEN)),
        "type_emb": w((TYPE_VOCAB, HIDDEN)),
        "emb_ln_g": jnp.ones((HIDDEN,), jnp.float32),
        "emb_ln_b": jnp.zeros((HIDDEN,), jnp.float32),
        "layers": [],
        "classifiers": [],
    }
    for _ in range(N_LAYERS):
        params["layers"].append({
            "wq": w((HIDDEN, HIDDEN)), "bq": jnp.zeros((HIDDEN,), jnp.float32),
            "wk": w((HIDDEN, HIDDEN)), "bk": jnp.zeros((HIDDEN,), jnp.float32),
            "wv": w((HIDDEN, HIDDEN)), "bv": jnp.zeros((HIDDEN,), jnp.float32),
            "wo": w((HIDDEN, HIDDEN)), "bo": jnp.zeros((HIDDEN,), jnp.float32),
            "attn_ln_g": jnp.ones((HIDDEN,), jnp.float32),
            "attn_ln_b": jnp.zeros((HIDDEN,), jnp.float32),
            "w1": w((HIDDEN, INTERMEDIATE)), "b1": jnp.zeros((INTERMEDIATE,), jnp.float32),
            "w2": w((INTERMEDIATE, HIDDEN)), "b2": jnp.zeros((HIDDEN,), jnp.float32),
            "ffn_ln_g": jnp.ones((HIDDEN,), jnp.float32),
            "ffn_ln_b": jnp.zeros((HIDDEN,), jnp.float32),
        })
    for c in N_CLASSES:
        params["classifiers"].append((w((HIDDEN, c)), jnp.zeros((c,), jnp.float32)))
    return params


def pack_params(params):
    """One-time weight packing (call OUTSIDE the per-step path).

    Concatenates QKV / classifier weights, stacks layers, folds 1/sqrt(dh) into Wq,
    merges the three embedding tables into one zero-padded (128, H) table, and
    zero-pads the classifier to 128 output lanes.
    """
    scale = 1.0 / (HEAD_DIM ** 0.5)
    L = params["layers"]

    emb_tab = jnp.concatenate(
        [params["word_emb"], params["pos_emb"], params["type_emb"]], axis=0)
    emb_tab = jnp.pad(emb_tab, ((0, EMB_PAD - emb_tab.shape[0]), (0, 0)))

    wc = jnp.concatenate([w for (w, _) in params["classifiers"]], axis=1)       # (H, sum)
    bc = jnp.concatenate([b for (_, b) in params["classifiers"]])[None, :]      # (1, sum)
    wc = jnp.pad(wc, ((0, 0), (0, N_CLS_PAD - wc.shape[1])))
    bc = jnp.pad(bc, ((0, 0), (0, N_CLS_PAD - bc.shape[1])))

    return {
        "emb_tab": emb_tab,                                                     # (128, H)
        "emb_ln_g": params["emb_ln_g"].reshape(1, HIDDEN),
        "emb_ln_b": params["emb_ln_b"].reshape(1, HIDDEN),
        "wqkv": jnp.stack([jnp.concatenate([l["wq"] * scale, l["wk"], l["wv"]], axis=1)
                           for l in L]),                                        # (L, H, 3H)
        "bqkv": jnp.stack([jnp.concatenate([l["bq"] * scale, l["bk"], l["bv"]])[None, :]
                           for l in L]),                                        # (L, 1, 3H)
        "wo": jnp.stack([l["wo"] for l in L]),
        "bo": jnp.stack([l["bo"][None, :] for l in L]),
        "aln_g": jnp.stack([l["attn_ln_g"][None, :] for l in L]),
        "aln_b": jnp.stack([l["attn_ln_b"][None, :] for l in L]),
        "w1": jnp.stack([l["w1"] for l in L]),
        "b1": jnp.stack([l["b1"][None, :] for l in L]),
        "w2": jnp.stack([l["w2"] for l in L]),
        "b2": jnp.stack([l["b2"][None, :] for l in L]),
        "fln_g": jnp.stack([l["ffn_ln_g"][None, :] for l in L]),
        "fln_b": jnp.stack([l["ffn_ln_b"][None, :] for l in L]),
        "wc": wc,                                                               # (H, 128)
        "bc": bc,                                                               # (1, 128)
    }


# ---------------- forward (mirrors CLS_bert.forward) ----------------
def cls_bert_forward(packed, input_ids, attention_mask=None, token_type_ids=None,
                     position_ids=None, label=None):
    B, S = input_ids.shape

    if attention_mask is None:
        attention_mask = jnp.ones((B, S), jnp.float32)
    if token_type_ids is None:
        token_type_ids = jnp.zeros((B, S), jnp.int32)
    if position_ids is None:
        position_ids = jnp.broadcast_to(jnp.arange(S, dtype=jnp.int32)[None, :], (B, S))

    # combined-table row indices for the in-kernel one-hot gather
    widx = input_ids.astype(jnp.int32).reshape(B * S, 1)
    pidx = (position_ids.astype(jnp.int32) + VOCAB).reshape(B * S, 1)
    tidx = (token_type_ids.astype(jnp.int32) + VOCAB + MAX_POS).reshape(B * S, 1)

    y = fused_encoder(widx, pidx, tidx, attention_mask.astype(jnp.float32),
                      packed, B, S)                                   # (B, 128) lane-padded

    # self.dropout(0.1): identity in eval/inference mode; slice real logits per head.
    logits, off = [], 0
    for c in N_CLASSES:
        logits.append(y[:, off:off + c])
        off += c

    loss = None
    if label is not None:
        assert len(label) == len(N_CLASSES)
        losses = []
        for i, logit in enumerate(logits):
            logp = jax.nn.log_softmax(logit, axis=-1)
            nll = -jnp.take_along_axis(logp, label[i][:, None], axis=-1)[:, 0].mean()
            losses.append(nll)
        loss = sum(losses)
    return {"loss": loss, "logits": logits}


if __name__ == "__main__":
    key = jax.random.PRNGKey(0)
    k_param, k_ids, k_lab0, k_lab1 = jax.random.split(key, 4)

    params = init_params(k_param)
    packed = pack_params(params)       # hoisted: packed ONCE, outside the per-call path

    B, S = 2, 8
    input_ids = jax.random.randint(k_ids, (B, S), 0, VOCAB, dtype=jnp.int32)
    attention_mask = jnp.ones((B, S), jnp.float32)
    labels = [
        jax.random.randint(k_lab0, (B,), 0, N_CLASSES[0], dtype=jnp.int32),
        jax.random.randint(k_lab1, (B,), 0, N_CLASSES[1], dtype=jnp.int32),
    ]

    fwd = jax.jit(lambda p, ids, am, lab: cls_bert_forward(p, ids, attention_mask=am, label=lab))
    out = fwd(packed, input_ids, attention_mask, labels)

    for lg in out["logits"]:
        jax.block_until_ready(lg)
    jax.block_until_ready(out["loss"])

    assert out["logits"][0].shape == (B, N_CLASSES[0])
    assert out["logits"][1].shape == (B, N_CLASSES[1])
    assert bool(jnp.isfinite(out["loss"]))
    print("KERNEL_OK")
</pallas_src>

<mosaic_0001>
module attributes {stable_mosaic.version = 11 : i64} {
  func.func @_encoder_kernel(%arg0: i32, %arg1: memref<16x1xi32, #tpu.memory_space<vmem>>, %arg2: memref<16x1xi32, #tpu.memory_space<vmem>>, %arg3: memref<16x1xi32, #tpu.memory_space<vmem>>, %arg4: memref<2x8xf32, #tpu.memory_space<vmem>>, %arg5: memref<128x32xf32, #tpu.memory_space<vmem>>, %arg6: memref<1x32xf32, #tpu.memory_space<vmem>>, %arg7: memref<1x32xf32, #tpu.memory_space<vmem>>, %arg8: memref<2x32x96xf32, #tpu.memory_space<vmem>>, %arg9: memref<2x1x96xf32, #tpu.memory_space<vmem>>, %arg10: memref<2x32x32xf32, #tpu.memory_space<vmem>>, %arg11: memref<2x1x32xf32, #tpu.memory_space<vmem>>, %arg12: memref<2x1x32xf32, #tpu.memory_space<vmem>>, %arg13: memref<2x1x32xf32, #tpu.memory_space<vmem>>, %arg14: memref<2x32x64xf32, #tpu.memory_space<vmem>>, %arg15: memref<2x1x64xf32, #tpu.memory_space<vmem>>, %arg16: memref<2x64x32xf32, #tpu.memory_space<vmem>>, %arg17: memref<2x1x32xf32, #tpu.memory_space<vmem>>, %arg18: memref<2x1x32xf32, #tpu.memory_space<vmem>>, %arg19: memref<2x1x32xf32, #tpu.memory_space<vmem>>, %arg20: memref<32x128xf32, #tpu.memory_space<vmem>>, %arg21: memref<1x128xf32, #tpu.memory_space<vmem>>, %arg22: memref<2x128xf32, #tpu.memory_space<vmem>>) attributes {dimension_semantics = [#tpu.dimension_semantics<arbitrary>], iteration_bounds = array<i64: 1>, scalar_prefetch = 0 : i64, scratch_operands = 0 : i64, tpu.core_type = #tpu.core_type<tc>, window_params = [{pipeline_mode = #tpu.pipeline_mode<synchronous>, transform_indices = @transform_0, window_bounds = array<i64: 16, 1>}, {pipeline_mode = #tpu.pipeline_mode<synchronous>, transform_indices = @transform_1, window_bounds = array<i64: 16, 1>}, {pipeline_mode = #tpu.pipeline_mode<synchronous>, transform_indices = @transform_2, window_bounds = array<i64: 16, 1>}, {pipeline_mode = #tpu.pipeline_mode<synchronous>, transform_indices = @transform_3, window_bounds = array<i64: 2, 8>}, {pipeline_mode = #tpu.pipeline_mode<synchronous>, transform_indices = @transform_4, window_bounds = array<i64: 128, 32>}, {pipeline_mode = #tpu.pipeline_mode<synchronous>, transform_indices = @transform_5, window_bounds = array<i64: 1, 32>}, {pipeline_mode = #tpu.pipeline_mode<synchronous>, transform_indices = @transform_6, window_bounds = array<i64: 1, 32>}, {pipeline_mode = #tpu.pipeline_mode<synchronous>, transform_indices = @transform_7, window_bounds = array<i64: 2, 32, 96>}, {pipeline_mode = #tpu.pipeline_mode<synchronous>, transform_indices = @transform_8, window_bounds = array<i64: 2, 1, 96>}, {pipeline_mode = #tpu.pipeline_mode<synchronous>, transform_indices = @transform_9, window_bounds = array<i64: 2, 32, 32>}, {pipeline_mode = #tpu.pipeline_mode<synchronous>, transform_indices = @transform_10, window_bounds = array<i64: 2, 1, 32>}, {pipeline_mode = #tpu.pipeline_mode<synchronous>, transform_indices = @transform_11, window_bounds = array<i64: 2, 1, 32>}, {pipeline_mode = #tpu.pipeline_mode<synchronous>, transform_indices = @transform_12, window_bounds = array<i64: 2, 1, 32>}, {pipeline_mode = #tpu.pipeline_mode<synchronous>, transform_indices = @transform_13, window_bounds = array<i64: 2, 32, 64>}, {pipeline_mode = #tpu.pipeline_mode<synchronous>, transform_indices = @transform_14, window_bounds = array<i64: 2, 1, 64>}, {pipeline_mode = #tpu.pipeline_mode<synchronous>, transform_indices = @transform_15, window_bounds = array<i64: 2, 64, 32>}, {pipeline_mode = #tpu.pipeline_mode<synchronous>, transform_indices = @transform_16, window_bounds = array<i64: 2, 1, 32>}, {pipeline_mode = #tpu.pipeline_mode<synchronous>, transform_indices = @transform_17, window_bounds = array<i64: 2, 1, 32>}, {pipeline_mode = #tpu.pipeline_mode<synchronous>, transform_indices = @transform_18, window_bounds = array<i64: 2, 1, 32>}, {pipeline_mode = #tpu.pipeline_mode<synchronous>, transform_indices = @transform_19, window_bounds = array<i64: 32, 128>}, {pipeline_mode = #tpu.pipeline_mode<synchronous>, transform_indices = @transform_20, window_bounds = array<i64: 1, 128>}, {pipeline_mode = #tpu.pipeline_mode<synchronous>, transform_indices = @transform_21, window_bounds = array<i64: 2, 128>}]} {
    %0 = tpu.iota {dimensions = array<i32: 1>} : vector<16x128xi32>
    %c0 = arith.constant 0 : index
    %c0_0 = arith.constant 0 : index
    %1 = vector.load %arg1[%c0, %c0_0] : memref<16x1xi32, #tpu.memory_space<vmem>>, vector<16x1xi32>
    %2 = vector.broadcast %1 : vector<16x1xi32> to vector<16x128xi32>
    %3 = arith.cmpi eq, %0, %2 : vector<16x128xi32>
    %c0_1 = arith.constant 0 : index
    %c0_2 = arith.constant 0 : index
    %4 = vector.load %arg2[%c0_1, %c0_2] : memref<16x1xi32, #tpu.memory_space<vmem>>, vector<16x1xi32>
    %5 = vector.broadcast %4 : vector<16x1xi32> to vector<16x128xi32>
    %6 = arith.cmpi eq, %0, %5 : vector<16x128xi32>
    %7 = arith.ori %3, %6 : vector<16x128xi1>
    %c0_3 = arith.constant 0 : index
    %c0_4 = arith.constant 0 : index
    %8 = vector.load %arg3[%c0_3, %c0_4] : memref<16x1xi32, #tpu.memory_space<vmem>>, vector<16x1xi32>
    %9 = vector.broadcast %8 : vector<16x1xi32> to vector<16x128xi32>
    %10 = arith.cmpi eq, %0, %9 : vector<16x128xi32>
    %11 = arith.ori %7, %10 : vector<16x128xi1>
    %12 = arith.extui %11 : vector<16x128xi1> to vector<16x128xi32>
    %13 = arith.sitofp %12 : vector<16x128xi32> to vector<16x128xf32>
    %c0_5 = arith.constant 0 : index
    %c0_6 = arith.constant 0 : index
    %14 = vector.load %arg5[%c0_5, %c0_6] : memref<128x32xf32, #tpu.memory_space<vmem>>, vector<128x32xf32>
    %cst = arith.constant dense<0.000000e+00> : vector<16x32xf32>
    %15 = tpu.matmul %13, %14, %cst {dimension_numbers = #tpu.dot_dimension_numbers<[1], [0], [0], [1], [0, 0, 1, 1], [], []>} : vector<16x128xf32>, vector<128x32xf32>, vector<16x32xf32> -> vector<16x32xf32>
    %c0_7 = arith.constant 0 : index
    %c0_8 = arith.constant 0 : index
    %16 = vector.load %arg6[%c0_7, %c0_8] : memref<1x32xf32, #tpu.memory_space<vmem>>, vector<1x32xf32>
    %c0_9 = arith.constant 0 : index
    %c0_10 = arith.constant 0 : index
    %17 = vector.load %arg7[%c0_9, %c0_10] : memref<1x32xf32, #tpu.memory_space<vmem>>, vector<1x32xf32>
    %cst_11 = arith.constant dense<0.000000e+00> : vector<16xf32>
    %18 = vector.multi_reduction <add>, %15, %cst_11 [1] : vector<16x32xf32> to vector<16xf32>
    %19 = vector.shape_cast %18 : vector<16xf32> to vector<16x1xf32>
    %cst_12 = arith.constant 3.200000e+01 : f32
    %20 = vector.broadcast %cst_12 : f32 to vector<16x1xf32>
    %21 = arith.divf %19, %20 : vector<16x1xf32>
    %22 = arith.mulf %15, %15 : vector<16x32xf32>
    %cst_13 = arith.constant dense<0.000000e+00> : vector<16xf32>
    %23 = vector.multi_reduction <add>, %22, %cst_13 [1] : vector<16x32xf32> to vector<16xf32>
    %24 = vector.shape_cast %23 : vector<16xf32> to vector<16x1xf32>
    %cst_14 = arith.constant 3.200000e+01 : f32
    %25 = vector.broadcast %cst_14 : f32 to vector<16x1xf32>
    %26 = arith.divf %24, %25 : vector<16x1xf32>
    %27 = arith.mulf %21, %21 : vector<16x1xf32>
    %28 = arith.subf %26, %27 : vector<16x1xf32>
    %cst_15 = arith.constant 0.000000e+00 : f32
    %29 = vector.broadcast %cst_15 : f32 to vector<16x1xf32>
    %30 = arith.maximumf %28, %29 : vector<16x1xf32>
    %31 = vector.broadcast %21 : vector<16x1xf32> to vector<16x32xf32>
    %32 = arith.subf %15, %31 : vector<16x32xf32>
    %cst_16 = arith.constant 9.99999996E-13 : f32
    %33 = vector.broadcast %cst_16 : f32 to vector<16x1xf32>
    %34 = arith.addf %30, %33 : vector<16x1xf32>
    %35 = math.rsqrt %34 : vector<16x1xf32>
    %36 = vector.broadcast %35 : vector<16x1xf32> to vector<16x32xf32>
    %37 = arith.mulf %32, %36 : vector<16x32xf32>
    %38 = vector.broadcast %16 : vector<1x32xf32> to vector<16x32xf32>
    %39 = arith.mulf %37, %38 : vector<16x32xf32>
    %40 = vector.broadcast %17 : vector<1x32xf32> to vector<16x32xf32>
    %41 = arith.addf %39, %40 : vector<16x32xf32>
    %c0_17 = arith.constant 0 : index
    %c0_18 = arith.constant 0 : index
    %42 = vector.load %arg4[%c0_17, %c0_18] : memref<2x8xf32, #tpu.memory_space<vmem>>, vector<2x8xf32>
    %cst_19 = arith.constant 1.000000e+00 : f32
    %43 = vector.broadcast %cst_19 : f32 to vector<2x8xf32>
    %44 = arith.subf %43, %42 : vector<2x8xf32>
    %cst_20 = arith.constant -1.000000e+04 : f32
    %45 = vector.broadcast %cst_20 : f32 to vector<2x8xf32>
    %46 = arith.mulf %44, %45 : vector<2x8xf32>
    %47 = vector.shape_cast %46 : vector<2x8xf32> to vector<2x1x8xf32>
    %48 = vector.shape_cast %47 : vector<2x1x8xf32> to vector<2x1x8xf32>
    %49 = vector.broadcast %48 : vector<2x1x8xf32> to vector<2x8x8xf32>
    %50 = tpu.concatenate %49, %49 in 0 : vector<2x8x8xf32>, vector<2x8x8xf32> -> vector<4x8x8xf32>
    %c0_21 = arith.constant 0 : index
    %c0_22 = arith.constant 0 : index
    %c0_23 = arith.constant 0 : index
    %51 = vector.load %arg8[%c0_21, %c0_22, %c0_23] : memref<2x32x96xf32, #tpu.memory_space<vmem>>, vector<1x32x96xf32>
    %52 = vector.shape_cast %51 : vector<1x32x96xf32> to vector<32x96xf32>
    %cst_24 = arith.constant dense<0.000000e+00> : vector<16x96xf32>
    %53 = tpu.matmul %41, %52, %cst_24 {dimension_numbers = #tpu.dot_dimension_numbers<[1], [0], [0], [1], [0, 0, 1, 1], [], []>} : vector<16x32xf32>, vector<32x96xf32>, vector<16x96xf32> -> vector<16x96xf32>
    %c0_25 = arith.constant 0 : index
    %c0_26 = arith.constant 0 : index
    %c0_27 = arith.constant 0 : index
    %54 = vector.load %arg9[%c0_25, %c0_26, %c0_27] : memref<2x1x96xf32, #tpu.memory_space<vmem>>, vector<1x1x96xf32>
    %55 = vector.shape_cast %54 : vector<1x1x96xf32> to vector<1x96xf32>
    %56 = vector.broadcast %55 : vector<1x96xf32> to vector<16x96xf32>
    %57 = arith.addf %53, %56 : vector<16x96xf32>
    %58 = vector.extract_strided_slice %57 {offsets = [0, 0], sizes = [16, 16], strides = [1, 1]} : vector<16x96xf32> to vector<16x16xf32>
    %59 = vector.shape_cast %58 : vector<16x16xf32> to vector<2x8x16xf32>
    %60 = vector.extract_strided_slice %57 {offsets = [0, 16], sizes = [16, 16], strides = [1, 1]} : vector<16x96xf32> to vector<16x16xf32>
    %61 = vector.shape_cast %60 : vector<16x16xf32> to vector<2x8x16xf32>
    %62 = tpu.concatenate %59, %61 in 0 : vector<2x8x16xf32>, vector<2x8x16xf32> -> vector<4x8x16xf32>
    %63 = vector.extract_strided_slice %57 {offsets = [0, 32], sizes = [16, 16], strides = [1, 1]} : vector<16x96xf32> to vector<16x16xf32>
    %64 = vector.shape_cast %63 : vector<16x16xf32> to vector<2x8x16xf32>
    %65 = vector.extract_strided_slice %57 {offsets = [0, 48], sizes = [16, 16], strides = [1, 1]} : vector<16x96xf32> to vector<16x16xf32>
    %66 = vector.shape_cast %65 : vector<16x16xf32> to vector<2x8x16xf32>
    %67 = tpu.concatenate %64, %66 in 0 : vector<2x8x16xf32>, vector<2x8x16xf32> -> vector<4x8x16xf32>
    %68 = vector.extract_strided_slice %57 {offsets = [0, 64], sizes = [16, 16], strides = [1, 1]} : vector<16x96xf32> to vector<16x16xf32>
    %69 = vector.shape_cast %68 : vector<16x16xf32> to vector<2x8x16xf32>
    %70 = vector.extract_strided_slice %57 {offsets = [0, 80], sizes = [16, 16], strides = [1, 1]} : vector<16x96xf32> to vector<16x16xf32>
    %71 = vector.shape_cast %70 : vector<16x16xf32> to vector<2x8x16xf32>
    %72 = tpu.concatenate %69, %71 in 0 : vector<2x8x16xf32>, vector<2x8x16xf32> -> vector<4x8x16xf32>
    "tpu.trace_start"() <{level = 10 : i32, message = "bqd,bkd->bqk"}> : () -> ()
    %cst_28 = arith.constant dense<0.000000e+00> : vector<4x8x8xf32>
    %73 = tpu.matmul %62, %67, %cst_28 {dimension_numbers = #tpu.dot_dimension_numbers<[2], [2], [1], [1], [0, 0, 0, 1, 1, 1], [0], [0]>} : vector<4x8x16xf32>, vector<4x8x16xf32>, vector<4x8x8xf32> -> vector<4x8x8xf32>
    "tpu.trace_stop"() : () -> ()
    %74 = arith.addf %73, %50 : vector<4x8x8xf32>
    %cst_29 = arith.constant dense<0xFF800000> : vector<4x8xf32>
    %75 = vector.multi_reduction <maximumf>, %74, %cst_29 [2] : vector<4x8x8xf32> to vector<4x8xf32>
    %76 = vector.shape_cast %75 : vector<4x8xf32> to vector<4x8x1xf32>
    %77 = vector.broadcast %76 : vector<4x8x1xf32> to vector<4x8x8xf32>
    %78 = arith.subf %74, %77 : vector<4x8x8xf32>
    %79 = math.exp %78 : vector<4x8x8xf32>
    %cst_30 = arith.constant dense<0.000000e+00> : vector<4x8xf32>
    %80 = vector.multi_reduction <add>, %79, %cst_30 [2] : vector<4x8x8xf32> to vector<4x8xf32>
    %81 = vector.shape_cast %80 : vector<4x8xf32> to vector<4x8x1xf32>
    %82 = tpu.reciprocal %81 {approx = true} : vector<4x8x1xf32> -> vector<4x8x1xf32>
    %83 = vector.broadcast %82 : vector<4x8x1xf32> to vector<4x8x8xf32>
    %84 = arith.mulf %79, %83 : vector<4x8x8xf32>
    "tpu.trace_start"() <{level = 10 : i32, message = "bqk,bkd->bqd"}> : () -> ()
    %cst_31 = arith.constant dense<0.000000e+00> : vector<4x8x16xf32>
    %85 = tpu.matmul %84, %72, %cst_31 {dimension_numbers = #tpu.dot_dimension_numbers<[2], [1], [1], [2], [0, 0, 0, 1, 1, 2], [0], [0]>} : vector<4x8x8xf32>, vector<4x8x16xf32>, vector<4x8x16xf32> -> vector<4x8x16xf32>
    "tpu.trace_stop"() : () -> ()
    %86 = vector.extract_strided_slice %85 {offsets = [0, 0, 0], sizes = [2, 8, 16], strides = [1, 1, 1]} : vector<4x8x16xf32> to vector<2x8x16xf32>
    %87 = vector.shape_cast %86 : vector<2x8x16xf32> to vector<16x16xf32>
    %88 = vector.extract_strided_slice %85 {offsets = [2, 0, 0], sizes = [2, 8, 16], strides = [1, 1, 1]} : vector<4x8x16xf32> to vector<2x8x16xf32>
    %89 = vector.shape_cast %88 : vector<2x8x16xf32> to vector<16x16xf32>
    %90 = tpu.concatenate %87, %89 in 1 : vector<16x16xf32>, vector<16x16xf32> -> vector<16x32xf32>
    %c0_32 = arith.constant 0 : index
    %c0_33 = arith.constant 0 : index
    %c0_34 = arith.constant 0 : index
    %91 = vector.load %arg10[%c0_32, %c0_33, %c0_34] : memref<2x32x32xf32, #tpu.memory_space<vmem>>, vector<1x32x32xf32>
    %92 = vector.shape_cast %91 : vector<1x32x32xf32> to vector<32x32xf32>
    %cst_35 = arith.constant dense<0.000000e+00> : vector<16x32xf32>
    %93 = tpu.matmul %90, %92, %cst_35 {dimension_numbers = #tpu.dot_dimension_numbers<[1], [0], [0], [1], [0, 0, 1, 1], [], []>} : vector<16x32xf32>, vector<32x32xf32>, vector<16x32xf32> -> vector<16x32xf32>
    %c0_36 = arith.constant 0 : index
    %c0_37 = arith.constant 0 : index
    %c0_38 = arith.constant 0 : index
    %94 = vector.load %arg11[%c0_36, %c0_37, %c0_38] : memref<2x1x32xf32, #tpu.memory_space<vmem>>, vector<1x1x32xf32>
    %95 = vector.shape_cast %94 : vector<1x1x32xf32> to vector<1x32xf32>
    %96 = vector.broadcast %95 : vector<1x32xf32> to vector<16x32xf32>
    %97 = arith.addf %93, %96 : vector<16x32xf32>
    %98 = arith.addf %41, %97 : vector<16x32xf32>
    %c0_39 = arith.constant 0 : index
    %c0_40 = arith.constant 0 : index
    %c0_41 = arith.constant 0 : index
    %99 = vector.load %arg12[%c0_39, %c0_40, %c0_41] : memref<2x1x32xf32, #tpu.memory_space<vmem>>, vector<1x1x32xf32>
    %100 = vector.shape_cast %99 : vector<1x1x32xf32> to vector<1x32xf32>
    %c0_42 = arith.constant 0 : index
    %c0_43 = arith.constant 0 : index
    %c0_44 = arith.constant 0 : index
    %101 = vector.load %arg13[%c0_42, %c0_43, %c0_44] : memref<2x1x32xf32, #tpu.memory_space<vmem>>, vector<1x1x32xf32>
    %102 = vector.shape_cast %101 : vector<1x1x32xf32> to vector<1x32xf32>
    %cst_45 = arith.constant dense<0.000000e+00> : vector<16xf32>
    %103 = vector.multi_reduction <add>, %98, %cst_45 [1] : vector<16x32xf32> to vector<16xf32>
    %104 = vector.shape_cast %103 : vector<16xf32> to vector<16x1xf32>
    %cst_46 = arith.constant 3.200000e+01 : f32
    %105 = vector.broadcast %cst_46 : f32 to vector<16x1xf32>
    %106 = arith.divf %104, %105 : vector<16x1xf32>
    %107 = arith.mulf %98, %98 : vector<16x32xf32>
    %cst_47 = arith.constant dense<0.000000e+00> : vector<16xf32>
    %108 = vector.multi_reduction <add>, %107, %cst_47 [1] : vector<16x32xf32> to vector<16xf32>
    %109 = vector.shape_cast %108 : vector<16xf32> to vector<16x1xf32>
    %cst_48 = arith.constant 3.200000e+01 : f32
    %110 = vector.broadcast %cst_48 : f32 to vector<16x1xf32>
    %111 = arith.divf %109, %110 : vector<16x1xf32>
    %112 = arith.mulf %106, %106 : vector<16x1xf32>
    %113 = arith.subf %111, %112 : vector<16x1xf32>
    %cst_49 = arith.constant 0.000000e+00 : f32
    %114 = vector.broadcast %cst_49 : f32 to vector<16x1xf32>
    %115 = arith.maximumf %113, %114 : vector<16x1xf32>
    %116 = vector.broadcast %106 : vector<16x1xf32> to vector<16x32xf32>
    %117 = arith.subf %98, %116 : vector<16x32xf32>
    %cst_50 = arith.constant 9.99999996E-13 : f32
    %118 = vector.broadcast %cst_50 : f32 to vector<16x1xf32>
    %119 = arith.addf %115, %118 : vector<16x1xf32>
    %120 = math.rsqrt %119 : vector<16x1xf32>
    %121 = vector.broadcast %120 : vector<16x1xf32> to vector<16x32xf32>
    %122 = arith.mulf %117, %121 : vector<16x32xf32>
    %123 = vector.broadcast %100 : vector<1x32xf32> to vector<16x32xf32>
    %124 = arith.mulf %122, %123 : vector<16x32xf32>
    %125 = vector.broadcast %102 : vector<1x32xf32> to vector<16x32xf32>
    %126 = arith.addf %124, %125 : vector<16x32xf32>
    %c0_51 = arith.constant 0 : index
    %c0_52 = arith.constant 0 : index
    %c0_53 = arith.constant 0 : index
    %127 = vector.load %arg14[%c0_51, %c0_52, %c0_53] : memref<2x32x64xf32, #tpu.memory_space<vmem>>, vector<1x32x64xf32>
    %128 = vector.shape_cast %127 : vector<1x32x64xf32> to vector<32x64xf32>
    %cst_54 = arith.constant dense<0.000000e+00> : vector<16x64xf32>
    %129 = tpu.matmul %126, %128, %cst_54 {dimension_numbers = #tpu.dot_dimension_numbers<[1], [0], [0], [1], [0, 0, 1, 1], [], []>} : vector<16x32xf32>, vector<32x64xf32>, vector<16x64xf32> -> vector<16x64xf32>
    %c0_55 = arith.constant 0 : index
    %c0_56 = arith.constant 0 : index
    %c0_57 = arith.constant 0 : index
    %130 = vector.load %arg15[%c0_55, %c0_56, %c0_57] : memref<2x1x64xf32, #tpu.memory_space<vmem>>, vector<1x1x64xf32>
    %131 = vector.shape_cast %130 : vector<1x1x64xf32> to vector<1x64xf32>
    %132 = vector.broadcast %131 : vector<1x64xf32> to vector<16x64xf32>
    %133 = arith.addf %129, %132 : vector<16x64xf32>
    %134 = arith.mulf %133, %133 : vector<16x64xf32>
    %135 = arith.mulf %133, %134 : vector<16x64xf32>
    %cst_58 = arith.constant 4.471500e-02 : f32
    %136 = vector.broadcast %cst_58 : f32 to vector<16x64xf32>
    %137 = arith.mulf %136, %135 : vector<16x64xf32>
    %138 = arith.addf %133, %137 : vector<16x64xf32>
    %cst_59 = arith.constant 0.797884583 : f32
    %139 = vector.broadcast %cst_59 : f32 to vector<16x64xf32>
    %140 = arith.mulf %139, %138 : vector<16x64xf32>
    %141 = math.tanh %140 : vector<16x64xf32>
    %cst_60 = arith.constant 1.000000e+00 : f32
    %142 = vector.broadcast %cst_60 : f32 to vector<16x64xf32>
    %143 = arith.addf %142, %141 : vector<16x64xf32>
    %cst_61 = arith.constant 5.000000e-01 : f32
    %144 = vector.broadcast %cst_61 : f32 to vector<16x64xf32>
    %145 = arith.mulf %144, %143 : vector<16x64xf32>
    %146 = arith.mulf %133, %145 : vector<16x64xf32>
    %c0_62 = arith.constant 0 : index
    %c0_63 = arith.constant 0 : index
    %c0_64 = arith.constant 0 : index
    %147 = vector.load %arg16[%c0_62, %c0_63, %c0_64] : memref<2x64x32xf32, #tpu.memory_space<vmem>>, vector<1x64x32xf32>
    %148 = vector.shape_cast %147 : vector<1x64x32xf32> to vector<64x32xf32>
    %cst_65 = arith.constant dense<0.000000e+00> : vector<16x32xf32>
    %149 = tpu.matmul %146, %148, %cst_65 {dimension_numbers = #tpu.dot_dimension_numbers<[1], [0], [0], [1], [0, 0, 1, 1], [], []>} : vector<16x64xf32>, vector<64x32xf32>, vector<16x32xf32> -> vector<16x32xf32>
    %c0_66 = arith.constant 0 : index
    %c0_67 = arith.constant 0 : index
    %c0_68 = arith.constant 0 : index
    %150 = vector.load %arg17[%c0_66, %c0_67, %c0_68] : memref<2x1x32xf32, #tpu.memory_space<vmem>>, vector<1x1x32xf32>
    %151 = vector.shape_cast %150 : vector<1x1x32xf32> to vector<1x32xf32>
    %152 = vector.broadcast %151 : vector<1x32xf32> to vector<16x32xf32>
    %153 = arith.addf %149, %152 : vector<16x32xf32>
    %154 = arith.addf %126, %153 : vector<16x32xf32>
    %c0_69 = arith.constant 0 : index
    %c0_70 = arith.constant 0 : index
    %c0_71 = arith.constant 0 : index
    %155 = vector.load %arg18[%c0_69, %c0_70, %c0_71] : memref<2x1x32xf32, #tpu.memory_space<vmem>>, vector<1x1x32xf32>
    %156 = vector.shape_cast %155 : vector<1x1x32xf32> to vector<1x32xf32>
    %c0_72 = arith.constant 0 : index
    %c0_73 = arith.constant 0 : index
    %c0_74 = arith.constant 0 : index
    %157 = vector.load %arg19[%c0_72, %c0_73, %c0_74] : memref<2x1x32xf32, #tpu.memory_space<vmem>>, vector<1x1x32xf32>
    %158 = vector.shape_cast %157 : vector<1x1x32xf32> to vector<1x32xf32>
    %cst_75 = arith.constant dense<0.000000e+00> : vector<16xf32>
    %159 = vector.multi_reduction <add>, %154, %cst_75 [1] : vector<16x32xf32> to vector<16xf32>
    %160 = vector.shape_cast %159 : vector<16xf32> to vector<16x1xf32>
    %cst_76 = arith.constant 3.200000e+01 : f32
    %161 = vector.broadcast %cst_76 : f32 to vector<16x1xf32>
    %162 = arith.divf %160, %161 : vector<16x1xf32>
    %163 = arith.mulf %154, %154 : vector<16x32xf32>
    %cst_77 = arith.constant dense<0.000000e+00> : vector<16xf32>
    %164 = vector.multi_reduction <add>, %163, %cst_77 [1] : vector<16x32xf32> to vector<16xf32>
    %165 = vector.shape_cast %164 : vector<16xf32> to vector<16x1xf32>
    %cst_78 = arith.constant 3.200000e+01 : f32
    %166 = vector.broadcast %cst_78 : f32 to vector<16x1xf32>
    %167 = arith.divf %165, %166 : vector<16x1xf32>
    %168 = arith.mulf %162, %162 : vector<16x1xf32>
    %169 = arith.subf %167, %168 : vector<16x1xf32>
    %cst_79 = arith.constant 0.000000e+00 : f32
    %170 = vector.broadcast %cst_79 : f32 to vector<16x1xf32>
    %171 = arith.maximumf %169, %170 : vector<16x1xf32>
    %172 = vector.broadcast %162 : vector<16x1xf32> to vector<16x32xf32>
    %173 = arith.subf %154, %172 : vector<16x32xf32>
    %cst_80 = arith.constant 9.99999996E-13 : f32
    %174 = vector.broadcast %cst_80 : f32 to vector<16x1xf32>
    %175 = arith.addf %171, %174 : vector<16x1xf32>
    %176 = math.rsqrt %175 : vector<16x1xf32>
    %177 = vector.broadcast %176 : vector<16x1xf32> to vector<16x32xf32>
    %178 = arith.mulf %173, %177 : vector<16x32xf32>
    %179 = vector.broadcast %156 : vector<1x32xf32> to vector<16x32xf32>
    %180 = arith.mulf %178, %179 : vector<16x32xf32>
    %181 = vector.broadcast %158 : vector<1x32xf32> to vector<16x32xf32>
    %182 = arith.addf %180, %181 : vector<16x32xf32>
    %c1 = arith.constant 1 : index
    %c0_81 = arith.constant 0 : index
    %c0_82 = arith.constant 0 : index
    %183 = vector.load %arg8[%c1, %c0_81, %c0_82] : memref<2x32x96xf32, #tpu.memory_space<vmem>>, vector<1x32x96xf32>
    %184 = vector.shape_cast %183 : vector<1x32x96xf32> to vector<32x96xf32>
    %cst_83 = arith.constant dense<0.000000e+00> : vector<16x96xf32>
    %185 = tpu.matmul %182, %184, %cst_83 {dimension_numbers = #tpu.dot_dimension_numbers<[1], [0], [0], [1], [0, 0, 1, 1], [], []>} : vector<16x32xf32>, vector<32x96xf32>, vector<16x96xf32> -> vector<16x96xf32>
    %c1_84 = arith.constant 1 : index
    %c0_85 = arith.constant 0 : index
    %c0_86 = arith.constant 0 : index
    %186 = vector.load %arg9[%c1_84, %c0_85, %c0_86] : memref<2x1x96xf32, #tpu.memory_space<vmem>>, vector<1x1x96xf32>
    %187 = vector.shape_cast %186 : vector<1x1x96xf32> to vector<1x96xf32>
    %188 = vector.broadcast %187 : vector<1x96xf32> to vector<16x96xf32>
    %189 = arith.addf %185, %188 : vector<16x96xf32>
    %190 = vector.extract_strided_slice %189 {offsets = [0, 0], sizes = [16, 16], strides = [1, 1]} : vector<16x96xf32> to vector<16x16xf32>
    %191 = vector.shape_cast %190 : vector<16x16xf32> to vector<2x8x16xf32>
    %192 = vector.extract_strided_slice %189 {offsets = [0, 16], sizes = [16, 16], strides = [1, 1]} : vector<16x96xf32> to vector<16x16xf32>
    %193 = vector.shape_cast %192 : vector<16x16xf32> to vector<2x8x16xf32>
    %194 = tpu.concatenate %191, %193 in 0 : vector<2x8x16xf32>, vector<2x8x16xf32> -> vector<4x8x16xf32>
    %195 = vector.extract_strided_slice %189 {offsets = [0, 32], sizes = [16, 16], strides = [1, 1]} : vector<16x96xf32> to vector<16x16xf32>
    %196 = vector.shape_cast %195 : vector<16x16xf32> to vector<2x8x16xf32>
    %197 = vector.extract_strided_slice %189 {offsets = [0, 48], sizes = [16, 16], strides = [1, 1]} : vector<16x96xf32> to vector<16x16xf32>
    %198 = vector.shape_cast %197 : vector<16x16xf32> to vector<2x8x16xf32>
    %199 = tpu.concatenate %196, %198 in 0 : vector<2x8x16xf32>, vector<2x8x16xf32> -> vector<4x8x16xf32>
    %200 = vector.extract_strided_slice %189 {offsets = [0, 64], sizes = [16, 16], strides = [1, 1]} : vector<16x96xf32> to vector<16x16xf32>
    %201 = vector.shape_cast %200 : vector<16x16xf32> to vector<2x8x16xf32>
    %202 = vector.extract_strided_slice %189 {offsets = [0, 80], sizes = [16, 16], strides = [1, 1]} : vector<16x96xf32> to vector<16x16xf32>
    %203 = vector.shape_cast %202 : vector<16x16xf32> to vector<2x8x16xf32>
    %204 = tpu.concatenate %201, %203 in 0 : vector<2x8x16xf32>, vector<2x8x16xf32> -> vector<4x8x16xf32>
    "tpu.trace_start"() <{level = 10 : i32, message = "bqd,bkd->bqk"}> : () -> ()
    %cst_87 = arith.constant dense<0.000000e+00> : vector<4x8x8xf32>
    %205 = tpu.matmul %194, %199, %cst_87 {dimension_numbers = #tpu.dot_dimension_numbers<[2], [2], [1], [1], [0, 0, 0, 1, 1, 1], [0], [0]>} : vector<4x8x16xf32>, vector<4x8x16xf32>, vector<4x8x8xf32> -> vector<4x8x8xf32>
    "tpu.trace_stop"() : () -> ()
    %206 = arith.addf %205, %50 : vector<4x8x8xf32>
    %cst_88 = arith.constant dense<0xFF800000> : vector<4x8xf32>
    %207 = vector.multi_reduction <maximumf>, %206, %cst_88 [2] : vector<4x8x8xf32> to vector<4x8xf32>
    %208 = vector.shape_cast %207 : vector<4x8xf32> to vector<4x8x1xf32>
    %209 = vector.broadcast %208 : vector<4x8x1xf32> to vector<4x8x8xf32>
    %210 = arith.subf %206, %209 : vector<4x8x8xf32>
    %211 = math.exp %210 : vector<4x8x8xf32>
    %cst_89 = arith.constant dense<0.000000e+00> : vector<4x8xf32>
    %212 = vector.multi_reduction <add>, %211, %cst_89 [2] : vector<4x8x8xf32> to vector<4x8xf32>
    %213 = vector.shape_cast %212 : vector<4x8xf32> to vector<4x8x1xf32>
    %214 = tpu.reciprocal %213 {approx = true} : vector<4x8x1xf32> -> vector<4x8x1xf32>
    %215 = vector.broadcast %214 : vector<4x8x1xf32> to vector<4x8x8xf32>
    %216 = arith.mulf %211, %215 : vector<4x8x8xf32>
    "tpu.trace_start"() <{level = 10 : i32, message = "bqk,bkd->bqd"}> : () -> ()
    %cst_90 = arith.constant dense<0.000000e+00> : vector<4x8x16xf32>
    %217 = tpu.matmul %216, %204, %cst_90 {dimension_numbers = #tpu.dot_dimension_numbers<[2], [1], [1], [2], [0, 0, 0, 1, 1, 2], [0], [0]>} : vector<4x8x8xf32>, vector<4x8x16xf32>, vector<4x8x16xf32> -> vector<4x8x16xf32>
    "tpu.trace_stop"() : () -> ()
    %218 = vector.extract_strided_slice %217 {offsets = [0, 0, 0], sizes = [2, 8, 16], strides = [1, 1, 1]} : vector<4x8x16xf32> to vector<2x8x16xf32>
    %219 = vector.shape_cast %218 : vector<2x8x16xf32> to vector<16x16xf32>
    %220 = vector.extract_strided_slice %217 {offsets = [2, 0, 0], sizes = [2, 8, 16], strides = [1, 1, 1]} : vector<4x8x16xf32> to vector<2x8x16xf32>
    %221 = vector.shape_cast %220 : vector<2x8x16xf32> to vector<16x16xf32>
    %222 = tpu.concatenate %219, %221 in 1 : vector<16x16xf32>, vector<16x16xf32> -> vector<16x32xf32>
    %c1_91 = arith.constant 1 : index
    %c0_92 = arith.constant 0 : index
    %c0_93 = arith.constant 0 : index
    %223 = vector.load %arg10[%c1_91, %c0_92, %c0_93] : memref<2x32x32xf32, #tpu.memory_space<vmem>>, vector<1x32x32xf32>
    %224 = vector.shape_cast %223 : vector<1x32x32xf32> to vector<32x32xf32>
    %cst_94 = arith.constant dense<0.000000e+00> : vector<16x32xf32>
    %225 = tpu.matmul %222, %224, %cst_94 {dimension_numbers = #tpu.dot_dimension_numbers<[1], [0], [0], [1], [0, 0, 1, 1], [], []>} : vector<16x32xf32>, vector<32x32xf32>, vector<16x32xf32> -> vector<16x32xf32>
    %c1_95 = arith.constant 1 : index
    %c0_96 = arith.constant 0 : index
    %c0_97 = arith.constant 0 : index
    %226 = vector.load %arg11[%c1_95, %c0_96, %c0_97] : memref<2x1x32xf32, #tpu.memory_space<vmem>>, vector<1x1x32xf32>
    %227 = vector.shape_cast %226 : vector<1x1x32xf32> to vector<1x32xf32>
    %228 = vector.broadcast %227 : vector<1x32xf32> to vector<16x32xf32>
    %229 = arith.addf %225, %228 : vector<16x32xf32>
    %230 = arith.addf %182, %229 : vector<16x32xf32>
    %c1_98 = arith.constant 1 : index
    %c0_99 = arith.constant 0 : index
    %c0_100 = arith.constant 0 : index
    %231 = vector.load %arg12[%c1_98, %c0_99, %c0_100] : memref<2x1x32xf32, #tpu.memory_space<vmem>>, vector<1x1x32xf32>
    %232 = vector.shape_cast %231 : vector<1x1x32xf32> to vector<1x32xf32>
    %c1_101 = arith.constant 1 : index
    %c0_102 = arith.constant 0 : index
    %c0_103 = arith.constant 0 : index
    %233 = vector.load %arg13[%c1_101, %c0_102, %c0_103] : memref<2x1x32xf32, #tpu.memory_space<vmem>>, vector<1x1x32xf32>
    %234 = vector.shape_cast %233 : vector<1x1x32xf32> to vector<1x32xf32>
    %cst_104 = arith.constant dense<0.000000e+00> : vector<16xf32>
    %235 = vector.multi_reduction <add>, %230, %cst_104 [1] : vector<16x32xf32> to vector<16xf32>
    %236 = vector.shape_cast %235 : vector<16xf32> to vector<16x1xf32>
    %cst_105 = arith.constant 3.200000e+01 : f32
    %237 = vector.broadcast %cst_105 : f32 to vector<16x1xf32>
    %238 = arith.divf %236, %237 : vector<16x1xf32>
    %239 = arith.mulf %230, %230 : vector<16x32xf32>
    %cst_106 = arith.constant dense<0.000000e+00> : vector<16xf32>
    %240 = vector.multi_reduction <add>, %239, %cst_106 [1] : vector<16x32xf32> to vector<16xf32>
    %241 = vector.shape_cast %240 : vector<16xf32> to vector<16x1xf32>
    %cst_107 = arith.constant 3.200000e+01 : f32
    %242 = vector.broadcast %cst_107 : f32 to vector<16x1xf32>
    %243 = arith.divf %241, %242 : vector<16x1xf32>
    %244 = arith.mulf %238, %238 : vector<16x1xf32>
    %245 = arith.subf %243, %244 : vector<16x1xf32>
    %cst_108 = arith.constant 0.000000e+00 : f32
    %246 = vector.broadcast %cst_108 : f32 to vector<16x1xf32>
    %247 = arith.maximumf %245, %246 : vector<16x1xf32>
    %248 = vector.broadcast %238 : vector<16x1xf32> to vector<16x32xf32>
    %249 = arith.subf %230, %248 : vector<16x32xf32>
    %cst_109 = arith.constant 9.99999996E-13 : f32
    %250 = vector.broadcast %cst_109 : f32 to vector<16x1xf32>
    %251 = arith.addf %247, %250 : vector<16x1xf32>
    %252 = math.rsqrt %251 : vector<16x1xf32>
    %253 = vector.broadcast %252 : vector<16x1xf32> to vector<16x32xf32>
    %254 = arith.mulf %249, %253 : vector<16x32xf32>
    %255 = vector.broadcast %232 : vector<1x32xf32> to vector<16x32xf32>
    %256 = arith.mulf %254, %255 : vector<16x32xf32>
    %257 = vector.broadcast %234 : vector<1x32xf32> to vector<16x32xf32>
    %258 = arith.addf %256, %257 : vector<16x32xf32>
    %c1_110 = arith.constant 1 : index
    %c0_111 = arith.constant 0 : index
    %c0_112 = arith.constant 0 : index
    %259 = vector.load %arg14[%c1_110, %c0_111, %c0_112] : memref<2x32x64xf32, #tpu.memory_space<vmem>>, vector<1x32x64xf32>
    %260 = vector.shape_cast %259 : vector<1x32x64xf32> to vector<32x64xf32>
    %cst_113 = arith.constant dense<0.000000e+00> : vector<16x64xf32>
    %261 = tpu.matmul %258, %260, %cst_113 {dimension_numbers = #tpu.dot_dimension_numbers<[1], [0], [0], [1], [0, 0, 1, 1], [], []>} : vector<16x32xf32>, vector<32x64xf32>, vector<16x64xf32> -> vector<16x64xf32>
    %c1_114 = arith.constant 1 : index
    %c0_115 = arith.constant 0 : index
    %c0_116 = arith.constant 0 : index
    %262 = vector.load %arg15[%c1_114, %c0_115, %c0_116] : memref<2x1x64xf32, #tpu.memory_space<vmem>>, vector<1x1x64xf32>
    %263 = vector.shape_cast %262 : vector<1x1x64xf32> to vector<1x64xf32>
    %264 = vector.broadcast %263 : vector<1x64xf32> to vector<16x64xf32>
    %265 = arith.addf %261, %264 : vector<16x64xf32>
    %266 = arith.mulf %265, %265 : vector<16x64xf32>
    %267 = arith.mulf %265, %266 : vector<16x64xf32>
    %cst_117 = arith.constant 4.471500e-02 : f32
    %268 = vector.broadcast %cst_117 : f32 to vector<16x64xf32>
    %269 = arith.mulf %268, %267 : vector<16x64xf32>
    %270 = arith.addf %265, %269 : vector<16x64xf32>
    %cst_118 = arith.constant 0.797884583 : f32
    %271 = vector.broadcast %cst_118 : f32 to vector<16x64xf32>
    %272 = arith.mulf %271, %270 : vector<16x64xf32>
    %273 = math.tanh %272 : vector<16x64xf32>
    %cst_119 = arith.constant 1.000000e+00 : f32
    %274 = vector.broadcast %cst_119 : f32 to vector<16x64xf32>
    %275 = arith.addf %274, %273 : vector<16x64xf32>
    %cst_120 = arith.constant 5.000000e-01 : f32
    %276 = vector.broadcast %cst_120 : f32 to vector<16x64xf32>
    %277 = arith.mulf %276, %275 : vector<16x64xf32>
    %278 = arith.mulf %265, %277 : vector<16x64xf32>
    %c1_121 = arith.constant 1 : index
    %c0_122 = arith.constant 0 : index
    %c0_123 = arith.constant 0 : index
    %279 = vector.load %arg16[%c1_121, %c0_122, %c0_123] : memref<2x64x32xf32, #tpu.memory_space<vmem>>, vector<1x64x32xf32>
    %280 = vector.shape_cast %279 : vector<1x64x32xf32> to vector<64x32xf32>
    %cst_124 = arith.constant dense<0.000000e+00> : vector<16x32xf32>
    %281 = tpu.matmul %278, %280, %cst_124 {dimension_numbers = #tpu.dot_dimension_numbers<[1], [0], [0], [1], [0, 0, 1, 1], [], []>} : vector<16x64xf32>, vector<64x32xf32>, vector<16x32xf32> -> vector<16x32xf32>
    %c1_125 = arith.constant 1 : index
    %c0_126 = arith.constant 0 : index
    %c0_127 = arith.constant 0 : index
    %282 = vector.load %arg17[%c1_125, %c0_126, %c0_127] : memref<2x1x32xf32, #tpu.memory_space<vmem>>, vector<1x1x32xf32>
    %283 = vector.shape_cast %282 : vector<1x1x32xf32> to vector<1x32xf32>
    %284 = vector.broadcast %283 : vector<1x32xf32> to vector<16x32xf32>
    %285 = arith.addf %281, %284 : vector<16x32xf32>
    %286 = arith.addf %258, %285 : vector<16x32xf32>
    %c1_128 = arith.constant 1 : index
    %c0_129 = arith.constant 0 : index
    %c0_130 = arith.constant 0 : index
    %287 = vector.load %arg18[%c1_128, %c0_129, %c0_130] : memref<2x1x32xf32, #tpu.memory_space<vmem>>, vector<1x1x32xf32>
    %288 = vector.shape_cast %287 : vector<1x1x32xf32> to vector<1x32xf32>
    %c1_131 = arith.constant 1 : index
    %c0_132 = arith.constant 0 : index
    %c0_133 = arith.constant 0 : index
    %289 = vector.load %arg19[%c1_131, %c0_132, %c0_133] : memref<2x1x32xf32, #tpu.memory_space<vmem>>, vector<1x1x32xf32>
    %290 = vector.shape_cast %289 : vector<1x1x32xf32> to vector<1x32xf32>
    %cst_134 = arith.constant dense<0.000000e+00> : vector<16xf32>
    %291 = vector.multi_reduction <add>, %286, %cst_134 [1] : vector<16x32xf32> to vector<16xf32>
    %292 = vector.shape_cast %291 : vector<16xf32> to vector<16x1xf32>
    %cst_135 = arith.constant 3.200000e+01 : f32
    %293 = vector.broadcast %cst_135 : f32 to vector<16x1xf32>
    %294 = arith.divf %292, %293 : vector<16x1xf32>
    %295 = arith.mulf %286, %286 : vector<16x32xf32>
    %cst_136 = arith.constant dense<0.000000e+00> : vector<16xf32>
    %296 = vector.multi_reduction <add>, %295, %cst_136 [1] : vector<16x32xf32> to vector<16xf32>
    %297 = vector.shape_cast %296 : vector<16xf32> to vector<16x1xf32>
    %cst_137 = arith.constant 3.200000e+01 : f32
    %298 = vector.broadcast %cst_137 : f32 to vector<16x1xf32>
    %299 = arith.divf %297, %298 : vector<16x1xf32>
    %300 = arith.mulf %294, %294 : vector<16x1xf32>
    %301 = arith.subf %299, %300 : vector<16x1xf32>
    %cst_138 = arith.constant 0.000000e+00 : f32
    %302 = vector.broadcast %cst_138 : f32 to vector<16x1xf32>
    %303 = arith.maximumf %301, %302 : vector<16x1xf32>
    %304 = vector.broadcast %294 : vector<16x1xf32> to vector<16x32xf32>
    %305 = arith.subf %286, %304 : vector<16x32xf32>
    %cst_139 = arith.constant 9.99999996E-13 : f32
    %306 = vector.broadcast %cst_139 : f32 to vector<16x1xf32>
    %307 = arith.addf %303, %306 : vector<16x1xf32>
    %308 = math.rsqrt %307 : vector<16x1xf32>
    %309 = vector.broadcast %308 : vector<16x1xf32> to vector<16x32xf32>
    %310 = arith.mulf %305, %309 : vector<16x32xf32>
    %311 = vector.broadcast %288 : vector<1x32xf32> to vector<16x32xf32>
    %312 = arith.mulf %310, %311 : vector<16x32xf32>
    %313 = vector.broadcast %290 : vector<1x32xf32> to vector<16x32xf32>
    %314 = arith.addf %312, %313 : vector<16x32xf32>
    %315 = vector.shape_cast %314 : vector<16x32xf32> to vector<2x8x32xf32>
    %316 = vector.extract_strided_slice %315 {offsets = [0, 0, 0], sizes = [2, 1, 32], strides = [1, 1, 1]} : vector<2x8x32xf32> to vector<2x1x32xf32>
    %317 = vector.shape_cast %316 : vector<2x1x32xf32> to vector<2x32xf32>
    %c0_140 = arith.constant 0 : index
    %c0_141 = arith.constant 0 : index
    %318 = vector.load %arg20[%c0_140, %c0_141] : memref<32x128xf32, #tpu.memory_space<vmem>>, vector<32x128xf32>
    %cst_142 = arith.constant dense<0.000000e+00> : vector<2x128xf32>
    %319 = tpu.matmul %317, %318, %cst_142 {dimension_numbers = #tpu.dot_dimension_numbers<[1], [0], [0], [1], [0, 0, 1, 1], [], []>} : vector<2x32xf32>, vector<32x128xf32>, vector<2x128xf32> -> vector<2x128xf32>
    %c0_143 = arith.constant 0 : index
    %c0_144 = arith.constant 0 : index
    %320 = vector.load %arg21[%c0_143, %c0_144] : memref<1x128xf32, #tpu.memory_space<vmem>>, vector<1x128xf32>
    %321 = vector.broadcast %320 : vector<1x128xf32> to vector<2x128xf32>
    %322 = arith.addf %319, %321 : vector<2x128xf32>
    %c0_145 = arith.constant 0 : index
    %c0_146 = arith.constant 0 : index
    %323 = vector.load %arg22[%c0_145, %c0_146] : memref<2x128xf32, #tpu.memory_space<vmem>>, vector<2x128xf32>
    tpu.vector_store %arg22[%c0_145, %c0_146], %322 {strides = array<i32>} : memref<2x128xf32, #tpu.memory_space<vmem>>, vector<2x128xf32>,
    return
  }
  func.func @transform_0(%arg0: i32) -> (i32, i32) {
    %c0_i32 = arith.constant 0 : i32
    %c0_i32_0 = arith.constant 0 : i32
    %c0_i32_1 = arith.constant 0 : i32
    return %c0_i32, %c0_i32_0 : i32, i32
  }
  func.func @transform_1(%arg0: i32) -> (i32, i32) {
    %c0_i32 = arith.constant 0 : i32
    %c0_i32_0 = arith.constant 0 : i32
    %c0_i32_1 = arith.constant 0 : i32
    return %c0_i32, %c0_i32_0 : i32, i32
  }
  func.func @transform_2(%arg0: i32) -> (i32, i32) {
    %c0_i32 = arith.constant 0 : i32
    %c0_i32_0 = arith.constant 0 : i32
    %c0_i32_1 = arith.constant 0 : i32
    return %c0_i32, %c0_i32_0 : i32, i32
  }
  func.func @transform_3(%arg0: i32) -> (i32, i32) {
    %c0_i32 = arith.constant 0 : i32
    %c0_i32_0 = arith.constant 0 : i32
    %c0_i32_1 = arith.constant 0 : i32
    return %c0_i32, %c0_i32_0 : i32, i32
  }
  func.func @transform_4(%arg0: i32) -> (i32, i32) {
    %c0_i32 = arith.constant 0 : i32
    %c0_i32_0 = arith.constant 0 : i32
    %c0_i32_1 = arith.constant 0 : i32
    return %c0_i32, %c0_i32_0 : i32, i32
  }
  func.func @transform_5(%arg0: i32) -> (i32, i32) {
    %c0_i32 = arith.constant 0 : i32
    %c0_i32_0 = arith.constant 0 : i32
    %c0_i32_1 = arith.constant 0 : i32
    return %c0_i32, %c0_i32_0 : i32, i32
  }
  func.func @transform_6(%arg0: i32) -> (i32, i32) {
    %c0_i32 = arith.constant 0 : i32
    %c0_i32_0 = arith.constant 0 : i32
    %c0_i32_1 = arith.constant 0 : i32
    return %c0_i32, %c0_i32_0 : i32, i32
  }
  func.func @transform_7(%arg0: i32) -> (i32, i32, i32) {
    %c0_i32 = arith.constant 0 : i32
    %c0_i32_0 = arith.constant 0 : i32
    %c0_i32_1 = arith.constant 0 : i32
    %c0_i32_2 = arith.constant 0 : i32
    return %c0_i32, %c0_i32_0, %c0_i32_1 : i32, i32, i32
  }
  func.func @transform_8(%arg0: i32) -> (i32, i32, i32) {
    %c0_i32 = arith.constant 0 : i32
    %c0_i32_0 = arith.constant 0 : i32
    %c0_i32_1 = arith.constant 0 : i32
    %c0_i32_2 = arith.constant 0 : i32
    return %c0_i32, %c0_i32_0, %c0_i32_1 : i32, i32, i32
  }
  func.func @transform_9(%arg0: i32) -> (i32, i32, i32) {
    %c0_i32 = arith.constant 0 : i32
    %c0_i32_0 = arith.constant 0 : i32
    %c0_i32_1 = arith.constant 0 : i32
    %c0_i32_2 = arith.constant 0 : i32
    return %c0_i32, %c0_i32_0, %c0_i32_1 : i32, i32, i32
  }
  func.func @transform_10(%arg0: i32) -> (i32, i32, i32) {
    %c0_i32 = arith.constant 0 : i32
    %c0_i32_0 = arith.constant 0 : i32
    %c0_i32_1 = arith.constant 0 : i32
    %c0_i32_2 = arith.constant 0 : i32
    return %c0_i32, %c0_i32_0, %c0_i32_1 : i32, i32, i32
  }
  func.func @transform_11(%arg0: i32) -> (i32, i32, i32) {
    %c0_i32 = arith.constant 0 : i32
    %c0_i32_0 = arith.constant 0 : i32
    %c0_i32_1 = arith.constant 0 : i32
    %c0_i32_2 = arith.constant 0 : i32
    return %c0_i32, %c0_i32_0, %c0_i32_1 : i32, i32, i32
  }
  func.func @transform_12(%arg0: i32) -> (i32, i32, i32) {
    %c0_i32 = arith.constant 0 : i32
    %c0_i32_0 = arith.constant 0 : i32
    %c0_i32_1 = arith.constant 0 : i32
    %c0_i32_2 = arith.constant 0 : i32
    return %c0_i32, %c0_i32_0, %c0_i32_1 : i32, i32, i32
  }
  func.func @transform_13(%arg0: i32) -> (i32, i32, i32) {
    %c0_i32 = arith.constant 0 : i32
    %c0_i32_0 = arith.constant 0 : i32
    %c0_i32_1 = arith.constant 0 : i32
    %c0_i32_2 = arith.constant 0 : i32
    return %c0_i32, %c0_i32_0, %c0_i32_1 : i32, i32, i32
  }
  func.func @transform_14(%arg0: i32) -> (i32, i32, i32) {
    %c0_i32 = arith.constant 0 : i32
    %c0_i32_0 = arith.constant 0 : i32
    %c0_i32_1 = arith.constant 0 : i32
    %c0_i32_2 = arith.constant 0 : i32
    return %c0_i32, %c0_i32_0, %c0_i32_1 : i32, i32, i32
  }
  func.func @transform_15(%arg0: i32) -> (i32, i32, i32) {
    %c0_i32 = arith.constant 0 : i32
    %c0_i32_0 = arith.constant 0 : i32
    %c0_i32_1 = arith.constant 0 : i32
    %c0_i32_2 = arith.constant 0 : i32
    return %c0_i32, %c0_i32_0, %c0_i32_1 : i32, i32, i32
  }
  func.func @transform_16(%arg0: i32) -> (i32, i32, i32) {
    %c0_i32 = arith.constant 0 : i32
    %c0_i32_0 = arith.constant 0 : i32
    %c0_i32_1 = arith.constant 0 : i32
    %c0_i32_2 = arith.constant 0 : i32
    return %c0_i32, %c0_i32_0, %c0_i32_1 : i32, i32, i32
  }
  func.func @transform_17(%arg0: i32) -> (i32, i32, i32) {
    %c0_i32 = arith.constant 0 : i32
    %c0_i32_0 = arith.constant 0 : i32
    %c0_i32_1 = arith.constant 0 : i32
    %c0_i32_2 = arith.constant 0 : i32
    return %c0_i32, %c0_i32_0, %c0_i32_1 : i32, i32, i32
  }
  func.func @transform_18(%arg0: i32) -> (i32, i32, i32) {
    %c0_i32 = arith.constant 0 : i32
    %c0_i32_0 = arith.constant 0 : i32
    %c0_i32_1 = arith.constant 0 : i32
    %c0_i32_2 = arith.constant 0 : i32
    return %c0_i32, %c0_i32_0, %c0_i32_1 : i32, i32, i32
  }
  func.func @transform_19(%arg0: i32) -> (i32, i32) {
    %c0_i32 = arith.constant 0 : i32
    %c0_i32_0 = arith.constant 0 : i32
    %c0_i32_1 = arith.constant 0 : i32
    return %c0_i32, %c0_i32_0 : i32, i32
  }
  func.func @transform_20(%arg0: i32) -> (i32, i32) {
    %c0_i32 = arith.constant 0 : i32
    %c0_i32_0 = arith.constant 0 : i32
    %c0_i32_1 = arith.constant 0 : i32
    return %c0_i32, %c0_i32_0 : i32, i32
  }
  func.func @transform_21(%arg0: i32) -> (i32, i32) {
    %c0_i32 = arith.constant 0 : i32
    %c0_i32_0 = arith.constant 0 : i32
    %c0_i32_1 = arith.constant 0 : i32
    return %c0_i32, %c0_i32_0 : i32, i32
  }
}

</mosaic_0001>

<llo_original>
// kernel: _lambda_.1
$region0: #{_lambda_.1}
  #allocation0 [shape = 'u32[]', space=smem, size = 0x4, offset = 0x4, fixed_abs, tag = 'smem constant byte address 0x4 - core index']
  #allocation1 [shape = 'u32[144,128]{1,0:T(1,128)}', space=vmem, size = 0x12000, scoped, tag = 'internal scratch']
  %s0 = inlined_call_operand.vmem [shape: s32[16,1], index: 0, kind: input, shape index: {}]
  %s1 = inlined_call_operand.vmem [shape: s32[16,1], index: 1, kind: input, shape index: {}]
  %s2 = inlined_call_operand.vmem [shape: s32[16,1], index: 2, kind: input, shape index: {}]
  %s3 = inlined_call_operand.vmem [shape: f32[2,8], index: 3, kind: input, shape index: {}]
  %s4 = inlined_call_operand.vmem [shape: f32[128,32], index: 4, kind: input, shape index: {}]
  %s5 = inlined_call_operand.vmem [shape: f32[1,32], index: 5, kind: input, shape index: {}]
  %s6 = inlined_call_operand.vmem [shape: f32[1,32], index: 6, kind: input, shape index: {}]
  %s7 = inlined_call_operand.vmem [shape: f32[2,32,96], index: 7, kind: input, shape index: {}]
  %s8 = inlined_call_operand.vmem [shape: f32[2,1,96], index: 8, kind: input, shape index: {}]
  %s9 = inlined_call_operand.vmem [shape: f32[2,32,32], index: 9, kind: input, shape index: {}]
  %s10 = inlined_call_operand.vmem [shape: f32[2,1,32], index: 10, kind: input, shape index: {}]
  %s11 = inlined_call_operand.vmem [shape: f32[2,1,32], index: 11, kind: input, shape index: {}]
  %s12 = inlined_call_operand.vmem [shape: f32[2,1,32], index: 12, kind: input, shape index: {}]
  %s13 = inlined_call_operand.vmem [shape: f32[2,32,64], index: 13, kind: input, shape index: {}]
  %s14 = inlined_call_operand.vmem [shape: f32[2,1,64], index: 14, kind: input, shape index: {}]
  %s15 = inlined_call_operand.vmem [shape: f32[2,64,32], index: 15, kind: input, shape index: {}]
  %s16 = inlined_call_operand.vmem [shape: f32[2,1,32], index: 16, kind: input, shape index: {}]
  %s17 = inlined_call_operand.vmem [shape: f32[2,1,32], index: 17, kind: input, shape index: {}]
  %s18 = inlined_call_operand.vmem [shape: f32[2,1,32], index: 18, kind: input, shape index: {}]
  %s19 = inlined_call_operand.vmem [shape: f32[32,128], index: 19, kind: input, shape index: {}]
  %s20 = inlined_call_operand.vmem [shape: f32[1,128], index: 20, kind: input, shape index: {}]
  %s21 = inlined_call_operand.vmem [shape: f32[2,128], index: 21, kind: output, shape index: {}]
  %s22 = sld [smem:[#allocation0]]
  $region94: #{_lambda_.1} parent=0
    _
  %s24 = ssub.s32 1, %s22
  %s25 = scalar_select 0, %s24, %s22
  // Predicated region
  $region2: #{_lambda_.1} parent=0 // pred_check
    _
  $region3: #{_lambda_.1} parent=0 // pred_check_branch
    %27 = sbr.rel (0) target = $region5
  $region4: #{_lambda_.1} parent=0 // pred_region
    _
  $region5: #{_lambda_.1} parent=0 // pred_fallthru
    _
  // Predicated region
  $region6: #{_lambda_.1} parent=0 // pred_check
    _
  $region7: #{_lambda_.1} parent=0 // pred_check_branch
    %29 = sbr.rel (0) target = $region9
  $region8: #{_lambda_.1} parent=0 // pred_region
    _
  $region9: #{_lambda_.1} parent=0 // pred_fallthru
    _
  // Predicated region
  $region10: #{_lambda_.1} parent=0 // pred_check
    _
  $region11: #{_lambda_.1} parent=0 // pred_check_branch
    %31 = sbr.rel (0) target = $region13
  $region12: #{_lambda_.1} parent=0 // pred_region
    _
  $region13: #{_lambda_.1} parent=0 // pred_fallthru
    _
  // Predicated region
  $region14: #{_lambda_.1} parent=0 // pred_check
    _
  $region15: #{_lambda_.1} parent=0 // pred_check_branch
    %33 = sbr.rel (0) target = $region17
  $region16: #{_lambda_.1} parent=0 // pred_region
    _
  $region17: #{_lambda_.1} parent=0 // pred_fallthru
    _
  // Predicated region
  $region18: #{_lambda_.1} parent=0 // pred_check
    _
  $region19: #{_lambda_.1} parent=0 // pred_check_branch
    %35 = sbr.rel (0) target = $region21
  $region20: #{_lambda_.1} parent=0 // pred_region
    _
  $region21: #{_lambda_.1} parent=0 // pred_fallthru
    _
  // Predicated region
  $region22: #{_lambda_.1} parent=0 // pred_check
    _
  $region23: #{_lambda_.1} parent=0 // pred_check_branch
    %37 = sbr.rel (0) target = $region25
  $region24: #{_lambda_.1} parent=0 // pred_region
    _
  $region25: #{_lambda_.1} parent=0 // pred_fallthru
    _
  // Predicated region
  $region26: #{_lambda_.1} parent=0 // pred_check
    _
  $region27: #{_lambda_.1} parent=0 // pred_check_branch
    %39 = sbr.rel (0) target = $region29
  $region28: #{_lambda_.1} parent=0 // pred_region
    _
  $region29: #{_lambda_.1} parent=0 // pred_fallthru
    _
  // Predicated region
  $region30: #{_lambda_.1} parent=0 // pred_check
    _
  $region31: #{_lambda_.1} parent=0 // pred_check_branch
    %41 = sbr.rel (0) target = $region33
  $region32: #{_lambda_.1} parent=0 // pred_region
    _
  $region33: #{_lambda_.1} parent=0 // pred_fallthru
    _
  // Predicated region
  $region34: #{_lambda_.1} parent=0 // pred_check
    _
  $region35: #{_lambda_.1} parent=0 // pred_check_branch
    %43 = sbr.rel (0) target = $region37
  $region36: #{_lambda_.1} parent=0 // pred_region
    _
  $region37: #{_lambda_.1} parent=0 // pred_fallthru
    _
  // Predicated region
  $region38: #{_lambda_.1} parent=0 // pred_check
    _
  $region39: #{_lambda_.1} parent=0 // pred_check_branch
    %45 = sbr.rel (0) target = $region41
  $region40: #{_lambda_.1} parent=0 // pred_region
    _
  $region41: #{_lambda_.1} parent=0 // pred_fallthru
    _
  // Predicated region
  $region42: #{_lambda_.1} parent=0 // pred_check
    _
  $region43: #{_lambda_.1} parent=0 // pred_check_branch
    %47 = sbr.rel (0) target = $region45
  $region44: #{_lambda_.1} parent=0 // pred_region
    _
  $region45: #{_lambda_.1} parent=0 // pred_fallthru
    _
  // Predicated region
  $region46: #{_lambda_.1} parent=0 // pred_check
    _
  $region47: #{_lambda_.1} parent=0 // pred_check_branch
    %49 = sbr.rel (0) target = $region49
  $region48: #{_lambda_.1} parent=0 // pred_region
    _
  $region49: #{_lambda_.1} parent=0 // pred_fallthru
    _
  // Predicated region
  $region50: #{_lambda_.1} parent=0 // pred_check
    _
  $region51: #{_lambda_.1} parent=0 // pred_check_branch
    %51 = sbr.rel (0) target = $region53
  $region52: #{_lambda_.1} parent=0 // pred_region
    _
  $region53: #{_lambda_.1} parent=0 // pred_fallthru
    _
  // Predicated region
  $region54: #{_lambda_.1} parent=0 // pred_check
    _
  $region55: #{_lambda_.1} parent=0 // pred_check_branch
    %53 = sbr.rel (0) target = $region57
  $region56: #{_lambda_.1} parent=0 // pred_region
    _
  $region57: #{_lambda_.1} parent=0 // pred_fallthru
    _
  // Predicated region
  $region58: #{_lambda_.1} parent=0 // pred_check
    _
  $region59: #{_lambda_.1} parent=0 // pred_check_branch
    %55 = sbr.rel (0) target = $region61
  $region60: #{_lambda_.1} parent=0 // pred_region
    _
  $region61: #{_lambda_.1} parent=0 // pred_fallthru
    _
  // Predicated region
  $region62: #{_lambda_.1} parent=0 // pred_check
    _
  $region63: #{_lambda_.1} parent=0 // pred_check_branch
    %57 = sbr.rel (0) target = $region65
  $region64: #{_lambda_.1} parent=0 // pred_region
    _
  $region65: #{_lambda_.1} parent=0 // pred_fallthru
    _
  // Predicated region
  $region66: #{_lambda_.1} parent=0 // pred_check
    _
  $region67: #{_lambda_.1} parent=0 // pred_check_branch
    %59 = sbr.rel (0) target = $region69
  $region68: #{_lambda_.1} parent=0 // pred_region
    _
  $region69: #{_lambda_.1} parent=0 // pred_fallthru
    _
  // Predicated region
  $region70: #{_lambda_.1} parent=0 // pred_check
    _
  $region71: #{_lambda_.1} parent=0 // pred_check_branch
    %61 = sbr.rel (0) target = $region73
  $region72: #{_lambda_.1} parent=0 // pred_region
    _
  $region73: #{_lambda_.1} parent=0 // pred_fallthru
    _
  // Predicated region
  $region74: #{_lambda_.1} parent=0 // pred_check
    _
  $region75: #{_lambda_.1} parent=0 // pred_check_branch
    %63 = sbr.rel (0) target = $region77
  $region76: #{_lambda_.1} parent=0 // pred_region
    _
  $region77: #{_lambda_.1} parent=0 // pred_fallthru
    _
  // Predicated region
  $region78: #{_lambda_.1} parent=0 // pred_check
    _
  $region79: #{_lambda_.1} parent=0 // pred_check_branch
    %65 = sbr.rel (0) target = $region81
  $region80: #{_lambda_.1} parent=0 // pred_region
    _
  $region81: #{_lambda_.1} parent=0 // pred_fallthru
    _
  // Predicated region
  $region82: #{_lambda_.1} parent=0 // pred_check
    _
  $region83: #{_lambda_.1} parent=0 // pred_check_branch
    %67 = sbr.rel (0) target = $region85
  $region84: #{_lambda_.1} parent=0 // pred_region
    _
  $region85: #{_lambda_.1} parent=0 // pred_fallthru
    _
  %v68 = vlaneseq
  %v69 = vand.u32 %v68, 127
  %v70 = vld [vmem:[%s0] sm:$0xff]
  %v71 = vld [vmem:[%s0 + $0x8] sm:$0xff]
  %72 = vset.pattern.permute.xlu0 0
  %73 = vperm.xlu0 %72, %v70
  %v74 = vpop.permute.xlu0 %73
  %75 = vset.pattern.permute.xlu0 0
  %76 = vperm.xlu0 %75, %v71
  %v77 = vpop.permute.xlu0 %76
  %vm78 = vcmp.eq.s32.totalorder %v69, %v74
  %vm79 = vcmp.eq.s32.totalorder %v69, %v77
  %v80 = vld [vmem:[%s1] sm:$0xff]
  %v81 = vld [vmem:[%s1 + $0x8] sm:$0xff]
  %82 = vset.pattern.permute.xlu0 0
  %83 = vperm.xlu0 %82, %v80
  %v84 = vpop.permute.xlu0 %83
  %85 = vset.pattern.permute.xlu0 0
  %86 = vperm.xlu0 %85, %v81
  %v87 = vpop.permute.xlu0 %86
  %vm88 = vcmp.eq.s32.totalorder %v69, %v84
  %vm89 = vcmp.eq.s32.totalorder %v69, %v87
  %vm90 = vmor %vm78, %vm88
  %vm91 = vmor %vm79, %vm89
  %v92 = vld [vmem:[%s2] sm:$0xff]
  %v93 = vld [vmem:[%s2 + $0x8] sm:$0xff]
  %94 = vset.pattern.permute.xlu0 0
  %95 = vperm.xlu0 %94, %v92
  %v96 = vpop.permute.xlu0 %95
  %97 = vset.pattern.permute.xlu0 0
  %98 = vperm.xlu0 %97, %v93
  %v99 = vpop.permute.xlu0 %98
  %vm100 = vcmp.eq.s32.totalorder %v69, %v96
  %vm101 = vcmp.eq.s32.totalorder %v69, %v99
  %vm102 = vmor %vm90, %vm100
  %vm103 = vmor %vm91, %vm101
  %v104 = vsel %vm102, 1, 0
  %v105 = vsel %vm103, 1, 0
  %v106 = vcvt.s32.f32 %v104
  %v107 = vcvt.s32.f32 %v105
  %v108 = vld [vmem:[%s4] sm:$0xff]
  %v109 = vld [vmem:[%s4 + $0x8] sm:$0xff]
  %v110 = vld [vmem:[%s4 + $0x10] sm:$0xff]
  %v111 = vld [vmem:[%s4 + $0x18] sm:$0xff]
  %v112 = vld [vmem:[%s4 + $0x20] sm:$0xff]
  %v113 = vld [vmem:[%s4 + $0x28] sm:$0xff]
  %v114 = vld [vmem:[%s4 + $0x30] sm:$0xff]
  %v115 = vld [vmem:[%s4 + $0x38] sm:$0xff]
  %v116 = vld [vmem:[%s4 + $0x40] sm:$0xff]
  %v117 = vld [vmem:[%s4 + $0x48] sm:$0xff]
  %v118 = vld [vmem:[%s4 + $0x50] sm:$0xff]
  %v119 = vld [vmem:[%s4 + $0x58] sm:$0xff]
  %v120 = vld [vmem:[%s4 + $0x60] sm:$0xff]
  %v121 = vld [vmem:[%s4 + $0x68] sm:$0xff]
  %v122 = vld [vmem:[%s4 + $0x70] sm:$0xff]
  %v123 = vld [vmem:[%s4 + $0x78] sm:$0xff]
  %124 = vmatprep.subr.mxu0 0.0
  %125 = vmatpush1.msra.mxu0 %v123
  %126 = vmatprep.subr.mxu0 0.0
  %127 = vmatpush1.msra.mxu0 %v122
  %128 = vmatprep.subr.mxu0 0.0
  %129 = vmatpush1.msra.mxu0 %v121
  %130 = vmatprep.subr.mxu0 0.0
  %131 = vmatpush1.msra.mxu0 %v120
  %132 = vmatprep.subr.mxu0 0.0
  %133 = vmatpush1.msra.mxu0 %v119
  %134 = vmatprep.subr.mxu0 0.0
  %135 = vmatpush1.msra.mxu0 %v118
  %136 = vmatprep.subr.mxu0 0.0
  %137 = vmatpush1.msra.mxu0 %v117
  %138 = vmatprep.subr.mxu0 0.0
  %139 = vmatpush1.msra.mxu0 %v116
  %140 = vmatprep.subr.mxu0 0.0
  %141 = vmatpush1.msra.mxu0 %v115
  %142 = vmatprep.subr.mxu0 0.0
  %143 = vmatpush1.msra.mxu0 %v114
  %144 = vmatprep.subr.mxu0 0.0
  %145 = vmatpush1.msra.mxu0 %v113
  %146 = vmatprep.subr.mxu0 0.0
  %147 = vmatpush1.msra.mxu0 %v112
  %148 = vmatprep.subr.mxu0 0.0
  %149 = vmatpush1.msra.mxu0 %v111
  %150 = vmatprep.subr.mxu0 0.0
  %151 = vmatpush1.msra.mxu0 %v110
  %152 = vmatprep.subr.mxu0 0.0
  %153 = vmatpush1.msra.mxu0 %v109
  %154 = vmatprep.subr.mxu0 0.0
  %155 = vmatpush1.msra.mxu0 %v108
  %156 = vmatprep.subr.mxu0 0.0
  %157 = vmatpush2.msra.mxu0 0.0
  %158 = vmatprep.subr.mxu0 0.0
  %159 = vmatpush2.msra.mxu0 0.0
  %160 = vmatprep.subr.mxu0 0.0
  %161 = vmatpush2.msra.mxu0 0.0
  %162 = vmatprep.subr.mxu0 0.0
  %163 = vmatpush2.msra.mxu0 0.0
  %164 = vmatprep.subr.mxu0 0.0
  %165 = vmatpush2.msra.mxu0 0.0
  %166 = vmatprep.subr.mxu0 0.0
  %167 = vmatpush2.msra.mxu0 0.0
  %168 = vmatprep.subr.mxu0 0.0
  %169 = vmatpush2.msra.mxu0 0.0
  %170 = vmatprep.subr.mxu0 0.0
  %171 = vmatpush2.msra.mxu0 0.0
  %172 = vmatprep.subr.mxu0 0.0
  %173 = vmatpush2.msra.mxu0 0.0
  %174 = vmatprep.subr.mxu0 0.0
  %175 = vmatpush2.msra.mxu0 0.0
  %176 = vmatprep.subr.mxu0 0.0
  %177 = vmatpush2.msra.mxu0 0.0
  %178 = vmatprep.subr.mxu0 0.0
  %179 = vmatpush2.msra.mxu0 0.0
  %180 = vmatprep.subr.mxu0 0.0
  %181 = vmatpush2.msra.mxu0 0.0
  %182 = vmatprep.subr.mxu0 0.0
  %183 = vmatpush2.msra.mxu0 0.0
  %184 = vmatprep.subr.mxu0 0.0
  %185 = vmatpush2.msra.mxu0 0.0
  %186 = vmatprep.subr.mxu0 0.0
  %187 = vmatpush2.msra.mxu0 0.0
  %188 = vmatprep.mubr.f32.mxu0 0.0
  %189 = vmatmul.mubr.f32.gmra.mxu0 %v106
  %v190 = vpop.f32.mrf.mxu0
  %v191 = vadd.f32 0.0, %v190
  %v192 = vpop.f32.mrf.mxu0
  %193 = vmatprep.mubr.f32.mxu0 0.0
  %194 = vmatmul.mubr.f32.gmra.mxu0 %v107
  %v195 = vpop.f32.mrf.mxu0
  %v196 = vadd.f32 0.0, %v195
  %v197 = vpop.f32.mrf.mxu0
  %198 = vdwg.mxu0
  %v199 = vld [vmem:[%s5] sm:$0x1]
  %v200 = vld [vmem:[%s6] sm:$0x1]
  %vm201 = vcmask 261120
  %v202 = vsel %vm201, %v191, 0.0
  %203 = vadd.xlane.f32.xlu0 %v202
  %v204 = vpop.xlane.xlu0 %203
  %v205 = vsel %vm201, %v196, 0.0
  %206 = vadd.xlane.f32.xlu0 %v205
  %v207 = vpop.xlane.xlu0 %206
  %v208 = vrcp.pop 32.0
  %v209 = vmul.f32 %v204, %v208
  %v210 = vmul.f32 %v207, %v208
  %v211 = vmul.f32 %v191, %v191
  %v212 = vmul.f32 %v196, %v196
  %v213 = vsel %vm201, %v211, 0.0
  %214 = vadd.xlane.f32.xlu0 %v213
  %v215 = vpop.xlane.xlu0 %214
  %v216 = vsel %vm201, %v212, 0.0
  %217 = vadd.xlane.f32.xlu0 %v216
  %v218 = vpop.xlane.xlu0 %217
  %v219 = vmul.f32 %v215, %v208
  %v220 = vmul.f32 %v218, %v208
  %v221 = vmul.f32 %v209, %v209
  %v222 = vmul.f32 %v210, %v210
  %v223 = vsub.f32 %v219, %v221
  %v224 = vsub.f32 %v220, %v222
  %v225 = vmax.f32 %v223, 0.0
  %v226 = vmax.f32 %v224, 0.0
  %v227 = vsub.f32 %v191, %v209
  %v228 = vsub.f32 %v196, %v210
  %v229 = vadd.f32 %v225, 1e-12
  %v230 = vadd.f32 %v226, 1e-12
  %v231 = vrsqrt.pop %v229
  %v232 = vrsqrt.pop %v230
  %v233 = vmul.f32 %v227, %v231
  %v234 = vmul.f32 %v228, %v232
  %v236 = vlaneseq
  %v237 = vshrl.u32 %v236, 7
  %v238 = vsub.s32 0, %v237
  %v239 = vrot.slane %v199, %v238
  %v241 = vmul.f32 %v233, %v239
  %v242 = vmul.f32 %v234, %v239
  %v244 = vlaneseq
  %v245 = vshrl.u32 %v244, 7
  %v246 = vsub.s32 0, %v245
  %v247 = vrot.slane %v200, %v246
  %v249 = vadd.f32 %v241, %v247
  %v250 = vadd.f32 %v242, %v247
  %v251 = vld [vmem:[%s3] sm:$0x3]
  %v252 = vsub.f32 1.0, %v251
  %v253 = vmul.f32 %v252, -10000.0
  %v256 = vunpack.c.l.s4 1966171168
  %v257 = vunpack.c.0.s8 %v256
  %v258 = vlaneseq
  %v259 = vshrl.u32 %v258, 7
  %v260 = vsub.s32 %v257, %v259
  %v261 = vrot.slane %v253, %v260
  %v262 = vcombine.high %v261, %v261
  %v264 = vunpack.c.l.s4 1966171168
  %v265 = vunpack.c.0.s8 %v264
  %v266 = vlaneseq
  %v267 = vshrl.u32 %v266, 7
  %v268 = vsub.s32 %v265, %v267
  %v269 = vrot.slane %v261, %v268
  %v271 = vunpack.c.l.s4 1966171168
  %v272 = vunpack.c.0.s8 %v271
  %v273 = vlaneseq
  %v274 = vshrl.u32 %v273, 7
  %v275 = vsub.s32 %v272, %v274
  %v276 = vrot.slane %v262, %v275
  %v277 = vlaneseq
  %v278 = vshrl.u32 %v277, 7
  %v279 = vsub.s32 0, %v278
  %v280 = vrot.slane %v269, %v279
  %v281 = vlaneseq
  %v282 = vshrl.u32 %v281, 7
  %v283 = vsub.s32 0, %v282
  %v284 = vrot.slane %v276, %v283
  %v287 = vld [vmem:[%s7] sm:$0xff]
  %v288 = vld [vmem:[%s7 + $0x8] sm:$0xff]
  %v289 = vld [vmem:[%s7 + $0x10] sm:$0xff]
  %v290 = vld [vmem:[%s7 + $0x18] sm:$0xff]
  %v291 = vld [vmem:[%s8] sm:$0x1]
  %v293 = vlaneseq
  %v294 = vshrl.u32 %v293, 7
  %v295 = vsub.s32 0, %v294
  %v296 = vrot.slane %v291, %v295
  %v299 = vsel %vm201, %v249, 0
  %v302 = vsel %vm201, %v250, 0
  %304 = vmatprep.subr.mxu0 0.0
  %305 = vmatpush1.msra.mxu0 0.0
  %306 = vmatprep.subr.mxu0 0.0
  %307 = vmatpush1.msra.mxu0 0.0
  %308 = vmatprep.subr.mxu0 0.0
  %309 = vmatpush1.msra.mxu0 0.0
  %310 = vmatprep.subr.mxu0 0.0
  %311 = vmatpush1.msra.mxu0 0.0
  %312 = vmatprep.subr.mxu0 0.0
  %313 = vmatpush1.msra.mxu0 0.0
  %314 = vmatprep.subr.mxu0 0.0
  %315 = vmatpush1.msra.mxu0 0.0
  %316 = vmatprep.subr.mxu0 0.0
  %317 = vmatpush1.msra.mxu0 0.0
  %318 = vmatprep.subr.mxu0 0.0
  %319 = vmatpush1.msra.mxu0 0.0
  %320 = vmatprep.subr.mxu0 0.0
  %321 = vmatpush1.msra.mxu0 0.0
  %322 = vmatprep.subr.mxu0 0.0
  %323 = vmatpush1.msra.mxu0 0.0
  %324 = vmatprep.subr.mxu0 0.0
  %325 = vmatpush1.msra.mxu0 0.0
  %326 = vmatprep.subr.mxu0 0.0
  %327 = vmatpush1.msra.mxu0 0.0
  %328 = vmatprep.subr.mxu0 0.0
  %329 = vmatpush1.msra.mxu0 %v290
  %330 = vmatprep.subr.mxu0 0.0
  %331 = vmatpush1.msra.mxu0 %v289
  %332 = vmatprep.subr.mxu0 0.0
  %333 = vmatpush1.msra.mxu0 %v288
  %334 = vmatprep.subr.mxu0 0.0
  %335 = vmatpush1.msra.mxu0 %v287
  %336 = vmatprep.subr.mxu0 0.0
  %337 = vmatpush2.msra.mxu0 0.0
  %338 = vmatprep.subr.mxu0 0.0
  %339 = vmatpush2.msra.mxu0 0.0
  %340 = vmatprep.subr.mxu0 0.0
  %341 = vmatpush2.msra.mxu0 0.0
  %342 = vmatprep.subr.mxu0 0.0
  %343 = vmatpush2.msra.mxu0 0.0
  %344 = vmatprep.subr.mxu0 0.0
  %345 = vmatpush2.msra.mxu0 0.0
  %346 = vmatprep.subr.mxu0 0.0
  %347 = vmatpush2.msra.mxu0 0.0
  %348 = vmatprep.subr.mxu0 0.0
  %349 = vmatpush2.msra.mxu0 0.0
  %350 = vmatprep.subr.mxu0 0.0
  %351 = vmatpush2.msra.mxu0 0.0
  %352 = vmatprep.subr.mxu0 0.0
  %353 = vmatpush2.msra.mxu0 0.0
  %354 = vmatprep.subr.mxu0 0.0
  %355 = vmatpush2.msra.mxu0 0.0
  %356 = vmatprep.subr.mxu0 0.0
  %357 = vmatpush2.msra.mxu0 0.0
  %358 = vmatprep.subr.mxu0 0.0
  %359 = vmatpush2.msra.mxu0 0.0
  %360 = vmatprep.subr.mxu0 0.0
  %361 = vmatpush2.msra.mxu0 0.0
  %362 = vmatprep.subr.mxu0 0.0
  %363 = vmatpush2.msra.mxu0 0.0
  %364 = vmatprep.subr.mxu0 0.0
  %365 = vmatpush2.msra.mxu0 0.0
  %366 = vmatprep.subr.mxu0 0.0
  %367 = vmatpush2.msra.mxu0 0.0
  %368 = vmatprep.mubr.f32.mxu0 0.0
  %369 = vmatmul.mubr.f32.gmra.mxu0 %v299
  %v370 = vpop.f32.mrf.mxu0
  %v371 = vadd.f32 %v296, %v370
  %v372 = vpop.f32.mrf.mxu0
  %373 = vmatprep.mubr.f32.mxu0 0.0
  %374 = vmatmul.mubr.f32.gmra.mxu0 %v302
  %v375 = vpop.f32.mrf.mxu0
  %v376 = vadd.f32 %v296, %v375
  %v377 = vpop.f32.mrf.mxu0
  %378 = vdwg.mxu0
  %381 = vrot.lane.b32.xlu0 %v371, 112
  %v382 = vpop.permute.xlu0 %381
  %383 = vrot.lane.b32.xlu0 %v376, 112
  %v384 = vpop.permute.xlu0 %383
  %385 = vrot.lane.b32.xlu0 %v371, 96
  %v386 = vpop.permute.xlu0 %385
  %vm387 = vcmask 130048
  %v388 = vsel %vm387, %v371, 0
  %v390 = vsel %vm387, %v386, 0
  %392 = vmatprep.subr.mxu0 0.0
  %393 = vmatpush1.xpose.msra.mxu0 0.0
  %394 = vmatprep.subr.mxu0 0.0
  %395 = vmatpush1.xpose.msra.mxu0 0.0
  %396 = vmatprep.subr.mxu0 0.0
  %397 = vmatpush1.xpose.msra.mxu0 0.0
  %398 = vmatprep.subr.mxu0 0.0
  %399 = vmatpush1.xpose.msra.mxu0 0.0
  %400 = vmatprep.subr.mxu0 0.0
  %401 = vmatpush1.xpose.msra.mxu0 0.0
  %402 = vmatprep.subr.mxu0 0.0
  %403 = vmatpush1.xpose.msra.mxu0 0.0
  %404 = vmatprep.subr.mxu0 0.0
  %405 = vmatpush1.xpose.msra.mxu0 0.0
  %406 = vmatprep.subr.mxu0 0.0
  %407 = vmatpush1.xpose.msra.mxu0 0.0
  %408 = vmatprep.subr.mxu0 0.0
  %409 = vmatpush1.xpose.msra.mxu0 0.0
  %410 = vmatprep.subr.mxu0 0.0
  %411 = vmatpush1.xpose.msra.mxu0 0.0
  %412 = vmatprep.subr.mxu0 0.0
  %413 = vmatpush1.xpose.msra.mxu0 0.0
  %414 = vmatprep.subr.mxu0 0.0
  %415 = vmatpush1.xpose.msra.mxu0 0.0
  %416 = vmatprep.subr.mxu0 0.0
  %417 = vmatpush1.xpose.msra.mxu0 0.0
  %418 = vmatprep.subr.mxu0 0.0
  %419 = vmatpush1.xpose.msra.mxu0 0.0
  %420 = vmatprep.subr.mxu0 0.0
  %421 = vmatpush1.xpose.msra.mxu0 0.0
  %422 = vmatprep.subr.mxu0 0.0
  %423 = vmatpush1.xpose.msra.mxu0 %v390
  %424 = vmatprep.subr.mxu0 0.0
  %425 = vmatpush2.xpose.msra.mxu0 0.0
  %426 = vmatprep.subr.mxu0 0.0
  %427 = vmatpush2.xpose.msra.mxu0 0.0
  %428 = vmatprep.subr.mxu0 0.0
  %429 = vmatpush2.xpose.msra.mxu0 0.0
  %430 = vmatprep.subr.mxu0 0.0
  %431 = vmatpush2.xpose.msra.mxu0 0.0
  %432 = vmatprep.subr.mxu0 0.0
  %433 = vmatpush2.xpose.msra.mxu0 0.0
  %434 = vmatprep.subr.mxu0 0.0
  %435 = vmatpush2.xpose.msra.mxu0 0.0
  %436 = vmatprep.subr.mxu0 0.0
  %437 = vmatpush2.xpose.msra.mxu0 0.0
  %438 = vmatprep.subr.mxu0 0.0
  %439 = vmatpush2.xpose.msra.mxu0 0.0
  %440 = vmatprep.subr.mxu0 0.0
  %441 = vmatpush2.xpose.msra.mxu0 0.0
  %442 = vmatprep.subr.mxu0 0.0
  %443 = vmatpush2.xpose.msra.mxu0 0.0
  %444 = vmatprep.subr.mxu0 0.0
  %445 = vmatpush2.xpose.msra.mxu0 0.0
  %446 = vmatprep.subr.mxu0 0.0
  %447 = vmatpush2.xpose.msra.mxu0 0.0
  %448 = vmatprep.subr.mxu0 0.0
  %449 = vmatpush2.xpose.msra.mxu0 0.0
  %450 = vmatprep.subr.mxu0 0.0
  %451 = vmatpush2.xpose.msra.mxu0 0.0
  %452 = vmatprep.subr.mxu0 0.0
  %453 = vmatpush2.xpose.msra.mxu0 0.0
  %454 = vmatprep.subr.mxu0 0.0
  %455 = vmatpush2.xpose.msra.mxu0 0.0
  %456 = vmatprep.mubr.f32.mxu0 0.0
  %457 = vmatmul.mubr.f32.gmra.mxu0 %v388
  %v458 = vpop.f32.mrf.mxu0
  %v459 = vadd.f32 %v280, %v458
  %v460 = vpop.f32.mrf.mxu0
  %461 = vdwg.mxu0
  %462 = vrot.lane.b32.xlu0 %v376, 96
  %v463 = vpop.permute.xlu0 %462
  %v464 = vsel %vm387, %v376, 0
  %v466 = vsel %vm387, %v463, 0
  %468 = vmatprep.subr.mxu0 0.0
  %469 = vmatpush1.xpose.msra.mxu0 0.0
  %470 = vmatprep.subr.mxu0 0.0
  %471 = vmatpush1.xpose.msra.mxu0 0.0
  %472 = vmatprep.subr.mxu0 0.0
  %473 = vmatpush1.xpose.msra.mxu0 0.0
  %474 = vmatprep.subr.mxu0 0.0
  %475 = vmatpush1.xpose.msra.mxu0 0.0
  %476 = vmatprep.subr.mxu0 0.0
  %477 = vmatpush1.xpose.msra.mxu0 0.0
  %478 = vmatprep.subr.mxu0 0.0
  %479 = vmatpush1.xpose.msra.mxu0 0.0
  %480 = vmatprep.subr.mxu0 0.0
  %481 = vmatpush1.xpose.msra.mxu0 0.0
  %482 = vmatprep.subr.mxu0 0.0
  %483 = vmatpush1.xpose.msra.mxu0 0.0
  %484 = vmatprep.subr.mxu0 0.0
  %485 = vmatpush1.xpose.msra.mxu0 0.0
  %486 = vmatprep.subr.mxu0 0.0
  %487 = vmatpush1.xpose.msra.mxu0 0.0
  %488 = vmatprep.subr.mxu0 0.0
  %489 = vmatpush1.xpose.msra.mxu0 0.0
  %490 = vmatprep.subr.mxu0 0.0
  %491 = vmatpush1.xpose.msra.mxu0 0.0
  %492 = vmatprep.subr.mxu0 0.0
  %493 = vmatpush1.xpose.msra.mxu0 0.0
  %494 = vmatprep.subr.mxu0 0.0
  %495 = vmatpush1.xpose.msra.mxu0 0.0
  %496 = vmatprep.subr.mxu0 0.0
  %497 = vmatpush1.xpose.msra.mxu0 0.0
  %498 = vmatprep.subr.mxu0 0.0
  %499 = vmatpush1.xpose.msra.mxu0 %v466
  %500 = vmatprep.subr.mxu0 0.0
  %501 = vmatpush2.xpose.msra.mxu0 0.0
  %502 = vmatprep.subr.mxu0 0.0
  %503 = vmatpush2.xpose.msra.mxu0 0.0
  %504 = vmatprep.subr.mxu0 0.0
  %505 = vmatpush2.xpose.msra.mxu0 0.0
  %506 = vmatprep.subr.mxu0 0.0
  %507 = vmatpush2.xpose.msra.mxu0 0.0
  %508 = vmatprep.subr.mxu0 0.0
  %509 = vmatpush2.xpose.msra.mxu0 0.0
  %510 = vmatprep.subr.mxu0 0.0
  %511 = vmatpush2.xpose.msra.mxu0 0.0
  %512 = vmatprep.subr.mxu0 0.0
  %513 = vmatpush2.xpose.msra.mxu0 0.0
  %514 = vmatprep.subr.mxu0 0.0
  %515 = vmatpush2.xpose.msra.mxu0 0.0
  %516 = vmatprep.subr.mxu0 0.0
  %517 = vmatpush2.xpose.msra.mxu0 0.0
  %518 = vmatprep.subr.mxu0 0.0
  %519 = vmatpush2.xpose.msra.mxu0 0.0
  %520 = vmatprep.subr.mxu0 0.0
  %521 = vmatpush2.xpose.msra.mxu0 0.0
  %522 = vmatprep.subr.mxu0 0.0
  %523 = vmatpush2.xpose.msra.mxu0 0.0
  %524 = vmatprep.subr.mxu0 0.0
  %525 = vmatpush2.xpose.msra.mxu0 0.0
  %526 = vmatprep.subr.mxu0 0.0
  %527 = vmatpush2.xpose.msra.mxu0 0.0
  %528 = vmatprep.subr.mxu0 0.0
  %529 = vmatpush2.xpose.msra.mxu0 0.0
  %530 = vmatprep.subr.mxu0 0.0
  %531 = vmatpush2.xpose.msra.mxu0 0.0
  %532 = vmatprep.mubr.f32.mxu0 0.0
  %533 = vmatmul.mubr.f32.gmra.mxu0 %v464
  %v534 = vpop.f32.mrf.mxu0
  %v535 = vadd.f32 %v284, %v534
  %v536 = vpop.f32.mrf.mxu0
  %537 = vdwg.mxu0
  %538 = vrot.lane.b32.xlu0 %v382, 96
  %v539 = vpop.permute.xlu0 %538
  %v540 = vsel %vm387, %v382, 0
  %v542 = vsel %vm387, %v539, 0
  %544 = vmatprep.subr.mxu0 0.0
  %545 = vmatpush1.xpose.msra.mxu0 0.0
  %546 = vmatprep.subr.mxu0 0.0
  %547 = vmatpush1.xpose.msra.mxu0 0.0
  %548 = vmatprep.subr.mxu0 0.0
  %549 = vmatpush1.xpose.msra.mxu0 0.0
  %550 = vmatprep.subr.mxu0 0.0
  %551 = vmatpush1.xpose.msra.mxu0 0.0
  %552 = vmatprep.subr.mxu0 0.0
  %553 = vmatpush1.xpose.msra.mxu0 0.0
  %554 = vmatprep.subr.mxu0 0.0
  %555 = vmatpush1.xpose.msra.mxu0 0.0
  %556 = vmatprep.subr.mxu0 0.0
  %557 = vmatpush1.xpose.msra.mxu0 0.0
  %558 = vmatprep.subr.mxu0 0.0
  %559 = vmatpush1.xpose.msra.mxu0 0.0
  %560 = vmatprep.subr.mxu0 0.0
  %561 = vmatpush1.xpose.msra.mxu0 0.0
  %562 = vmatprep.subr.mxu0 0.0
  %563 = vmatpush1.xpose.msra.mxu0 0.0
  %564 = vmatprep.subr.mxu0 0.0
  %565 = vmatpush1.xpose.msra.mxu0 0.0
  %566 = vmatprep.subr.mxu0 0.0
  %567 = vmatpush1.xpose.msra.mxu0 0.0
  %568 = vmatprep.subr.mxu0 0.0
  %569 = vmatpush1.xpose.msra.mxu0 0.0
  %570 = vmatprep.subr.mxu0 0.0
  %571 = vmatpush1.xpose.msra.mxu0 0.0
  %572 = vmatprep.subr.mxu0 0.0
  %573 = vmatpush1.xpose.msra.mxu0 0.0
  %574 = vmatprep.subr.mxu0 0.0
  %575 = vmatpush1.xpose.msra.mxu0 %v542
  %576 = vmatprep.subr.mxu0 0.0
  %577 = vmatpush2.xpose.msra.mxu0 0.0
  %578 = vmatprep.subr.mxu0 0.0
  %579 = vmatpush2.xpose.msra.mxu0 0.0
  %580 = vmatprep.subr.mxu0 0.0
  %581 = vmatpush2.xpose.msra.mxu0 0.0
  %582 = vmatprep.subr.mxu0 0.0
  %583 = vmatpush2.xpose.msra.mxu0 0.0
  %584 = vmatprep.subr.mxu0 0.0
  %585 = vmatpush2.xpose.msra.mxu0 0.0
  %586 = vmatprep.subr.mxu0 0.0
  %587 = vmatpush2.xpose.msra.mxu0 0.0
  %588 = vmatprep.subr.mxu0 0.0
  %589 = vmatpush2.xpose.msra.mxu0 0.0
  %590 = vmatprep.subr.mxu0 0.0
  %591 = vmatpush2.xpose.msra.mxu0 0.0
  %592 = vmatprep.subr.mxu0 0.0
  %593 = vmatpush2.xpose.msra.mxu0 0.0
  %594 = vmatprep.subr.mxu0 0.0
  %595 = vmatpush2.xpose.msra.mxu0 0.0
  %596 = vmatprep.subr.mxu0 0.0
  %597 = vmatpush2.xpose.msra.mxu0 0.0
  %598 = vmatprep.subr.mxu0 0.0
  %599 = vmatpush2.xpose.msra.mxu0 0.0
  %600 = vmatprep.subr.mxu0 0.0
  %601 = vmatpush2.xpose.msra.mxu0 0.0
  %602 = vmatprep.subr.mxu0 0.0
  %603 = vmatpush2.xpose.msra.mxu0 0.0
  %604 = vmatprep.subr.mxu0 0.0
  %605 = vmatpush2.xpose.msra.mxu0 0.0
  %606 = vmatprep.subr.mxu0 0.0
  %607 = vmatpush2.xpose.msra.mxu0 0.0
  %608 = vmatprep.mubr.f32.mxu0 0.0
  %609 = vmatmul.mubr.f32.gmra.mxu0 %v540
  %v610 = vpop.f32.mrf.mxu0
  %v611 = vadd.f32 %v280, %v610
  %v612 = vpop.f32.mrf.mxu0
  %613 = vdwg.mxu0
  %614 = vrot.lane.b32.xlu0 %v384, 96
  %v615 = vpop.permute.xlu0 %614
  %v616 = vsel %vm387, %v384, 0
  %v618 = vsel %vm387, %v615, 0
  %620 = vmatprep.subr.mxu0 0.0
  %621 = vmatpush1.xpose.msra.mxu0 0.0
  %622 = vmatprep.subr.mxu0 0.0
  %623 = vmatpush1.xpose.msra.mxu0 0.0
  %624 = vmatprep.subr.mxu0 0.0
  %625 = vmatpush1.xpose.msra.mxu0 0.0
  %626 = vmatprep.subr.mxu0 0.0
  %627 = vmatpush1.xpose.msra.mxu0 0.0
  %628 = vmatprep.subr.mxu0 0.0
  %629 = vmatpush1.xpose.msra.mxu0 0.0
  %630 = vmatprep.subr.mxu0 0.0
  %631 = vmatpush1.xpose.msra.mxu0 0.0
  %632 = vmatprep.subr.mxu0 0.0
  %633 = vmatpush1.xpose.msra.mxu0 0.0
  %634 = vmatprep.subr.mxu0 0.0
  %635 = vmatpush1.xpose.msra.mxu0 0.0
  %636 = vmatprep.subr.mxu0 0.0
  %637 = vmatpush1.xpose.msra.mxu0 0.0
  %638 = vmatprep.subr.mxu0 0.0
  %639 = vmatpush1.xpose.msra.mxu0 0.0
  %640 = vmatprep.subr.mxu0 0.0
  %641 = vmatpush1.xpose.msra.mxu0 0.0
  %642 = vmatprep.subr.mxu0 0.0
  %643 = vmatpush1.xpose.msra.mxu0 0.0
  %644 = vmatprep.subr.mxu0 0.0
  %645 = vmatpush1.xpose.msra.mxu0 0.0
  %646 = vmatprep.subr.mxu0 0.0
  %647 = vmatpush1.xpose.msra.mxu0 0.0
  %648 = vmatprep.subr.mxu0 0.0
  %649 = vmatpush1.xpose.msra.mxu0 0.0
  %650 = vmatprep.subr.mxu0 0.0
  %651 = vmatpush1.xpose.msra.mxu0 %v618
  %652 = vmatprep.subr.mxu0 0.0
  %653 = vmatpush2.xpose.msra.mxu0 0.0
  %654 = vmatprep.subr.mxu0 0.0
  %655 = vmatpush2.xpose.msra.mxu0 0.0
  %656 = vmatprep.subr.mxu0 0.0
  %657 = vmatpush2.xpose.msra.mxu0 0.0
  %658 = vmatprep.subr.mxu0 0.0
  %659 = vmatpush2.xpose.msra.mxu0 0.0
  %660 = vmatprep.subr.mxu0 0.0
  %661 = vmatpush2.xpose.msra.mxu0 0.0
  %662 = vmatprep.subr.mxu0 0.0
  %663 = vmatpush2.xpose.msra.mxu0 0.0
  %664 = vmatprep.subr.mxu0 0.0
  %665 = vmatpush2.xpose.msra.mxu0 0.0
  %666 = vmatprep.subr.mxu0 0.0
  %667 = vmatpush2.xpose.msra.mxu0 0.0
  %668 = vmatprep.subr.mxu0 0.0
  %669 = vmatpush2.xpose.msra.mxu0 0.0
  %670 = vmatprep.subr.mxu0 0.0
  %671 = vmatpush2.xpose.msra.mxu0 0.0
  %672 = vmatprep.subr.mxu0 0.0
  %673 = vmatpush2.xpose.msra.mxu0 0.0
  %674 = vmatprep.subr.mxu0 0.0
  %675 = vmatpush2.xpose.msra.mxu0 0.0
  %676 = vmatprep.subr.mxu0 0.0
  %677 = vmatpush2.xpose.msra.mxu0 0.0
  %678 = vmatprep.subr.mxu0 0.0
  %679 = vmatpush2.xpose.msra.mxu0 0.0
  %680 = vmatprep.subr.mxu0 0.0
  %681 = vmatpush2.xpose.msra.mxu0 0.0
  %682 = vmatprep.subr.mxu0 0.0
  %683 = vmatpush2.xpose.msra.mxu0 0.0
  %684 = vmatprep.mubr.f32.mxu0 0.0
  %685 = vmatmul.mubr.f32.gmra.mxu0 %v616
  %v686 = vpop.f32.mrf.mxu0
  %v687 = vadd.f32 %v284, %v686
  %v688 = vpop.f32.mrf.mxu0
  %689 = vdwg.mxu0
  %vm690 = vcmask 64512
  %v691 = vsel %vm690, %v459, -inf
  %692 = vmax.xlane.f32.xlu0 %v691
  %v693 = vpop.xlane.xlu0 %692
  %v694 = vsel %vm690, %v535, -inf
  %695 = vmax.xlane.f32.xlu0 %v694
  %v696 = vpop.xlane.xlu0 %695
  %v697 = vsel %vm690, %v611, -inf
  %698 = vmax.xlane.f32.xlu0 %v697
  %v699 = vpop.xlane.xlu0 %698
  %v700 = vsel %vm690, %v687, -inf
  %701 = vmax.xlane.f32.xlu0 %v700
  %v702 = vpop.xlane.xlu0 %701
  %v703 = vsub.f32 %v459, %v693
  %v704 = vsub.f32 %v535, %v696
  %v705 = vsub.f32 %v611, %v699
  %v706 = vsub.f32 %v687, %v702
  %v707 = vmul.f32 %v703, 1.442695
  %v708 = vpow.pop %v707
  %v709 = vmul.f32 %v704, 1.442695
  %v710 = vpow.pop %v709
  %v711 = vmul.f32 %v705, 1.442695
  %v712 = vpow.pop %v711
  %v713 = vmul.f32 %v706, 1.442695
  %v714 = vpow.pop %v713
  %v715 = vsel %vm690, %v708, 0.0
  %716 = vadd.xlane.f32.xlu0 %v715
  %v717 = vpop.xlane.xlu0 %716
  %v718 = vsel %vm690, %v710, 0.0
  %719 = vadd.xlane.f32.xlu0 %v718
  %v720 = vpop.xlane.xlu0 %719
  %v721 = vsel %vm690, %v712, 0.0
  %722 = vadd.xlane.f32.xlu0 %v721
  %v723 = vpop.xlane.xlu0 %722
  %v724 = vsel %vm690, %v714, 0.0
  %725 = vadd.xlane.f32.xlu0 %v724
  %v726 = vpop.xlane.xlu0 %725
  %v727 = vrcp.pop %v717
  %v728 = vrcp.pop %v720
  %v729 = vrcp.pop %v723
  %v730 = vrcp.pop %v726
  %v731 = vmul.f32 %v708, %v727
  %v732 = vmul.f32 %v710, %v728
  %v733 = vmul.f32 %v712, %v729
  %v734 = vmul.f32 %v714, %v730
  %735 = vrot.lane.b32.xlu0 %v371, 64
  %v736 = vpop.permute.xlu0 %735
  %v739 = vsel %vm690, %v731, 0
  %741 = vmatprep.subr.mxu0 0.0
  %742 = vmatpush1.msra.mxu0 0.0
  %743 = vmatprep.subr.mxu0 0.0
  %744 = vmatpush1.msra.mxu0 0.0
  %745 = vmatprep.subr.mxu0 0.0
  %746 = vmatpush1.msra.mxu0 0.0
  %747 = vmatprep.subr.mxu0 0.0
  %748 = vmatpush1.msra.mxu0 0.0
  %749 = vmatprep.subr.mxu0 0.0
  %750 = vmatpush1.msra.mxu0 0.0
  %751 = vmatprep.subr.mxu0 0.0
  %752 = vmatpush1.msra.mxu0 0.0
  %753 = vmatprep.subr.mxu0 0.0
  %754 = vmatpush1.msra.mxu0 0.0
  %755 = vmatprep.subr.mxu0 0.0
  %756 = vmatpush1.msra.mxu0 0.0
  %757 = vmatprep.subr.mxu0 0.0
  %758 = vmatpush1.msra.mxu0 0.0
  %759 = vmatprep.subr.mxu0 0.0
  %760 = vmatpush1.msra.mxu0 0.0
  %761 = vmatprep.subr.mxu0 0.0
  %762 = vmatpush1.msra.mxu0 0.0
  %763 = vmatprep.subr.mxu0 0.0
  %764 = vmatpush1.msra.mxu0 0.0
  %765 = vmatprep.subr.mxu0 0.0
  %766 = vmatpush1.msra.mxu0 0.0
  %767 = vmatprep.subr.mxu0 0.0
  %768 = vmatpush1.msra.mxu0 0.0
  %769 = vmatprep.subr.mxu0 0.0
  %770 = vmatpush1.msra.mxu0 0.0
  %771 = vmatprep.subr.mxu0 0.0
  %772 = vmatpush1.msra.mxu0 %v736
  %773 = vmatprep.subr.mxu0 0.0
  %774 = vmatpush2.msra.mxu0 0.0
  %775 = vmatprep.subr.mxu0 0.0
  %776 = vmatpush2.msra.mxu0 0.0
  %777 = vmatprep.subr.mxu0 0.0
  %778 = vmatpush2.msra.mxu0 0.0
  %779 = vmatprep.subr.mxu0 0.0
  %780 = vmatpush2.msra.mxu0 0.0
  %781 = vmatprep.subr.mxu0 0.0
  %782 = vmatpush2.msra.mxu0 0.0
  %783 = vmatprep.subr.mxu0 0.0
  %784 = vmatpush2.msra.mxu0 0.0
  %785 = vmatprep.subr.mxu0 0.0
  %786 = vmatpush2.msra.mxu0 0.0
  %787 = vmatprep.subr.mxu0 0.0
  %788 = vmatpush2.msra.mxu0 0.0
  %789 = vmatprep.subr.mxu0 0.0
  %790 = vmatpush2.msra.mxu0 0.0
  %791 = vmatprep.subr.mxu0 0.0
  %792 = vmatpush2.msra.mxu0 0.0
  %793 = vmatprep.subr.mxu0 0.0
  %794 = vmatpush2.msra.mxu0 0.0
  %795 = vmatprep.subr.mxu0 0.0
  %796 = vmatpush2.msra.mxu0 0.0
  %797 = vmatprep.subr.mxu0 0.0
  %798 = vmatpush2.msra.mxu0 0.0
  %799 = vmatprep.subr.mxu0 0.0
  %800 = vmatpush2.msra.mxu0 0.0
  %801 = vmatprep.subr.mxu0 0.0
  %802 = vmatpush2.msra.mxu0 0.0
  %803 = vmatprep.subr.mxu0 0.0
  %804 = vmatpush2.msra.mxu0 0.0
  %805 = vmatprep.mubr.f32.mxu0 0.0
  %806 = vmatmul.mubr.f32.gmra.mxu0 %v739
  %v807 = vpop.f32.mrf.mxu0
  %v808 = vadd.f32 0.0, %v807
  %v809 = vpop.f32.mrf.mxu0
  %810 = vdwg.mxu0
  %811 = vrot.lane.b32.xlu0 %v376, 64
  %v812 = vpop.permute.xlu0 %811
  %v815 = vsel %vm690, %v732, 0
  %817 = vmatprep.subr.mxu0 0.0
  %818 = vmatpush1.msra.mxu0 0.0
  %819 = vmatprep.subr.mxu0 0.0
  %820 = vmatpush1.msra.mxu0 0.0
  %821 = vmatprep.subr.mxu0 0.0
  %822 = vmatpush1.msra.mxu0 0.0
  %823 = vmatprep.subr.mxu0 0.0
  %824 = vmatpush1.msra.mxu0 0.0
  %825 = vmatprep.subr.mxu0 0.0
  %826 = vmatpush1.msra.mxu0 0.0
  %827 = vmatprep.subr.mxu0 0.0
  %828 = vmatpush1.msra.mxu0 0.0
  %829 = vmatprep.subr.mxu0 0.0
  %830 = vmatpush1.msra.mxu0 0.0
  %831 = vmatprep.subr.mxu0 0.0
  %832 = vmatpush1.msra.mxu0 0.0
  %833 = vmatprep.subr.mxu0 0.0
  %834 = vmatpush1.msra.mxu0 0.0
  %835 = vmatprep.subr.mxu0 0.0
  %836 = vmatpush1.msra.mxu0 0.0
  %837 = vmatprep.subr.mxu0 0.0
  %838 = vmatpush1.msra.mxu0 0.0
  %839 = vmatprep.subr.mxu0 0.0
  %840 = vmatpush1.msra.mxu0 0.0
  %841 = vmatprep.subr.mxu0 0.0
  %842 = vmatpush1.msra.mxu0 0.0
  %843 = vmatprep.subr.mxu0 0.0
  %844 = vmatpush1.msra.mxu0 0.0
  %845 = vmatprep.subr.mxu0 0.0
  %846 = vmatpush1.msra.mxu0 0.0
  %847 = vmatprep.subr.mxu0 0.0
  %848 = vmatpush1.msra.mxu0 %v812
  %849 = vmatprep.subr.mxu0 0.0
  %850 = vmatpush2.msra.mxu0 0.0
  %851 = vmatprep.subr.mxu0 0.0
  %852 = vmatpush2.msra.mxu0 0.0
  %853 = vmatprep.subr.mxu0 0.0
  %854 = vmatpush2.msra.mxu0 0.0
  %855 = vmatprep.subr.mxu0 0.0
  %856 = vmatpush2.msra.mxu0 0.0
  %857 = vmatprep.subr.mxu0 0.0
  %858 = vmatpush2.msra.mxu0 0.0
  %859 = vmatprep.subr.mxu0 0.0
  %860 = vmatpush2.msra.mxu0 0.0
  %861 = vmatprep.subr.mxu0 0.0
  %862 = vmatpush2.msra.mxu0 0.0
  %863 = vmatprep.subr.mxu0 0.0
  %864 = vmatpush2.msra.mxu0 0.0
  %865 = vmatprep.subr.mxu0 0.0
  %866 = vmatpush2.msra.mxu0 0.0
  %867 = vmatprep.subr.mxu0 0.0
  %868 = vmatpush2.msra.mxu0 0.0
  %869 = vmatprep.subr.mxu0 0.0
  %870 = vmatpush2.msra.mxu0 0.0
  %871 = vmatprep.subr.mxu0 0.0
  %872 = vmatpush2.msra.mxu0 0.0
  %873 = vmatprep.subr.mxu0 0.0
  %874 = vmatpush2.msra.mxu0 0.0
  %875 = vmatprep.subr.mxu0 0.0
  %876 = vmatpush2.msra.mxu0 0.0
  %877 = vmatprep.subr.mxu0 0.0
  %878 = vmatpush2.msra.mxu0 0.0
  %879 = vmatprep.subr.mxu0 0.0
  %880 = vmatpush2.msra.mxu0 0.0
  %881 = vmatprep.mubr.f32.mxu0 0.0
  %882 = vmatmul.mubr.f32.gmra.mxu0 %v815
  %v883 = vpop.f32.mrf.mxu0
  %v884 = vadd.f32 0.0, %v883
  %v885 = vpop.f32.mrf.mxu0
  %886 = vdwg.mxu0
  %887 = vrot.lane.b32.xlu0 %v382, 64
  %v888 = vpop.permute.xlu0 %887
  %v891 = vsel %vm690, %v733, 0
  %893 = vmatprep.subr.mxu0 0.0
  %894 = vmatpush1.msra.mxu0 0.0
  %895 = vmatprep.subr.mxu0 0.0
  %896 = vmatpush1.msra.mxu0 0.0
  %897 = vmatprep.subr.mxu0 0.0
  %898 = vmatpush1.msra.mxu0 0.0
  %899 = vmatprep.subr.mxu0 0.0
  %900 = vmatpush1.msra.mxu0 0.0
  %901 = vmatprep.subr.mxu0 0.0
  %902 = vmatpush1.msra.mxu0 0.0
  %903 = vmatprep.subr.mxu0 0.0
  %904 = vmatpush1.msra.mxu0 0.0
  %905 = vmatprep.subr.mxu0 0.0
  %906 = vmatpush1.msra.mxu0 0.0
  %907 = vmatprep.subr.mxu0 0.0
  %908 = vmatpush1.msra.mxu0 0.0
  %909 = vmatprep.subr.mxu0 0.0
  %910 = vmatpush1.msra.mxu0 0.0
  %911 = vmatprep.subr.mxu0 0.0
  %912 = vmatpush1.msra.mxu0 0.0
  %913 = vmatprep.subr.mxu0 0.0
  %914 = vmatpush1.msra.mxu0 0.0
  %915 = vmatprep.subr.mxu0 0.0
  %916 = vmatpush1.msra.mxu0 0.0
  %917 = vmatprep.subr.mxu0 0.0
  %918 = vmatpush1.msra.mxu0 0.0
  %919 = vmatprep.subr.mxu0 0.0
  %920 = vmatpush1.msra.mxu0 0.0
  %921 = vmatprep.subr.mxu0 0.0
  %922 = vmatpush1.msra.mxu0 0.0
  %923 = vmatprep.subr.mxu0 0.0
  %924 = vmatpush1.msra.mxu0 %v888
  %925 = vmatprep.subr.mxu0 0.0
  %926 = vmatpush2.msra.mxu0 0.0
  %927 = vmatprep.subr.mxu0 0.0
  %928 = vmatpush2.msra.mxu0 0.0
  %929 = vmatprep.subr.mxu0 0.0
  %930 = vmatpush2.msra.mxu0 0.0
  %931 = vmatprep.subr.mxu0 0.0
  %932 = vmatpush2.msra.mxu0 0.0
  %933 = vmatprep.subr.mxu0 0.0
  %934 = vmatpush2.msra.mxu0 0.0
  %935 = vmatprep.subr.mxu0 0.0
  %936 = vmatpush2.msra.mxu0 0.0
  %937 = vmatprep.subr.mxu0 0.0
  %938 = vmatpush2.msra.mxu0 0.0
  %939 = vmatprep.subr.mxu0 0.0
  %940 = vmatpush2.msra.mxu0 0.0
  %941 = vmatprep.subr.mxu0 0.0
  %942 = vmatpush2.msra.mxu0 0.0
  %943 = vmatprep.subr.mxu0 0.0
  %944 = vmatpush2.msra.mxu0 0.0
  %945 = vmatprep.subr.mxu0 0.0
  %946 = vmatpush2.msra.mxu0 0.0
  %947 = vmatprep.subr.mxu0 0.0
  %948 = vmatpush2.msra.mxu0 0.0
  %949 = vmatprep.subr.mxu0 0.0
  %950 = vmatpush2.msra.mxu0 0.0
  %951 = vmatprep.subr.mxu0 0.0
  %952 = vmatpush2.msra.mxu0 0.0
  %953 = vmatprep.subr.mxu0 0.0
  %954 = vmatpush2.msra.mxu0 0.0
  %955 = vmatprep.subr.mxu0 0.0
  %956 = vmatpush2.msra.mxu0 0.0
  %957 = vmatprep.mubr.f32.mxu0 0.0
  %958 = vmatmul.mubr.f32.gmra.mxu0 %v891
  %v959 = vpop.f32.mrf.mxu0
  %v960 = vadd.f32 0.0, %v959
  %v961 = vpop.f32.mrf.mxu0
  %962 = vdwg.mxu0
  %963 = vrot.lane.b32.xlu0 %v384, 64
  %v964 = vpop.permute.xlu0 %963
  %v967 = vsel %vm690, %v734, 0
  %969 = vmatprep.subr.mxu0 0.0
  %970 = vmatpush1.msra.mxu0 0.0
  %971 = vmatprep.subr.mxu0 0.0
  %972 = vmatpush1.msra.mxu0 0.0
  %973 = vmatprep.subr.mxu0 0.0
  %974 = vmatpush1.msra.mxu0 0.0
  %975 = vmatprep.subr.mxu0 0.0
  %976 = vmatpush1.msra.mxu0 0.0
  %977 = vmatprep.subr.mxu0 0.0
  %978 = vmatpush1.msra.mxu0 0.0
  %979 = vmatprep.subr.mxu0 0.0
  %980 = vmatpush1.msra.mxu0 0.0
  %981 = vmatprep.subr.mxu0 0.0
  %982 = vmatpush1.msra.mxu0 0.0
  %983 = vmatprep.subr.mxu0 0.0
  %984 = vmatpush1.msra.mxu0 0.0
  %985 = vmatprep.subr.mxu0 0.0
  %986 = vmatpush1.msra.mxu0 0.0
  %987 = vmatprep.subr.mxu0 0.0
  %988 = vmatpush1.msra.mxu0 0.0
  %989 = vmatprep.subr.mxu0 0.0
  %990 = vmatpush1.msra.mxu0 0.0
  %991 = vmatprep.subr.mxu0 0.0
  %992 = vmatpush1.msra.mxu0 0.0
  %993 = vmatprep.subr.mxu0 0.0
  %994 = vmatpush1.msra.mxu0 0.0
  %995 = vmatprep.subr.mxu0 0.0
  %996 = vmatpush1.msra.mxu0 0.0
  %997 = vmatprep.subr.mxu0 0.0
  %998 = vmatpush1.msra.mxu0 0.0
  %999 = vmatprep.subr.mxu0 0.0
  %1000 = vmatpush1.msra.mxu0 %v964
  %1001 = vmatprep.subr.mxu0 0.0
  %1002 = vmatpush2.msra.mxu0 0.0
  %1003 = vmatprep.subr.mxu0 0.0
  %1004 = vmatpush2.msra.mxu0 0.0
  %1005 = vmatprep.subr.mxu0 0.0
  %1006 = vmatpush2.msra.mxu0 0.0
  %1007 = vmatprep.subr.mxu0 0.0
  %1008 = vmatpush2.msra.mxu0 0.0
  %1009 = vmatprep.subr.mxu0 0.0
  %1010 = vmatpush2.msra.mxu0 0.0
  %1011 = vmatprep.subr.mxu0 0.0
  %1012 = vmatpush2.msra.mxu0 0.0
  %1013 = vmatprep.subr.mxu0 0.0
  %1014 = vmatpush2.msra.mxu0 0.0
  %1015 = vmatprep.subr.mxu0 0.0
  %1016 = vmatpush2.msra.mxu0 0.0
  %1017 = vmatprep.subr.mxu0 0.0
  %1018 = vmatpush2.msra.mxu0 0.0
  %1019 = vmatprep.subr.mxu0 0.0
  %1020 = vmatpush2.msra.mxu0 0.0
  %1021 = vmatprep.subr.mxu0 0.0
  %1022 = vmatpush2.msra.mxu0 0.0
  %1023 = vmatprep.subr.mxu0 0.0
  %1024 = vmatpush2.msra.mxu0 0.0
  %1025 = vmatprep.subr.mxu0 0.0
  %1026 = vmatpush2.msra.mxu0 0.0
  %1027 = vmatprep.subr.mxu0 0.0
  %1028 = vmatpush2.msra.mxu0 0.0
  %1029 = vmatprep.subr.mxu0 0.0
  %1030 = vmatpush2.msra.mxu0 0.0
  %1031 = vmatprep.subr.mxu0 0.0
  %1032 = vmatpush2.msra.mxu0 0.0
  %1033 = vmatprep.mubr.f32.mxu0 0.0
  %1034 = vmatmul.mubr.f32.gmra.mxu0 %v967
  %v1035 = vpop.f32.mrf.mxu0
  %v1036 = vadd.f32 0.0, %v1035
  %v1037 = vpop.f32.mrf.mxu0
  %1038 = vdwg.mxu0
  %1041 = vrot.lane.b32.xlu0 %v960, 16
  %v1042 = vpop.permute.xlu0 %1041
  %1043 = vrot.lane.b32.xlu0 %v1036, 16
  %v1044 = vpop.permute.xlu0 %1043
  %v1047 = vsel %vm387, %v808, %v1042
  %v1048 = vsel %vm387, %v884, %v1044
  %v1049 = vld [vmem:[%s9] sm:$0xff]
  %v1050 = vld [vmem:[%s9 + $0x8] sm:$0xff]
  %v1051 = vld [vmem:[%s9 + $0x10] sm:$0xff]
  %v1052 = vld [vmem:[%s9 + $0x18] sm:$0xff]
  %v1053 = vld [vmem:[%s10] sm:$0x1]
  %v1055 = vlaneseq
  %v1056 = vshrl.u32 %v1055, 7
  %v1057 = vsub.s32 0, %v1056
  %v1058 = vrot.slane %v1053, %v1057
  %v1061 = vsel %vm201, %v1047, 0
  %v1064 = vsel %vm201, %v1048, 0
  %1066 = vmatprep.subr.mxu0 0.0
  %1067 = vmatpush1.msra.mxu0 0.0
  %1068 = vmatprep.subr.mxu0 0.0
  %1069 = vmatpush1.msra.mxu0 0.0
  %1070 = vmatprep.subr.mxu0 0.0
  %1071 = vmatpush1.msra.mxu0 0.0
  %1072 = vmatprep.subr.mxu0 0.0
  %1073 = vmatpush1.msra.mxu0 0.0
  %1074 = vmatprep.subr.mxu0 0.0
  %1075 = vmatpush1.msra.mxu0 0.0
  %1076 = vmatprep.subr.mxu0 0.0
  %1077 = vmatpush1.msra.mxu0 0.0
  %1078 = vmatprep.subr.mxu0 0.0
  %1079 = vmatpush1.msra.mxu0 0.0
  %1080 = vmatprep.subr.mxu0 0.0
  %1081 = vmatpush1.msra.mxu0 0.0
  %1082 = vmatprep.subr.mxu0 0.0
  %1083 = vmatpush1.msra.mxu0 0.0
  %1084 = vmatprep.subr.mxu0 0.0
  %1085 = vmatpush1.msra.mxu0 0.0
  %1086 = vmatprep.subr.mxu0 0.0
  %1087 = vmatpush1.msra.mxu0 0.0
  %1088 = vmatprep.subr.mxu0 0.0
  %1089 = vmatpush1.msra.mxu0 0.0
  %1090 = vmatprep.subr.mxu0 0.0
  %1091 = vmatpush1.msra.mxu0 %v1052
  %1092 = vmatprep.subr.mxu0 0.0
  %1093 = vmatpush1.msra.mxu0 %v1051
  %1094 = vmatprep.subr.mxu0 0.0
  %1095 = vmatpush1.msra.mxu0 %v1050
  %1096 = vmatprep.subr.mxu0 0.0
  %1097 = vmatpush1.msra.mxu0 %v1049
  %1098 = vmatprep.subr.mxu0 0.0
  %1099 = vmatpush2.msra.mxu0 0.0
  %1100 = vmatprep.subr.mxu0 0.0
  %1101 = vmatpush2.msra.mxu0 0.0
  %1102 = vmatprep.subr.mxu0 0.0
  %1103 = vmatpush2.msra.mxu0 0.0
  %1104 = vmatprep.subr.mxu0 0.0
  %1105 = vmatpush2.msra.mxu0 0.0
  %1106 = vmatprep.subr.mxu0 0.0
  %1107 = vmatpush2.msra.mxu0 0.0
  %1108 = vmatprep.subr.mxu0 0.0
  %1109 = vmatpush2.msra.mxu0 0.0
  %1110 = vmatprep.subr.mxu0 0.0
  %1111 = vmatpush2.msra.mxu0 0.0
  %1112 = vmatprep.subr.mxu0 0.0
  %1113 = vmatpush2.msra.mxu0 0.0
  %1114 = vmatprep.subr.mxu0 0.0
  %1115 = vmatpush2.msra.mxu0 0.0
  %1116 = vmatprep.subr.mxu0 0.0
  %1117 = vmatpush2.msra.mxu0 0.0
  %1118 = vmatprep.subr.mxu0 0.0
  %1119 = vmatpush2.msra.mxu0 0.0
  %1120 = vmatprep.subr.mxu0 0.0
  %1121 = vmatpush2.msra.mxu0 0.0
  %1122 = vmatprep.subr.mxu0 0.0
  %1123 = vmatpush2.msra.mxu0 0.0
  %1124 = vmatprep.subr.mxu0 0.0
  %1125 = vmatpush2.msra.mxu0 0.0
  %1126 = vmatprep.subr.mxu0 0.0
  %1127 = vmatpush2.msra.mxu0 0.0
  %1128 = vmatprep.subr.mxu0 0.0
  %1129 = vmatpush2.msra.mxu0 0.0
  %1130 = vmatprep.mubr.f32.mxu0 0.0
  %1131 = vmatmul.mubr.f32.gmra.mxu0 %v1061
  %v1132 = vpop.f32.mrf.mxu0
  %v1133 = vadd.f32 %v1058, %v1132
  %v1134 = vpop.f32.mrf.mxu0
  %1135 = vmatprep.mubr.f32.mxu0 0.0
  %1136 = vmatmul.mubr.f32.gmra.mxu0 %v1064
  %v1137 = vpop.f32.mrf.mxu0
  %v1138 = vadd.f32 %v1058, %v1137
  %v1139 = vpop.f32.mrf.mxu0
  %1140 = vdwg.mxu0
  %v1141 = vadd.f32 %v249, %v1133
  %v1142 = vadd.f32 %v250, %v1138
  %v1143 = vld [vmem:[%s11] sm:$0x1]
  %v1144 = vld [vmem:[%s12] sm:$0x1]
  %v1145 = vsel %vm201, %v1141, 0.0
  %1146 = vadd.xlane.f32.xlu0 %v1145
  %v1147 = vpop.xlane.xlu0 %1146
  %v1148 = vsel %vm201, %v1142, 0.0
  %1149 = vadd.xlane.f32.xlu0 %v1148
  %v1150 = vpop.xlane.xlu0 %1149
  %v1151 = vmul.f32 %v1147, %v208
  %v1152 = vmul.f32 %v1150, %v208
  %v1153 = vmul.f32 %v1141, %v1141
  %v1154 = vmul.f32 %v1142, %v1142
  %v1155 = vsel %vm201, %v1153, 0.0
  %1156 = vadd.xlane.f32.xlu0 %v1155
  %v1157 = vpop.xlane.xlu0 %1156
  %v1158 = vsel %vm201, %v1154, 0.0
  %1159 = vadd.xlane.f32.xlu0 %v1158
  %v1160 = vpop.xlane.xlu0 %1159
  %v1161 = vmul.f32 %v1157, %v208
  %v1162 = vmul.f32 %v1160, %v208
  %v1163 = vmul.f32 %v1151, %v1151
  %v1164 = vmul.f32 %v1152, %v1152
  %v1165 = vsub.f32 %v1161, %v1163
  %v1166 = vsub.f32 %v1162, %v1164
  %v1167 = vmax.f32 %v1165, 0.0
  %v1168 = vmax.f32 %v1166, 0.0
  %v1169 = vsub.f32 %v1141, %v1151
  %v1170 = vsub.f32 %v1142, %v1152
  %v1171 = vadd.f32 %v1167, 1e-12
  %v1172 = vadd.f32 %v1168, 1e-12
  %v1173 = vrsqrt.pop %v1171
  %v1174 = vrsqrt.pop %v1172
  %v1175 = vmul.f32 %v1169, %v1173
  %v1176 = vmul.f32 %v1170, %v1174
  %v1178 = vlaneseq
  %v1179 = vshrl.u32 %v1178, 7
  %v1180 = vsub.s32 0, %v1179
  %v1181 = vrot.slane %v1143, %v1180
  %v1183 = vmul.f32 %v1175, %v1181
  %v1184 = vmul.f32 %v1176, %v1181
  %v1186 = vlaneseq
  %v1187 = vshrl.u32 %v1186, 7
  %v1188 = vsub.s32 0, %v1187
  %v1189 = vrot.slane %v1144, %v1188
  %v1191 = vadd.f32 %v1183, %v1189
  %v1192 = vadd.f32 %v1184, %v1189
  %v1193 = vld [vmem:[%s13] sm:$0xff]
  %v1194 = vld [vmem:[%s13 + $0x8] sm:$0xff]
  %v1195 = vld [vmem:[%s13 + $0x10] sm:$0xff]
  %v1196 = vld [vmem:[%s13 + $0x18] sm:$0xff]
  %v1197 = vld [vmem:[%s14] sm:$0x1]
  %v1199 = vlaneseq
  %v1200 = vshrl.u32 %v1199, 7
  %v1201 = vsub.s32 0, %v1200
  %v1202 = vrot.slane %v1197, %v1201
  %v1205 = vsel %vm201, %v1191, 0
  %v1208 = vsel %vm201, %v1192, 0
  %1210 = vmatprep.subr.mxu0 0.0
  %1211 = vmatpush1.msra.mxu0 0.0
  %1212 = vmatprep.subr.mxu0 0.0
  %1213 = vmatpush1.msra.mxu0 0.0
  %1214 = vmatprep.subr.mxu0 0.0
  %1215 = vmatpush1.msra.mxu0 0.0
  %1216 = vmatprep.subr.mxu0 0.0
  %1217 = vmatpush1.msra.mxu0 0.0
  %1218 = vmatprep.subr.mxu0 0.0
  %1219 = vmatpush1.msra.mxu0 0.0
  %1220 = vmatprep.subr.mxu0 0.0
  %1221 = vmatpush1.msra.mxu0 0.0
  %1222 = vmatprep.subr.mxu0 0.0
  %1223 = vmatpush1.msra.mxu0 0.0
  %1224 = vmatprep.subr.mxu0 0.0
  %1225 = vmatpush1.msra.mxu0 0.0
  %1226 = vmatprep.subr.mxu0 0.0
  %1227 = vmatpush1.msra.mxu0 0.0
  %1228 = vmatprep.subr.mxu0 0.0
  %1229 = vmatpush1.msra.mxu0 0.0
  %1230 = vmatprep.subr.mxu0 0.0
  %1231 = vmatpush1.msra.mxu0 0.0
  %1232 = vmatprep.subr.mxu0 0.0
  %1233 = vmatpush1.msra.mxu0 0.0
  %1234 = vmatprep.subr.mxu0 0.0
  %1235 = vmatpush1.msra.mxu0 %v1196
  %1236 = vmatprep.subr.mxu0 0.0
  %1237 = vmatpush1.msra.mxu0 %v1195
  %1238 = vmatprep.subr.mxu0 0.0
  %1239 = vmatpush1.msra.mxu0 %v1194
  %1240 = vmatprep.subr.mxu0 0.0
  %1241 = vmatpush1.msra.mxu0 %v1193
  %1242 = vmatprep.subr.mxu0 0.0
  %1243 = vmatpush2.msra.mxu0 0.0
  %1244 = vmatprep.subr.mxu0 0.0
  %1245 = vmatpush2.msra.mxu0 0.0
  %1246 = vmatprep.subr.mxu0 0.0
  %1247 = vmatpush2.msra.mxu0 0.0
  %1248 = vmatprep.subr.mxu0 0.0
  %1249 = vmatpush2.msra.mxu0 0.0
  %1250 = vmatprep.subr.mxu0 0.0
  %1251 = vmatpush2.msra.mxu0 0.0
  %1252 = vmatprep.subr.mxu0 0.0
  %1253 = vmatpush2.msra.mxu0 0.0
  %1254 = vmatprep.subr.mxu0 0.0
  %1255 = vmatpush2.msra.mxu0 0.0
  %1256 = vmatprep.subr.mxu0 0.0
  %1257 = vmatpush2.msra.mxu0 0.0
  %1258 = vmatprep.subr.mxu0 0.0
  %1259 = vmatpush2.msra.mxu0 0.0
  %1260 = vmatprep.subr.mxu0 0.0
  %1261 = vmatpush2.msra.mxu0 0.0
  %1262 = vmatprep.subr.mxu0 0.0
  %1263 = vmatpush2.msra.mxu0 0.0
  %1264 = vmatprep.subr.mxu0 0.0
  %1265 = vmatpush2.msra.mxu0 0.0
  %1266 = vmatprep.subr.mxu0 0.0
  %1267 = vmatpush2.msra.mxu0 0.0
  %1268 = vmatprep.subr.mxu0 0.0
  %1269 = vmatpush2.msra.mxu0 0.0
  %1270 = vmatprep.subr.mxu0 0.0
  %1271 = vmatpush2.msra.mxu0 0.0
  %1272 = vmatprep.subr.mxu0 0.0
  %1273 = vmatpush2.msra.mxu0 0.0
  %1274 = vmatprep.mubr.f32.mxu0 0.0
  %1275 = vmatmul.mubr.f32.gmra.mxu0 %v1205
  %v1276 = vpop.f32.mrf.mxu0
  %v1277 = vadd.f32 %v1202, %v1276
  %v1278 = vpop.f32.mrf.mxu0
  %1279 = vmatprep.mubr.f32.mxu0 0.0
  %1280 = vmatmul.mubr.f32.gmra.mxu0 %v1208
  %v1281 = vpop.f32.mrf.mxu0
  %v1282 = vadd.f32 %v1202, %v1281
  %v1283 = vpop.f32.mrf.mxu0
  %1284 = vdwg.mxu0
  %v1285 = vmul.f32 %v1277, %v1277
  %v1286 = vmul.f32 %v1282, %v1282
  %v1287 = vmul.f32 %v1277, %v1285
  %v1288 = vmul.f32 %v1282, %v1286
  %v1289 = vmul.f32 %v1287, 0.044715
  %v1290 = vmul.f32 %v1288, 0.044715
  %v1291 = vadd.f32 %v1277, %v1289
  %v1292 = vadd.f32 %v1282, %v1290
  %v1293 = vmul.f32 %v1291, 0.7978846
  %v1294 = vmul.f32 %v1292, 0.7978846
  %v1295 = vtanh.pop %v1293
  %v1296 = vtanh.pop %v1294
  %v1297 = vadd.f32 %v1295, 1.0
  %v1298 = vadd.f32 %v1296, 1.0
  %v1299 = vmul.f32 %v1297, 0.5
  %v1300 = vmul.f32 %v1298, 0.5
  %v1301 = vmul.f32 %v1277, %v1299
  %v1302 = vmul.f32 %v1282, %v1300
  %v1303 = vld [vmem:[%s15] sm:$0xff]
  %v1304 = vld [vmem:[%s15 + $0x8] sm:$0xff]
  %v1305 = vld [vmem:[%s15 + $0x10] sm:$0xff]
  %v1306 = vld [vmem:[%s15 + $0x18] sm:$0xff]
  %v1307 = vld [vmem:[%s15 + $0x20] sm:$0xff]
  %v1308 = vld [vmem:[%s15 + $0x28] sm:$0xff]
  %v1309 = vld [vmem:[%s15 + $0x30] sm:$0xff]
  %v1310 = vld [vmem:[%s15 + $0x38] sm:$0xff]
  %v1311 = vld [vmem:[%s16] sm:$0x1]
  %v1313 = vlaneseq
  %v1314 = vshrl.u32 %v1313, 7
  %v1315 = vsub.s32 0, %v1314
  %v1316 = vrot.slane %v1311, %v1315
  %vm1318 = vcmask 523264
  %v1320 = vsel %vm1318, %v1301, 0
  %v1323 = vsel %vm1318, %v1302, 0
  %1325 = vmatprep.subr.mxu0 0.0
  %1326 = vmatpush1.msra.mxu0 0.0
  %1327 = vmatprep.subr.mxu0 0.0
  %1328 = vmatpush1.msra.mxu0 0.0
  %1329 = vmatprep.subr.mxu0 0.0
  %1330 = vmatpush1.msra.mxu0 0.0
  %1331 = vmatprep.subr.mxu0 0.0
  %1332 = vmatpush1.msra.mxu0 0.0
  %1333 = vmatprep.subr.mxu0 0.0
  %1334 = vmatpush1.msra.mxu0 0.0
  %1335 = vmatprep.subr.mxu0 0.0
  %1336 = vmatpush1.msra.mxu0 0.0
  %1337 = vmatprep.subr.mxu0 0.0
  %1338 = vmatpush1.msra.mxu0 0.0
  %1339 = vmatprep.subr.mxu0 0.0
  %1340 = vmatpush1.msra.mxu0 0.0
  %1341 = vmatprep.subr.mxu0 0.0
  %1342 = vmatpush1.msra.mxu0 %v1310
  %1343 = vmatprep.subr.mxu0 0.0
  %1344 = vmatpush1.msra.mxu0 %v1309
  %1345 = vmatprep.subr.mxu0 0.0
  %1346 = vmatpush1.msra.mxu0 %v1308
  %1347 = vmatprep.subr.mxu0 0.0
  %1348 = vmatpush1.msra.mxu0 %v1307
  %1349 = vmatprep.subr.mxu0 0.0
  %1350 = vmatpush1.msra.mxu0 %v1306
  %1351 = vmatprep.subr.mxu0 0.0
  %1352 = vmatpush1.msra.mxu0 %v1305
  %1353 = vmatprep.subr.mxu0 0.0
  %1354 = vmatpush1.msra.mxu0 %v1304
  %1355 = vmatprep.subr.mxu0 0.0
  %1356 = vmatpush1.msra.mxu0 %v1303
  %1357 = vmatprep.subr.mxu0 0.0
  %1358 = vmatpush2.msra.mxu0 0.0
  %1359 = vmatprep.subr.mxu0 0.0
  %1360 = vmatpush2.msra.mxu0 0.0
  %1361 = vmatprep.subr.mxu0 0.0
  %1362 = vmatpush2.msra.mxu0 0.0
  %1363 = vmatprep.subr.mxu0 0.0
  %1364 = vmatpush2.msra.mxu0 0.0
  %1365 = vmatprep.subr.mxu0 0.0
  %1366 = vmatpush2.msra.mxu0 0.0
  %1367 = vmatprep.subr.mxu0 0.0
  %1368 = vmatpush2.msra.mxu0 0.0
  %1369 = vmatprep.subr.mxu0 0.0
  %1370 = vmatpush2.msra.mxu0 0.0
  %1371 = vmatprep.subr.mxu0 0.0
  %1372 = vmatpush2.msra.mxu0 0.0
  %1373 = vmatprep.subr.mxu0 0.0
  %1374 = vmatpush2.msra.mxu0 0.0
  %1375 = vmatprep.subr.mxu0 0.0
  %1376 = vmatpush2.msra.mxu0 0.0
  %1377 = vmatprep.subr.mxu0 0.0
  %1378 = vmatpush2.msra.mxu0 0.0
  %1379 = vmatprep.subr.mxu0 0.0
  %1380 = vmatpush2.msra.mxu0 0.0
  %1381 = vmatprep.subr.mxu0 0.0
  %1382 = vmatpush2.msra.mxu0 0.0
  %1383 = vmatprep.subr.mxu0 0.0
  %1384 = vmatpush2.msra.mxu0 0.0
  %1385 = vmatprep.subr.mxu0 0.0
  %1386 = vmatpush2.msra.mxu0 0.0
  %1387 = vmatprep.subr.mxu0 0.0
  %1388 = vmatpush2.msra.mxu0 0.0
  %1389 = vmatprep.mubr.f32.mxu0 0.0
  %1390 = vmatmul.mubr.f32.gmra.mxu0 %v1320
  %v1391 = vpop.f32.mrf.mxu0
  %v1392 = vadd.f32 %v1316, %v1391
  %v1393 = vpop.f32.mrf.mxu0
  %1394 = vmatprep.mubr.f32.mxu0 0.0
  %1395 = vmatmul.mubr.f32.gmra.mxu0 %v1323
  %v1396 = vpop.f32.mrf.mxu0
  %v1397 = vadd.f32 %v1316, %v1396
  %v1398 = vpop.f32.mrf.mxu0
  %1399 = vdwg.mxu0
  %v1400 = vadd.f32 %v1191, %v1392
  %v1401 = vadd.f32 %v1192, %v1397
  %v1402 = vld [vmem:[%s17] sm:$0x1]
  %v1403 = vld [vmem:[%s18] sm:$0x1]
  %v1404 = vsel %vm201, %v1400, 0.0
  %1405 = vadd.xlane.f32.xlu0 %v1404
  %v1406 = vpop.xlane.xlu0 %1405
  %v1407 = vsel %vm201, %v1401, 0.0
  %1408 = vadd.xlane.f32.xlu0 %v1407
  %v1409 = vpop.xlane.xlu0 %1408
  %v1410 = vmul.f32 %v1406, %v208
  %v1411 = vmul.f32 %v1409, %v208
  %v1412 = vmul.f32 %v1400, %v1400
  %v1413 = vmul.f32 %v1401, %v1401
  %v1414 = vsel %vm201, %v1412, 0.0
  %1415 = vadd.xlane.f32.xlu0 %v1414
  %v1416 = vpop.xlane.xlu0 %1415
  %v1417 = vsel %vm201, %v1413, 0.0
  %1418 = vadd.xlane.f32.xlu0 %v1417
  %v1419 = vpop.xlane.xlu0 %1418
  %v1420 = vmul.f32 %v1416, %v208
  %v1421 = vmul.f32 %v1419, %v208
  %v1422 = vmul.f32 %v1410, %v1410
  %v1423 = vmul.f32 %v1411, %v1411
  %v1424 = vsub.f32 %v1420, %v1422
  %v1425 = vsub.f32 %v1421, %v1423
  %v1426 = vmax.f32 %v1424, 0.0
  %v1427 = vmax.f32 %v1425, 0.0
  %v1428 = vsub.f32 %v1400, %v1410
  %v1429 = vsub.f32 %v1401, %v1411
  %v1430 = vadd.f32 %v1426, 1e-12
  %v1431 = vadd.f32 %v1427, 1e-12
  %v1432 = vrsqrt.pop %v1430
  %v1433 = vrsqrt.pop %v1431
  %v1434 = vmul.f32 %v1428, %v1432
  %v1435 = vmul.f32 %v1429, %v1433
  %v1437 = vlaneseq
  %v1438 = vshrl.u32 %v1437, 7
  %v1439 = vsub.s32 0, %v1438
  %v1440 = vrot.slane %v1402, %v1439
  %v1442 = vmul.f32 %v1434, %v1440
  %v1443 = vmul.f32 %v1435, %v1440
  %v1445 = vlaneseq
  %v1446 = vshrl.u32 %v1445, 7
  %v1447 = vsub.s32 0, %v1446
  %v1448 = vrot.slane %v1403, %v1447
  %v1450 = vadd.f32 %v1442, %v1448
  %v1451 = vadd.f32 %v1443, %v1448
  %s1452 = scalar_lea.vmem %s7, 32
  %v1453 = vld [vmem:[%s1452] sm:$0xff]
  %v1454 = vld [vmem:[%s1452 + $0x8] sm:$0xff]
  %v1455 = vld [vmem:[%s1452 + $0x10] sm:$0xff]
  %v1456 = vld [vmem:[%s1452 + $0x18] sm:$0xff]
  %s1457 = scalar_lea.vmem %s8, 1
  %v1458 = vld [vmem:[%s1457] sm:$0x1]
  %v1460 = vlaneseq
  %v1461 = vshrl.u32 %v1460, 7
  %v1462 = vsub.s32 0, %v1461
  %v1463 = vrot.slane %v1458, %v1462
  %v1466 = vsel %vm201, %v1450, 0
  %v1469 = vsel %vm201, %v1451, 0
  %1471 = vmatprep.subr.mxu0 0.0
  %1472 = vmatpush1.msra.mxu0 0.0
  %1473 = vmatprep.subr.mxu0 0.0
  %1474 = vmatpush1.msra.mxu0 0.0
  %1475 = vmatprep.subr.mxu0 0.0
  %1476 = vmatpush1.msra.mxu0 0.0
  %1477 = vmatprep.subr.mxu0 0.0
  %1478 = vmatpush1.msra.mxu0 0.0
  %1479 = vmatprep.subr.mxu0 0.0
  %1480 = vmatpush1.msra.mxu0 0.0
  %1481 = vmatprep.subr.mxu0 0.0
  %1482 = vmatpush1.msra.mxu0 0.0
  %1483 = vmatprep.subr.mxu0 0.0
  %1484 = vmatpush1.msra.mxu0 0.0
  %1485 = vmatprep.subr.mxu0 0.0
  %1486 = vmatpush1.msra.mxu0 0.0
  %1487 = vmatprep.subr.mxu0 0.0
  %1488 = vmatpush1.msra.mxu0 0.0
  %1489 = vmatprep.subr.mxu0 0.0
  %1490 = vmatpush1.msra.mxu0 0.0
  %1491 = vmatprep.subr.mxu0 0.0
  %1492 = vmatpush1.msra.mxu0 0.0
  %1493 = vmatprep.subr.mxu0 0.0
  %1494 = vmatpush1.msra.mxu0 0.0
  %1495 = vmatprep.subr.mxu0 0.0
  %1496 = vmatpush1.msra.mxu0 %v1456
  %1497 = vmatprep.subr.mxu0 0.0
  %1498 = vmatpush1.msra.mxu0 %v1455
  %1499 = vmatprep.subr.mxu0 0.0
  %1500 = vmatpush1.msra.mxu0 %v1454
  %1501 = vmatprep.subr.mxu0 0.0
  %1502 = vmatpush1.msra.mxu0 %v1453
  %1503 = vmatprep.subr.mxu0 0.0
  %1504 = vmatpush2.msra.mxu0 0.0
  %1505 = vmatprep.subr.mxu0 0.0
  %1506 = vmatpush2.msra.mxu0 0.0
  %1507 = vmatprep.subr.mxu0 0.0
  %1508 = vmatpush2.msra.mxu0 0.0
  %1509 = vmatprep.subr.mxu0 0.0
  %1510 = vmatpush2.msra.mxu0 0.0
  %1511 = vmatprep.subr.mxu0 0.0
  %1512 = vmatpush2.msra.mxu0 0.0
  %1513 = vmatprep.subr.mxu0 0.0
  %1514 = vmatpush2.msra.mxu0 0.0
  %1515 = vmatprep.subr.mxu0 0.0
  %1516 = vmatpush2.msra.mxu0 0.0
  %1517 = vmatprep.subr.mxu0 0.0
  %1518 = vmatpush2.msra.mxu0 0.0
  %1519 = vmatprep.subr.mxu0 0.0
  %1520 = vmatpush2.msra.mxu0 0.0
  %1521 = vmatprep.subr.mxu0 0.0
  %1522 = vmatpush2.msra.mxu0 0.0
  %1523 = vmatprep.subr.mxu0 0.0
  %1524 = vmatpush2.msra.mxu0 0.0
  %1525 = vmatprep.subr.mxu0 0.0
  %1526 = vmatpush2.msra.mxu0 0.0
  %1527 = vmatprep.subr.mxu0 0.0
  %1528 = vmatpush2.msra.mxu0 0.0
  %1529 = vmatprep.subr.mxu0 0.0
  %1530 = vmatpush2.msra.mxu0 0.0
  %1531 = vmatprep.subr.mxu0 0.0
  %1532 = vmatpush2.msra.mxu0 0.0
  %1533 = vmatprep.subr.mxu0 0.0
  %1534 = vmatpush2.msra.mxu0 0.0
  %1535 = vmatprep.mubr.f32.mxu0 0.0
  %1536 = vmatmul.mubr.f32.gmra.mxu0 %v1466
  %v1537 = vpop.f32.mrf.mxu0
  %v1538 = vadd.f32 %v1463, %v1537
  %v1539 = vpop.f32.mrf.mxu0
  %1540 = vmatprep.mubr.f32.mxu0 0.0
  %1541 = vmatmul.mubr.f32.gmra.mxu0 %v1469
  %v1542 = vpop.f32.mrf.mxu0
  %v1543 = vadd.f32 %v1463, %v1542
  %v1544 = vpop.f32.mrf.mxu0
  %1545 = vdwg.mxu0
  %1548 = vrot.lane.b32.xlu0 %v1538, 112
  %v1549 = vpop.permute.xlu0 %1548
  %1550 = vrot.lane.b32.xlu0 %v1543, 112
  %v1551 = vpop.permute.xlu0 %1550
  %1552 = vrot.lane.b32.xlu0 %v1538, 96
  %v1553 = vpop.permute.xlu0 %1552
  %v1554 = vsel %vm387, %v1538, 0
  %v1556 = vsel %vm387, %v1553, 0
  %1558 = vmatprep.subr.mxu0 0.0
  %1559 = vmatpush1.xpose.msra.mxu0 0.0
  %1560 = vmatprep.subr.mxu0 0.0
  %1561 = vmatpush1.xpose.msra.mxu0 0.0
  %1562 = vmatprep.subr.mxu0 0.0
  %1563 = vmatpush1.xpose.msra.mxu0 0.0
  %1564 = vmatprep.subr.mxu0 0.0
  %1565 = vmatpush1.xpose.msra.mxu0 0.0
  %1566 = vmatprep.subr.mxu0 0.0
  %1567 = vmatpush1.xpose.msra.mxu0 0.0
  %1568 = vmatprep.subr.mxu0 0.0
  %1569 = vmatpush1.xpose.msra.mxu0 0.0
  %1570 = vmatprep.subr.mxu0 0.0
  %1571 = vmatpush1.xpose.msra.mxu0 0.0
  %1572 = vmatprep.subr.mxu0 0.0
  %1573 = vmatpush1.xpose.msra.mxu0 0.0
  %1574 = vmatprep.subr.mxu0 0.0
  %1575 = vmatpush1.xpose.msra.mxu0 0.0
  %1576 = vmatprep.subr.mxu0 0.0
  %1577 = vmatpush1.xpose.msra.mxu0 0.0
  %1578 = vmatprep.subr.mxu0 0.0
  %1579 = vmatpush1.xpose.msra.mxu0 0.0
  %1580 = vmatprep.subr.mxu0 0.0
  %1581 = vmatpush1.xpose.msra.mxu0 0.0
  %1582 = vmatprep.subr.mxu0 0.0
  %1583 = vmatpush1.xpose.msra.mxu0 0.0
  %1584 = vmatprep.subr.mxu0 0.0
  %1585 = vmatpush1.xpose.msra.mxu0 0.0
  %1586 = vmatprep.subr.mxu0 0.0
  %1587 = vmatpush1.xpose.msra.mxu0 0.0
  %1588 = vmatprep.subr.mxu0 0.0
  %1589 = vmatpush1.xpose.msra.mxu0 %v1556
  %1590 = vmatprep.subr.mxu0 0.0
  %1591 = vmatpush2.xpose.msra.mxu0 0.0
  %1592 = vmatprep.subr.mxu0 0.0
  %1593 = vmatpush2.xpose.msra.mxu0 0.0
  %1594 = vmatprep.subr.mxu0 0.0
  %1595 = vmatpush2.xpose.msra.mxu0 0.0
  %1596 = vmatprep.subr.mxu0 0.0
  %1597 = vmatpush2.xpose.msra.mxu0 0.0
  %1598 = vmatprep.subr.mxu0 0.0
  %1599 = vmatpush2.xpose.msra.mxu0 0.0
  %1600 = vmatprep.subr.mxu0 0.0
  %1601 = vmatpush2.xpose.msra.mxu0 0.0
  %1602 = vmatprep.subr.mxu0 0.0
  %1603 = vmatpush2.xpose.msra.mxu0 0.0
  %1604 = vmatprep.subr.mxu0 0.0
  %1605 = vmatpush2.xpose.msra.mxu0 0.0
  %1606 = vmatprep.subr.mxu0 0.0
  %1607 = vmatpush2.xpose.msra.mxu0 0.0
  %1608 = vmatprep.subr.mxu0 0.0
  %1609 = vmatpush2.xpose.msra.mxu0 0.0
  %1610 = vmatprep.subr.mxu0 0.0
  %1611 = vmatpush2.xpose.msra.mxu0 0.0
  %1612 = vmatprep.subr.mxu0 0.0
  %1613 = vmatpush2.xpose.msra.mxu0 0.0
  %1614 = vmatprep.subr.mxu0 0.0
  %1615 = vmatpush2.xpose.msra.mxu0 0.0
  %1616 = vmatprep.subr.mxu0 0.0
  %1617 = vmatpush2.xpose.msra.mxu0 0.0
  %1618 = vmatprep.subr.mxu0 0.0
  %1619 = vmatpush2.xpose.msra.mxu0 0.0
  %1620 = vmatprep.subr.mxu0 0.0
  %1621 = vmatpush2.xpose.msra.mxu0 0.0
  %1622 = vmatprep.mubr.f32.mxu0 0.0
  %1623 = vmatmul.mubr.f32.gmra.mxu0 %v1554
  %v1624 = vpop.f32.mrf.mxu0
  %v1625 = vadd.f32 %v280, %v1624
  %v1626 = vpop.f32.mrf.mxu0
  %1627 = vdwg.mxu0
  %1628 = vrot.lane.b32.xlu0 %v1543, 96
  %v1629 = vpop.permute.xlu0 %1628
  %v1630 = vsel %vm387, %v1543, 0
  %v1632 = vsel %vm387, %v1629, 0
  %1634 = vmatprep.subr.mxu0 0.0
  %1635 = vmatpush1.xpose.msra.mxu0 0.0
  %1636 = vmatprep.subr.mxu0 0.0
  %1637 = vmatpush1.xpose.msra.mxu0 0.0
  %1638 = vmatprep.subr.mxu0 0.0
  %1639 = vmatpush1.xpose.msra.mxu0 0.0
  %1640 = vmatprep.subr.mxu0 0.0
  %1641 = vmatpush1.xpose.msra.mxu0 0.0
  %1642 = vmatprep.subr.mxu0 0.0
  %1643 = vmatpush1.xpose.msra.mxu0 0.0
  %1644 = vmatprep.subr.mxu0 0.0
  %1645 = vmatpush1.xpose.msra.mxu0 0.0
  %1646 = vmatprep.subr.mxu0 0.0
  %1647 = vmatpush1.xpose.msra.mxu0 0.0
  %1648 = vmatprep.subr.mxu0 0.0
  %1649 = vmatpush1.xpose.msra.mxu0 0.0
  %1650 = vmatprep.subr.mxu0 0.0
  %1651 = vmatpush1.xpose.msra.mxu0 0.0
  %1652 = vmatprep.subr.mxu0 0.0
  %1653 = vmatpush1.xpose.msra.mxu0 0.0
  %1654 = vmatprep.subr.mxu0 0.0
  %1655 = vmatpush1.xpose.msra.mxu0 0.0
  %1656 = vmatprep.subr.mxu0 0.0
  %1657 = vmatpush1.xpose.msra.mxu0 0.0
  %1658 = vmatprep.subr.mxu0 0.0
  %1659 = vmatpush1.xpose.msra.mxu0 0.0
  %1660 = vmatprep.subr.mxu0 0.0
  %1661 = vmatpush1.xpose.msra.mxu0 0.0
  %1662 = vmatprep.subr.mxu0 0.0
  %1663 = vmatpush1.xpose.msra.mxu0 0.0
  %1664 = vmatprep.subr.mxu0 0.0
  %1665 = vmatpush1.xpose.msra.mxu0 %v1632
  %1666 = vmatprep.subr.mxu0 0.0
  %1667 = vmatpush2.xpose.msra.mxu0 0.0
  %1668 = vmatprep.subr.mxu0 0.0
  %1669 = vmatpush2.xpose.msra.mxu0 0.0
  %1670 = vmatprep.subr.mxu0 0.0
  %1671 = vmatpush2.xpose.msra.mxu0 0.0
  %1672 = vmatprep.subr.mxu0 0.0
  %1673 = vmatpush2.xpose.msra.mxu0 0.0
  %1674 = vmatprep.subr.mxu0 0.0
  %1675 = vmatpush2.xpose.msra.mxu0 0.0
  %1676 = vmatprep.subr.mxu0 0.0
  %1677 = vmatpush2.xpose.msra.mxu0 0.0
  %1678 = vmatprep.subr.mxu0 0.0
  %1679 = vmatpush2.xpose.msra.mxu0 0.0
  %1680 = vmatprep.subr.mxu0 0.0
  %1681 = vmatpush2.xpose.msra.mxu0 0.0
  %1682 = vmatprep.subr.mxu0 0.0
  %1683 = vmatpush2.xpose.msra.mxu0 0.0
  %1684 = vmatprep.subr.mxu0 0.0
  %1685 = vmatpush2.xpose.msra.mxu0 0.0
  %1686 = vmatprep.subr.mxu0 0.0
  %1687 = vmatpush2.xpose.msra.mxu0 0.0
  %1688 = vmatprep.subr.mxu0 0.0
  %1689 = vmatpush2.xpose.msra.mxu0 0.0
  %1690 = vmatprep.subr.mxu0 0.0
  %1691 = vmatpush2.xpose.msra.mxu0 0.0
  %1692 = vmatprep.subr.mxu0 0.0
  %1693 = vmatpush2.xpose.msra.mxu0 0.0
  %1694 = vmatprep.subr.mxu0 0.0
  %1695 = vmatpush2.xpose.msra.mxu0 0.0
  %1696 = vmatprep.subr.mxu0 0.0
  %1697 = vmatpush2.xpose.msra.mxu0 0.0
  %1698 = vmatprep.mubr.f32.mxu0 0.0
  %1699 = vmatmul.mubr.f32.gmra.mxu0 %v1630
  %v1700 = vpop.f32.mrf.mxu0
  %v1701 = vadd.f32 %v284, %v1700
  %v1702 = vpop.f32.mrf.mxu0
  %1703 = vdwg.mxu0
  %1704 = vrot.lane.b32.xlu0 %v1549, 96
  %v1705 = vpop.permute.xlu0 %1704
  %v1706 = vsel %vm387, %v1549, 0
  %v1708 = vsel %vm387, %v1705, 0
  %1710 = vmatprep.subr.mxu0 0.0
  %1711 = vmatpush1.xpose.msra.mxu0 0.0
  %1712 = vmatprep.subr.mxu0 0.0
  %1713 = vmatpush1.xpose.msra.mxu0 0.0
  %1714 = vmatprep.subr.mxu0 0.0
  %1715 = vmatpush1.xpose.msra.mxu0 0.0
  %1716 = vmatprep.subr.mxu0 0.0
  %1717 = vmatpush1.xpose.msra.mxu0 0.0
  %1718 = vmatprep.subr.mxu0 0.0
  %1719 = vmatpush1.xpose.msra.mxu0 0.0
  %1720 = vmatprep.subr.mxu0 0.0
  %1721 = vmatpush1.xpose.msra.mxu0 0.0
  %1722 = vmatprep.subr.mxu0 0.0
  %1723 = vmatpush1.xpose.msra.mxu0 0.0
  %1724 = vmatprep.subr.mxu0 0.0
  %1725 = vmatpush1.xpose.msra.mxu0 0.0
  %1726 = vmatprep.subr.mxu0 0.0
  %1727 = vmatpush1.xpose.msra.mxu0 0.0
  %1728 = vmatprep.subr.mxu0 0.0
  %1729 = vmatpush1.xpose.msra.mxu0 0.0
  %1730 = vmatprep.subr.mxu0 0.0
  %1731 = vmatpush1.xpose.msra.mxu0 0.0
  %1732 = vmatprep.subr.mxu0 0.0
  %1733 = vmatpush1.xpose.msra.mxu0 0.0
  %1734 = vmatprep.subr.mxu0 0.0
  %1735 = vmatpush1.xpose.msra.mxu0 0.0
  %1736 = vmatprep.subr.mxu0 0.0
  %1737 = vmatpush1.xpose.msra.mxu0 0.0
  %1738 = vmatprep.subr.mxu0 0.0
  %1739 = vmatpush1.xpose.msra.mxu0 0.0
  %1740 = vmatprep.subr.mxu0 0.0
  %1741 = vmatpush1.xpose.msra.mxu0 %v1708
  %1742 = vmatprep.subr.mxu0 0.0
  %1743 = vmatpush2.xpose.msra.mxu0 0.0
  %1744 = vmatprep.subr.mxu0 0.0
  %1745 = vmatpush2.xpose.msra.mxu0 0.0
  %1746 = vmatprep.subr.mxu0 0.0
  %1747 = vmatpush2.xpose.msra.mxu0 0.0
  %1748 = vmatprep.subr.mxu0 0.0
  %1749 = vmatpush2.xpose.msra.mxu0 0.0
  %1750 = vmatprep.subr.mxu0 0.0
  %1751 = vmatpush2.xpose.msra.mxu0 0.0
  %1752 = vmatprep.subr.mxu0 0.0
  %1753 = vmatpush2.xpose.msra.mxu0 0.0
  %1754 = vmatprep.subr.mxu0 0.0
  %1755 = vmatpush2.xpose.msra.mxu0 0.0
  %1756 = vmatprep.subr.mxu0 0.0
  %1757 = vmatpush2.xpose.msra.mxu0 0.0
  %1758 = vmatprep.subr.mxu0 0.0
  %1759 = vmatpush2.xpose.msra.mxu0 0.0
  %1760 = vmatprep.subr.mxu0 0.0
  %1761 = vmatpush2.xpose.msra.mxu0 0.0
  %1762 = vmatprep.subr.mxu0 0.0
  %1763 = vmatpush2.xpose.msra.mxu0 0.0
  %1764 = vmatprep.subr.mxu0 0.0
  %1765 = vmatpush2.xpose.msra.mxu0 0.0
  %1766 = vmatprep.subr.mxu0 0.0
  %1767 = vmatpush2.xpose.msra.mxu0 0.0
  %1768 = vmatprep.subr.mxu0 0.0
  %1769 = vmatpush2.xpose.msra.mxu0 0.0
  %1770 = vmatprep.subr.mxu0 0.0
  %1771 = vmatpush2.xpose.msra.mxu0 0.0
  %1772 = vmatprep.subr.mxu0 0.0
  %1773 = vmatpush2.xpose.msra.mxu0 0.0
  %1774 = vmatprep.mubr.f32.mxu0 0.0
  %1775 = vmatmul.mubr.f32.gmra.mxu0 %v1706
  %v1776 = vpop.f32.mrf.mxu0
  %v1777 = vadd.f32 %v280, %v1776
  %v1778 = vpop.f32.mrf.mxu0
  %1779 = vdwg.mxu0
  %1780 = vrot.lane.b32.xlu0 %v1551, 96
  %v1781 = vpop.permute.xlu0 %1780
  %v1782 = vsel %vm387, %v1551, 0
  %v1784 = vsel %vm387, %v1781, 0
  %1786 = vmatprep.subr.mxu0 0.0
  %1787 = vmatpush1.xpose.msra.mxu0 0.0
  %1788 = vmatprep.subr.mxu0 0.0
  %1789 = vmatpush1.xpose.msra.mxu0 0.0
  %1790 = vmatprep.subr.mxu0 0.0
  %1791 = vmatpush1.xpose.msra.mxu0 0.0
  %1792 = vmatprep.subr.mxu0 0.0
  %1793 = vmatpush1.xpose.msra.mxu0 0.0
  %1794 = vmatprep.subr.mxu0 0.0
  %1795 = vmatpush1.xpose.msra.mxu0 0.0
  %1796 = vmatprep.subr.mxu0 0.0
  %1797 = vmatpush1.xpose.msra.mxu0 0.0
  %1798 = vmatprep.subr.mxu0 0.0
  %1799 = vmatpush1.xpose.msra.mxu0 0.0
  %1800 = vmatprep.subr.mxu0 0.0
  %1801 = vmatpush1.xpose.msra.mxu0 0.0
  %1802 = vmatprep.subr.mxu0 0.0
  %1803 = vmatpush1.xpose.msra.mxu0 0.0
  %1804 = vmatprep.subr.mxu0 0.0
  %1805 = vmatpush1.xpose.msra.mxu0 0.0
  %1806 = vmatprep.subr.mxu0 0.0
  %1807 = vmatpush1.xpose.msra.mxu0 0.0
  %1808 = vmatprep.subr.mxu0 0.0
  %1809 = vmatpush1.xpose.msra.mxu0 0.0
  %1810 = vmatprep.subr.mxu0 0.0
  %1811 = vmatpush1.xpose.msra.mxu0 0.0
  %1812 = vmatprep.subr.mxu0 0.0
  %1813 = vmatpush1.xpose.msra.mxu0 0.0
  %1814 = vmatprep.subr.mxu0 0.0
  %1815 = vmatpush1.xpose.msra.mxu0 0.0
  %1816 = vmatprep.subr.mxu0 0.0
  %1817 = vmatpush1.xpose.msra.mxu0 %v1784
  %1818 = vmatprep.subr.mxu0 0.0
  %1819 = vmatpush2.xpose.msra.mxu0 0.0
  %1820 = vmatprep.subr.mxu0 0.0
  %1821 = vmatpush2.xpose.msra.mxu0 0.0
  %1822 = vmatprep.subr.mxu0 0.0
  %1823 = vmatpush2.xpose.msra.mxu0 0.0
  %1824 = vmatprep.subr.mxu0 0.0
  %1825 = vmatpush2.xpose.msra.mxu0 0.0
  %1826 = vmatprep.subr.mxu0 0.0
  %1827 = vmatpush2.xpose.msra.mxu0 0.0
  %1828 = vmatprep.subr.mxu0 0.0
  %1829 = vmatpush2.xpose.msra.mxu0 0.0
  %1830 = vmatprep.subr.mxu0 0.0
  %1831 = vmatpush2.xpose.msra.mxu0 0.0
  %1832 = vmatprep.subr.mxu0 0.0
  %1833 = vmatpush2.xpose.msra.mxu0 0.0
  %1834 = vmatprep.subr.mxu0 0.0
  %1835 = vmatpush2.xpose.msra.mxu0 0.0
  %1836 = vmatprep.subr.mxu0 0.0
  %1837 = vmatpush2.xpose.msra.mxu0 0.0
  %1838 = vmatprep.subr.mxu0 0.0
  %1839 = vmatpush2.xpose.msra.mxu0 0.0
  %1840 = vmatprep.subr.mxu0 0.0
  %1841 = vmatpush2.xpose.msra.mxu0 0.0
  %1842 = vmatprep.subr.mxu0 0.0
  %1843 = vmatpush2.xpose.msra.mxu0 0.0
  %1844 = vmatprep.subr.mxu0 0.0
  %1845 = vmatpush2.xpose.msra.mxu0 0.0
  %1846 = vmatprep.subr.mxu0 0.0
  %1847 = vmatpush2.xpose.msra.mxu0 0.0
  %1848 = vmatprep.subr.mxu0 0.0
  %1849 = vmatpush2.xpose.msra.mxu0 0.0
  %1850 = vmatprep.mubr.f32.mxu0 0.0
  %1851 = vmatmul.mubr.f32.gmra.mxu0 %v1782
  %v1852 = vpop.f32.mrf.mxu0
  %v1853 = vadd.f32 %v284, %v1852
  %v1854 = vpop.f32.mrf.mxu0
  %1855 = vdwg.mxu0
  %v1856 = vsel %vm690, %v1625, -inf
  %1857 = vmax.xlane.f32.xlu0 %v1856
  %v1858 = vpop.xlane.xlu0 %1857
  %v1859 = vsel %vm690, %v1701, -inf
  %1860 = vmax.xlane.f32.xlu0 %v1859
  %v1861 = vpop.xlane.xlu0 %1860
  %v1862 = vsel %vm690, %v1777, -inf
  %1863 = vmax.xlane.f32.xlu0 %v1862
  %v1864 = vpop.xlane.xlu0 %1863
  %v1865 = vsel %vm690, %v1853, -inf
  %1866 = vmax.xlane.f32.xlu0 %v1865
  %v1867 = vpop.xlane.xlu0 %1866
  %v1868 = vsub.f32 %v1625, %v1858
  %v1869 = vsub.f32 %v1701, %v1861
  %v1870 = vsub.f32 %v1777, %v1864
  %v1871 = vsub.f32 %v1853, %v1867
  %v1872 = vmul.f32 %v1868, 1.442695
  %v1873 = vpow.pop %v1872
  %v1874 = vmul.f32 %v1869, 1.442695
  %v1875 = vpow.pop %v1874
  %v1876 = vmul.f32 %v1870, 1.442695
  %v1877 = vpow.pop %v1876
  %v1878 = vmul.f32 %v1871, 1.442695
  %v1879 = vpow.pop %v1878
  %v1880 = vsel %vm690, %v1873, 0.0
  %1881 = vadd.xlane.f32.xlu0 %v1880
  %v1882 = vpop.xlane.xlu0 %1881
  %v1883 = vsel %vm690, %v1875, 0.0
  %1884 = vadd.xlane.f32.xlu0 %v1883
  %v1885 = vpop.xlane.xlu0 %1884
  %v1886 = vsel %vm690, %v1877, 0.0
  %1887 = vadd.xlane.f32.xlu0 %v1886
  %v1888 = vpop.xlane.xlu0 %1887
  %v1889 = vsel %vm690, %v1879, 0.0
  %1890 = vadd.xlane.f32.xlu0 %v1889
  %v1891 = vpop.xlane.xlu0 %1890
  %v1892 = vrcp.pop %v1882
  %v1893 = vrcp.pop %v1885
  %v1894 = vrcp.pop %v1888
  %v1895 = vrcp.pop %v1891
  %v1896 = vmul.f32 %v1873, %v1892
  %v1897 = vmul.f32 %v1875, %v1893
  %v1898 = vmul.f32 %v1877, %v1894
  %v1899 = vmul.f32 %v1879, %v1895
  %1900 = vrot.lane.b32.xlu0 %v1538, 64
  %v1901 = vpop.permute.xlu0 %1900
  %v1904 = vsel %vm690, %v1896, 0
  %1906 = vmatprep.subr.mxu0 0.0
  %1907 = vmatpush1.msra.mxu0 0.0
  %1908 = vmatprep.subr.mxu0 0.0
  %1909 = vmatpush1.msra.mxu0 0.0
  %1910 = vmatprep.subr.mxu0 0.0
  %1911 = vmatpush1.msra.mxu0 0.0
  %1912 = vmatprep.subr.mxu0 0.0
  %1913 = vmatpush1.msra.mxu0 0.0
  %1914 = vmatprep.subr.mxu0 0.0
  %1915 = vmatpush1.msra.mxu0 0.0
  %1916 = vmatprep.subr.mxu0 0.0
  %1917 = vmatpush1.msra.mxu0 0.0
  %1918 = vmatprep.subr.mxu0 0.0
  %1919 = vmatpush1.msra.mxu0 0.0
  %1920 = vmatprep.subr.mxu0 0.0
  %1921 = vmatpush1.msra.mxu0 0.0
  %1922 = vmatprep.subr.mxu0 0.0
  %1923 = vmatpush1.msra.mxu0 0.0
  %1924 = vmatprep.subr.mxu0 0.0
  %1925 = vmatpush1.msra.mxu0 0.0
  %1926 = vmatprep.subr.mxu0 0.0
  %1927 = vmatpush1.msra.mxu0 0.0
  %1928 = vmatprep.subr.mxu0 0.0
  %1929 = vmatpush1.msra.mxu0 0.0
  %1930 = vmatprep.subr.mxu0 0.0
  %1931 = vmatpush1.msra.mxu0 0.0
  %1932 = vmatprep.subr.mxu0 0.0
  %1933 = vmatpush1.msra.mxu0 0.0
  %1934 = vmatprep.subr.mxu0 0.0
  %1935 = vmatpush1.msra.mxu0 0.0
  %1936 = vmatprep.subr.mxu0 0.0
  %1937 = vmatpush1.msra.mxu0 %v1901
  %1938 = vmatprep.subr.mxu0 0.0
  %1939 = vmatpush2.msra.mxu0 0.0
  %1940 = vmatprep.subr.mxu0 0.0
  %1941 = vmatpush2.msra.mxu0 0.0
  %1942 = vmatprep.subr.mxu0 0.0
  %1943 = vmatpush2.msra.mxu0 0.0
  %1944 = vmatprep.subr.mxu0 0.0
  %1945 = vmatpush2.msra.mxu0 0.0
  %1946 = vmatprep.subr.mxu0 0.0
  %1947 = vmatpush2.msra.mxu0 0.0
  %1948 = vmatprep.subr.mxu0 0.0
  %1949 = vmatpush2.msra.mxu0 0.0
  %1950 = vmatprep.subr.mxu0 0.0
  %1951 = vmatpush2.msra.mxu0 0.0
  %1952 = vmatprep.subr.mxu0 0.0
  %1953 = vmatpush2.msra.mxu0 0.0
  %1954 = vmatprep.subr.mxu0 0.0
  %1955 = vmatpush2.msra.mxu0 0.0
  %1956 = vmatprep.subr.mxu0 0.0
  %1957 = vmatpush2.msra.mxu0 0.0
  %1958 = vmatprep.subr.mxu0 0.0
  %1959 = vmatpush2.msra.mxu0 0.0
  %1960 = vmatprep.subr.mxu0 0.0
  %1961 = vmatpush2.msra.mxu0 0.0
  %1962 = vmatprep.subr.mxu0 0.0
  %1963 = vmatpush2.msra.mxu0 0.0
  %1964 = vmatprep.subr.mxu0 0.0
  %1965 = vmatpush2.msra.mxu0 0.0
  %1966 = vmatprep.subr.mxu0 0.0
  %1967 = vmatpush2.msra.mxu0 0.0
  %1968 = vmatprep.subr.mxu0 0.0
  %1969 = vmatpush2.msra.mxu0 0.0
  %1970 = vmatprep.mubr.f32.mxu0 0.0
  %1971 = vmatmul.mubr.f32.gmra.mxu0 %v1904
  %v1972 = vpop.f32.mrf.mxu0
  %v1973 = vadd.f32 0.0, %v1972
  %v1974 = vpop.f32.mrf.mxu0
  %1975 = vdwg.mxu0
  %1976 = vrot.lane.b32.xlu0 %v1543, 64
  %v1977 = vpop.permute.xlu0 %1976
  %v1980 = vsel %vm690, %v1897, 0
  %1982 = vmatprep.subr.mxu0 0.0
  %1983 = vmatpush1.msra.mxu0 0.0
  %1984 = vmatprep.subr.mxu0 0.0
  %1985 = vmatpush1.msra.mxu0 0.0
  %1986 = vmatprep.subr.mxu0 0.0
  %1987 = vmatpush1.msra.mxu0 0.0
  %1988 = vmatprep.subr.mxu0 0.0
  %1989 = vmatpush1.msra.mxu0 0.0
  %1990 = vmatprep.subr.mxu0 0.0
  %1991 = vmatpush1.msra.mxu0 0.0
  %1992 = vmatprep.subr.mxu0 0.0
  %1993 = vmatpush1.msra.mxu0 0.0
  %1994 = vmatprep.subr.mxu0 0.0
  %1995 = vmatpush1.msra.mxu0 0.0
  %1996 = vmatprep.subr.mxu0 0.0
  %1997 = vmatpush1.msra.mxu0 0.0
  %1998 = vmatprep.subr.mxu0 0.0
  %1999 = vmatpush1.msra.mxu0 0.0
  %2000 = vmatprep.subr.mxu0 0.0
  %2001 = vmatpush1.msra.mxu0 0.0
  %2002 = vmatprep.subr.mxu0 0.0
  %2003 = vmatpush1.msra.mxu0 0.0
  %2004 = vmatprep.subr.mxu0 0.0
  %2005 = vmatpush1.msra.mxu0 0.0
  %2006 = vmatprep.subr.mxu0 0.0
  %2007 = vmatpush1.msra.mxu0 0.0
  %2008 = vmatprep.subr.mxu0 0.0
  %2009 = vmatpush1.msra.mxu0 0.0
  %2010 = vmatprep.subr.mxu0 0.0
  %2011 = vmatpush1.msra.mxu0 0.0
  %2012 = vmatprep.subr.mxu0 0.0
  %2013 = vmatpush1.msra.mxu0 %v1977
  %2014 = vmatprep.subr.mxu0 0.0
  %2015 = vmatpush2.msra.mxu0 0.0
  %2016 = vmatprep.subr.mxu0 0.0
  %2017 = vmatpush2.msra.mxu0 0.0
  %2018 = vmatprep.subr.mxu0 0.0
  %2019 = vmatpush2.msra.mxu0 0.0
  %2020 = vmatprep.subr.mxu0 0.0
  %2021 = vmatpush2.msra.mxu0 0.0
  %2022 = vmatprep.subr.mxu0 0.0
  %2023 = vmatpush2.msra.mxu0 0.0
  %2024 = vmatprep.subr.mxu0 0.0
  %2025 = vmatpush2.msra.mxu0 0.0
  %2026 = vmatprep.subr.mxu0 0.0
  %2027 = vmatpush2.msra.mxu0 0.0
  %2028 = vmatprep.subr.mxu0 0.0
  %2029 = vmatpush2.msra.mxu0 0.0
  %2030 = vmatprep.subr.mxu0 0.0
  %2031 = vmatpush2.msra.mxu0 0.0
  %2032 = vmatprep.subr.mxu0 0.0
  %2033 = vmatpush2.msra.mxu0 0.0
  %2034 = vmatprep.subr.mxu0 0.0
  %2035 = vmatpush2.msra.mxu0 0.0
  %2036 = vmatprep.subr.mxu0 0.0
  %2037 = vmatpush2.msra.mxu0 0.0
  %2038 = vmatprep.subr.mxu0 0.0
  %2039 = vmatpush2.msra.mxu0 0.0
  %2040 = vmatprep.subr.mxu0 0.0
  %2041 = vmatpush2.msra.mxu0 0.0
  %2042 = vmatprep.subr.mxu0 0.0
  %2043 = vmatpush2.msra.mxu0 0.0
  %2044 = vmatprep.subr.mxu0 0.0
  %2045 = vmatpush2.msra.mxu0 0.0
  %2046 = vmatprep.mubr.f32.mxu0 0.0
  %2047 = vmatmul.mubr.f32.gmra.mxu0 %v1980
  %v2048 = vpop.f32.mrf.mxu0
  %v2049 = vadd.f32 0.0, %v2048
  %v2050 = vpop.f32.mrf.mxu0
  %2051 = vdwg.mxu0
  %2052 = vrot.lane.b32.xlu0 %v1549, 64
  %v2053 = vpop.permute.xlu0 %2052
  %v2056 = vsel %vm690, %v1898, 0
  %2058 = vmatprep.subr.mxu0 0.0
  %2059 = vmatpush1.msra.mxu0 0.0
  %2060 = vmatprep.subr.mxu0 0.0
  %2061 = vmatpush1.msra.mxu0 0.0
  %2062 = vmatprep.subr.mxu0 0.0
  %2063 = vmatpush1.msra.mxu0 0.0
  %2064 = vmatprep.subr.mxu0 0.0
  %2065 = vmatpush1.msra.mxu0 0.0
  %2066 = vmatprep.subr.mxu0 0.0
  %2067 = vmatpush1.msra.mxu0 0.0
  %2068 = vmatprep.subr.mxu0 0.0
  %2069 = vmatpush1.msra.mxu0 0.0
  %2070 = vmatprep.subr.mxu0 0.0
  %2071 = vmatpush1.msra.mxu0 0.0
  %2072 = vmatprep.subr.mxu0 0.0
  %2073 = vmatpush1.msra.mxu0 0.0
  %2074 = vmatprep.subr.mxu0 0.0
  %2075 = vmatpush1.msra.mxu0 0.0
  %2076 = vmatprep.subr.mxu0 0.0
  %2077 = vmatpush1.msra.mxu0 0.0
  %2078 = vmatprep.subr.mxu0 0.0
  %2079 = vmatpush1.msra.mxu0 0.0
  %2080 = vmatprep.subr.mxu0 0.0
  %2081 = vmatpush1.msra.mxu0 0.0
  %2082 = vmatprep.subr.mxu0 0.0
  %2083 = vmatpush1.msra.mxu0 0.0
  %2084 = vmatprep.subr.mxu0 0.0
  %2085 = vmatpush1.msra.mxu0 0.0
  %2086 = vmatprep.subr.mxu0 0.0
  %2087 = vmatpush1.msra.mxu0 0.0
  %2088 = vmatprep.subr.mxu0 0.0
  %2089 = vmatpush1.msra.mxu0 %v2053
  %2090 = vmatprep.subr.mxu0 0.0
  %2091 = vmatpush2.msra.mxu0 0.0
  %2092 = vmatprep.subr.mxu0 0.0
  %2093 = vmatpush2.msra.mxu0 0.0
  %2094 = vmatprep.subr.mxu0 0.0
  %2095 = vmatpush2.msra.mxu0 0.0
  %2096 = vmatprep.subr.mxu0 0.0
  %2097 = vmatpush2.msra.mxu0 0.0
  %2098 = vmatprep.subr.mxu0 0.0
  %2099 = vmatpush2.msra.mxu0 0.0
  %2100 = vmatprep.subr.mxu0 0.0
  %2101 = vmatpush2.msra.mxu0 0.0
  %2102 = vmatprep.subr.mxu0 0.0
  %2103 = vmatpush2.msra.mxu0 0.0
  %2104 = vmatprep.subr.mxu0 0.0
  %2105 = vmatpush2.msra.mxu0 0.0
  %2106 = vmatprep.subr.mxu0 0.0
  %2107 = vmatpush2.msra.mxu0 0.0
  %2108 = vmatprep.subr.mxu0 0.0
  %2109 = vmatpush2.msra.mxu0 0.0
  %2110 = vmatprep.subr.mxu0 0.0
  %2111 = vmatpush2.msra.mxu0 0.0
  %2112 = vmatprep.subr.mxu0 0.0
  %2113 = vmatpush2.msra.mxu0 0.0
  %2114 = vmatprep.subr.mxu0 0.0
  %2115 = vmatpush2.msra.mxu0 0.0
  %2116 = vmatprep.subr.mxu0 0.0
  %2117 = vmatpush2.msra.mxu0 0.0
  %2118 = vmatprep.subr.mxu0 0.0
  %2119 = vmatpush2.msra.mxu0 0.0
  %2120 = vmatprep.subr.mxu0 0.0
  %2121 = vmatpush2.msra.mxu0 0.0
  %2122 = vmatprep.mubr.f32.mxu0 0.0
  %2123 = vmatmul.mubr.f32.gmra.mxu0 %v2056
  %v2124 = vpop.f32.mrf.mxu0
  %v2125 = vadd.f32 0.0, %v2124
  %v2126 = vpop.f32.mrf.mxu0
  %2127 = vdwg.mxu0
  %2128 = vrot.lane.b32.xlu0 %v1551, 64
  %v2129 = vpop.permute.xlu0 %2128
  %v2132 = vsel %vm690, %v1899, 0
  %2134 = vmatprep.subr.mxu0 0.0
  %2135 = vmatpush1.msra.mxu0 0.0
  %2136 = vmatprep.subr.mxu0 0.0
  %2137 = vmatpush1.msra.mxu0 0.0
  %2138 = vmatprep.subr.mxu0 0.0
  %2139 = vmatpush1.msra.mxu0 0.0
  %2140 = vmatprep.subr.mxu0 0.0
  %2141 = vmatpush1.msra.mxu0 0.0
  %2142 = vmatprep.subr.mxu0 0.0
  %2143 = vmatpush1.msra.mxu0 0.0
  %2144 = vmatprep.subr.mxu0 0.0
  %2145 = vmatpush1.msra.mxu0 0.0
  %2146 = vmatprep.subr.mxu0 0.0
  %2147 = vmatpush1.msra.mxu0 0.0
  %2148 = vmatprep.subr.mxu0 0.0
  %2149 = vmatpush1.msra.mxu0 0.0
  %2150 = vmatprep.subr.mxu0 0.0
  %2151 = vmatpush1.msra.mxu0 0.0
  %2152 = vmatprep.subr.mxu0 0.0
  %2153 = vmatpush1.msra.mxu0 0.0
  %2154 = vmatprep.subr.mxu0 0.0
  %2155 = vmatpush1.msra.mxu0 0.0
  %2156 = vmatprep.subr.mxu0 0.0
  %2157 = vmatpush1.msra.mxu0 0.0
  %2158 = vmatprep.subr.mxu0 0.0
  %2159 = vmatpush1.msra.mxu0 0.0
  %2160 = vmatprep.subr.mxu0 0.0
  %2161 = vmatpush1.msra.mxu0 0.0
  %2162 = vmatprep.subr.mxu0 0.0
  %2163 = vmatpush1.msra.mxu0 0.0
  %2164 = vmatprep.subr.mxu0 0.0
  %2165 = vmatpush1.msra.mxu0 %v2129
  %2166 = vmatprep.subr.mxu0 0.0
  %2167 = vmatpush2.msra.mxu0 0.0
  %2168 = vmatprep.subr.mxu0 0.0
  %2169 = vmatpush2.msra.mxu0 0.0
  %2170 = vmatprep.subr.mxu0 0.0
  %2171 = vmatpush2.msra.mxu0 0.0
  %2172 = vmatprep.subr.mxu0 0.0
  %2173 = vmatpush2.msra.mxu0 0.0
  %2174 = vmatprep.subr.mxu0 0.0
  %2175 = vmatpush2.msra.mxu0 0.0
  %2176 = vmatprep.subr.mxu0 0.0
  %2177 = vmatpush2.msra.mxu0 0.0
  %2178 = vmatprep.subr.mxu0 0.0
  %2179 = vmatpush2.msra.mxu0 0.0
  %2180 = vmatprep.subr.mxu0 0.0
  %2181 = vmatpush2.msra.mxu0 0.0
  %2182 = vmatprep.subr.mxu0 0.0
  %2183 = vmatpush2.msra.mxu0 0.0
  %2184 = vmatprep.subr.mxu0 0.0
  %2185 = vmatpush2.msra.mxu0 0.0
  %2186 = vmatprep.subr.mxu0 0.0
  %2187 = vmatpush2.msra.mxu0 0.0
  %2188 = vmatprep.subr.mxu0 0.0
  %2189 = vmatpush2.msra.mxu0 0.0
  %2190 = vmatprep.subr.mxu0 0.0
  %2191 = vmatpush2.msra.mxu0 0.0
  %2192 = vmatprep.subr.mxu0 0.0
  %2193 = vmatpush2.msra.mxu0 0.0
  %2194 = vmatprep.subr.mxu0 0.0
  %2195 = vmatpush2.msra.mxu0 0.0
  %2196 = vmatprep.subr.mxu0 0.0
  %2197 = vmatpush2.msra.mxu0 0.0
  %2198 = vmatprep.mubr.f32.mxu0 0.0
  %2199 = vmatmul.mubr.f32.gmra.mxu0 %v2132
  %v2200 = vpop.f32.mrf.mxu0
  %v2201 = vadd.f32 0.0, %v2200
  %v2202 = vpop.f32.mrf.mxu0
  %2203 = vdwg.mxu0
  %2206 = vrot.lane.b32.xlu0 %v2125, 16
  %v2207 = vpop.permute.xlu0 %2206
  %2208 = vrot.lane.b32.xlu0 %v2201, 16
  %v2209 = vpop.permute.xlu0 %2208
  %v2212 = vsel %vm387, %v1973, %v2207
  %v2213 = vsel %vm387, %v2049, %v2209
  %s2214 = scalar_lea.vmem %s9, 32
  %v2215 = vld [vmem:[%s2214] sm:$0xff]
  %v2216 = vld [vmem:[%s2214 + $0x8] sm:$0xff]
  %v2217 = vld [vmem:[%s2214 + $0x10] sm:$0xff]
  %v2218 = vld [vmem:[%s2214 + $0x18] sm:$0xff]
  %s2219 = scalar_lea.vmem %s10, 1
  %v2220 = vld [vmem:[%s2219] sm:$0x1]
  %v2222 = vlaneseq
  %v2223 = vshrl.u32 %v2222, 7
  %v2224 = vsub.s32 0, %v2223
  %v2225 = vrot.slane %v2220, %v2224
  %v2228 = vsel %vm201, %v2212, 0
  %v2231 = vsel %vm201, %v2213, 0
  %2233 = vmatprep.subr.mxu0 0.0
  %2234 = vmatpush1.msra.mxu0 0.0
  %2235 = vmatprep.subr.mxu0 0.0
  %2236 = vmatpush1.msra.mxu0 0.0
  %2237 = vmatprep.subr.mxu0 0.0
  %2238 = vmatpush1.msra.mxu0 0.0
  %2239 = vmatprep.subr.mxu0 0.0
  %2240 = vmatpush1.msra.mxu0 0.0
  %2241 = vmatprep.subr.mxu0 0.0
  %2242 = vmatpush1.msra.mxu0 0.0
  %2243 = vmatprep.subr.mxu0 0.0
  %2244 = vmatpush1.msra.mxu0 0.0
  %2245 = vmatprep.subr.mxu0 0.0
  %2246 = vmatpush1.msra.mxu0 0.0
  %2247 = vmatprep.subr.mxu0 0.0
  %2248 = vmatpush1.msra.mxu0 0.0
  %2249 = vmatprep.subr.mxu0 0.0
  %2250 = vmatpush1.msra.mxu0 0.0
  %2251 = vmatprep.subr.mxu0 0.0
  %2252 = vmatpush1.msra.mxu0 0.0
  %2253 = vmatprep.subr.mxu0 0.0
  %2254 = vmatpush1.msra.mxu0 0.0
  %2255 = vmatprep.subr.mxu0 0.0
  %2256 = vmatpush1.msra.mxu0 0.0
  %2257 = vmatprep.subr.mxu0 0.0
  %2258 = vmatpush1.msra.mxu0 %v2218
  %2259 = vmatprep.subr.mxu0 0.0
  %2260 = vmatpush1.msra.mxu0 %v2217
  %2261 = vmatprep.subr.mxu0 0.0
  %2262 = vmatpush1.msra.mxu0 %v2216
  %2263 = vmatprep.subr.mxu0 0.0
  %2264 = vmatpush1.msra.mxu0 %v2215
  %2265 = vmatprep.subr.mxu0 0.0
  %2266 = vmatpush2.msra.mxu0 0.0
  %2267 = vmatprep.subr.mxu0 0.0
  %2268 = vmatpush2.msra.mxu0 0.0
  %2269 = vmatprep.subr.mxu0 0.0
  %2270 = vmatpush2.msra.mxu0 0.0
  %2271 = vmatprep.subr.mxu0 0.0
  %2272 = vmatpush2.msra.mxu0 0.0
  %2273 = vmatprep.subr.mxu0 0.0
  %2274 = vmatpush2.msra.mxu0 0.0
  %2275 = vmatprep.subr.mxu0 0.0
  %2276 = vmatpush2.msra.mxu0 0.0
  %2277 = vmatprep.subr.mxu0 0.0
  %2278 = vmatpush2.msra.mxu0 0.0
  %2279 = vmatprep.subr.mxu0 0.0
  %2280 = vmatpush2.msra.mxu0 0.0
  %2281 = vmatprep.subr.mxu0 0.0
  %2282 = vmatpush2.msra.mxu0 0.0
  %2283 = vmatprep.subr.mxu0 0.0
  %2284 = vmatpush2.msra.mxu0 0.0
  %2285 = vmatprep.subr.mxu0 0.0
  %2286 = vmatpush2.msra.mxu0 0.0
  %2287 = vmatprep.subr.mxu0 0.0
  %2288 = vmatpush2.msra.mxu0 0.0
  %2289 = vmatprep.subr.mxu0 0.0
  %2290 = vmatpush2.msra.mxu0 0.0
  %2291 = vmatprep.subr.mxu0 0.0
  %2292 = vmatpush2.msra.mxu0 0.0
  %2293 = vmatprep.subr.mxu0 0.0
  %2294 = vmatpush2.msra.mxu0 0.0
  %2295 = vmatprep.subr.mxu0 0.0
  %2296 = vmatpush2.msra.mxu0 0.0
  %2297 = vmatprep.mubr.f32.mxu0 0.0
  %2298 = vmatmul.mubr.f32.gmra.mxu0 %v2228
  %v2299 = vpop.f32.mrf.mxu0
  %v2300 = vadd.f32 %v2225, %v2299
  %v2301 = vpop.f32.mrf.mxu0
  %2302 = vmatprep.mubr.f32.mxu0 0.0
  %2303 = vmatmul.mubr.f32.gmra.mxu0 %v2231
  %v2304 = vpop.f32.mrf.mxu0
  %v2305 = vadd.f32 %v2225, %v2304
  %v2306 = vpop.f32.mrf.mxu0
  %2307 = vdwg.mxu0
  %v2308 = vadd.f32 %v1450, %v2300
  %v2309 = vadd.f32 %v1451, %v2305
  %s2310 = scalar_lea.vmem %s11, 1
  %v2311 = vld [vmem:[%s2310] sm:$0x1]
  %s2312 = scalar_lea.vmem %s12, 1
  %v2313 = vld [vmem:[%s2312] sm:$0x1]
  %v2314 = vsel %vm201, %v2308, 0.0
  %2315 = vadd.xlane.f32.xlu0 %v2314
  %v2316 = vpop.xlane.xlu0 %2315
  %v2317 = vsel %vm201, %v2309, 0.0
  %2318 = vadd.xlane.f32.xlu0 %v2317
  %v2319 = vpop.xlane.xlu0 %2318
  %v2320 = vmul.f32 %v2316, %v208
  %v2321 = vmul.f32 %v2319, %v208
  %v2322 = vmul.f32 %v2308, %v2308
  %v2323 = vmul.f32 %v2309, %v2309
  %v2324 = vsel %vm201, %v2322, 0.0
  %2325 = vadd.xlane.f32.xlu0 %v2324
  %v2326 = vpop.xlane.xlu0 %2325
  %v2327 = vsel %vm201, %v2323, 0.0
  %2328 = vadd.xlane.f32.xlu0 %v2327
  %v2329 = vpop.xlane.xlu0 %2328
  %v2330 = vmul.f32 %v2326, %v208
  %v2331 = vmul.f32 %v2329, %v208
  %v2332 = vmul.f32 %v2320, %v2320
  %v2333 = vmul.f32 %v2321, %v2321
  %v2334 = vsub.f32 %v2330, %v2332
  %v2335 = vsub.f32 %v2331, %v2333
  %v2336 = vmax.f32 %v2334, 0.0
  %v2337 = vmax.f32 %v2335, 0.0
  %v2338 = vsub.f32 %v2308, %v2320
  %v2339 = vsub.f32 %v2309, %v2321
  %v2340 = vadd.f32 %v2336, 1e-12
  %v2341 = vadd.f32 %v2337, 1e-12
  %v2342 = vrsqrt.pop %v2340
  %v2343 = vrsqrt.pop %v2341
  %v2344 = vmul.f32 %v2338, %v2342
  %v2345 = vmul.f32 %v2339, %v2343
  %v2347 = vlaneseq
  %v2348 = vshrl.u32 %v2347, 7
  %v2349 = vsub.s32 0, %v2348
  %v2350 = vrot.slane %v2311, %v2349
  %v2352 = vmul.f32 %v2344, %v2350
  %v2353 = vmul.f32 %v2345, %v2350
  %v2355 = vlaneseq
  %v2356 = vshrl.u32 %v2355, 7
  %v2357 = vsub.s32 0, %v2356
  %v2358 = vrot.slane %v2313, %v2357
  %v2360 = vadd.f32 %v2352, %v2358
  %v2361 = vadd.f32 %v2353, %v2358
  %s2362 = scalar_lea.vmem %s13, 32
  %v2363 = vld [vmem:[%s2362] sm:$0xff]
  %v2364 = vld [vmem:[%s2362 + $0x8] sm:$0xff]
  %v2365 = vld [vmem:[%s2362 + $0x10] sm:$0xff]
  %v2366 = vld [vmem:[%s2362 + $0x18] sm:$0xff]
  %s2367 = scalar_lea.vmem %s14, 1
  %v2368 = vld [vmem:[%s2367] sm:$0x1]
  %v2370 = vlaneseq
  %v2371 = vshrl.u32 %v2370, 7
  %v2372 = vsub.s32 0, %v2371
  %v2373 = vrot.slane %v2368, %v2372
  %v2376 = vsel %vm201, %v2360, 0
  %v2379 = vsel %vm201, %v2361, 0
  %2381 = vmatprep.subr.mxu0 0.0
  %2382 = vmatpush1.msra.mxu0 0.0
  %2383 = vmatprep.subr.mxu0 0.0
  %2384 = vmatpush1.msra.mxu0 0.0
  %2385 = vmatprep.subr.mxu0 0.0
  %2386 = vmatpush1.msra.mxu0 0.0
  %2387 = vmatprep.subr.mxu0 0.0
  %2388 = vmatpush1.msra.mxu0 0.0
  %2389 = vmatprep.subr.mxu0 0.0
  %2390 = vmatpush1.msra.mxu0 0.0
  %2391 = vmatprep.subr.mxu0 0.0
  %2392 = vmatpush1.msra.mxu0 0.0
  %2393 = vmatprep.subr.mxu0 0.0
  %2394 = vmatpush1.msra.mxu0 0.0
  %2395 = vmatprep.subr.mxu0 0.0
  %2396 = vmatpush1.msra.mxu0 0.0
  %2397 = vmatprep.subr.mxu0 0.0
  %2398 = vmatpush1.msra.mxu0 0.0
  %2399 = vmatprep.subr.mxu0 0.0
  %2400 = vmatpush1.msra.mxu0 0.0
  %2401 = vmatprep.subr.mxu0 0.0
  %2402 = vmatpush1.msra.mxu0 0.0
  %2403 = vmatprep.subr.mxu0 0.0
  %2404 = vmatpush1.msra.mxu0 0.0
  %2405 = vmatprep.subr.mxu0 0.0
  %2406 = vmatpush1.msra.mxu0 %v2366
  %2407 = vmatprep.subr.mxu0 0.0
  %2408 = vmatpush1.msra.mxu0 %v2365
  %2409 = vmatprep.subr.mxu0 0.0
  %2410 = vmatpush1.msra.mxu0 %v2364
  %2411 = vmatprep.subr.mxu0 0.0
  %2412 = vmatpush1.msra.mxu0 %v2363
  %2413 = vmatprep.subr.mxu0 0.0
  %2414 = vmatpush2.msra.mxu0 0.0
  %2415 = vmatprep.subr.mxu0 0.0
  %2416 = vmatpush2.msra.mxu0 0.0
  %2417 = vmatprep.subr.mxu0 0.0
  %2418 = vmatpush2.msra.mxu0 0.0
  %2419 = vmatprep.subr.mxu0 0.0
  %2420 = vmatpush2.msra.mxu0 0.0
  %2421 = vmatprep.subr.mxu0 0.0
  %2422 = vmatpush2.msra.mxu0 0.0
  %2423 = vmatprep.subr.mxu0 0.0
  %2424 = vmatpush2.msra.mxu0 0.0
  %2425 = vmatprep.subr.mxu0 0.0
  %2426 = vmatpush2.msra.mxu0 0.0
  %2427 = vmatprep.subr.mxu0 0.0
  %2428 = vmatpush2.msra.mxu0 0.0
  %2429 = vmatprep.subr.mxu0 0.0
  %2430 = vmatpush2.msra.mxu0 0.0
  %2431 = vmatprep.subr.mxu0 0.0
  %2432 = vmatpush2.msra.mxu0 0.0
  %2433 = vmatprep.subr.mxu0 0.0
  %2434 = vmatpush2.msra.mxu0 0.0
  %2435 = vmatprep.subr.mxu0 0.0
  %2436 = vmatpush2.msra.mxu0 0.0
  %2437 = vmatprep.subr.mxu0 0.0
  %2438 = vmatpush2.msra.mxu0 0.0
  %2439 = vmatprep.subr.mxu0 0.0
  %2440 = vmatpush2.msra.mxu0 0.0
  %2441 = vmatprep.subr.mxu0 0.0
  %2442 = vmatpush2.msra.mxu0 0.0
  %2443 = vmatprep.subr.mxu0 0.0
  %2444 = vmatpush2.msra.mxu0 0.0
  %2445 = vmatprep.mubr.f32.mxu0 0.0
  %2446 = vmatmul.mubr.f32.gmra.mxu0 %v2376
  %v2447 = vpop.f32.mrf.mxu0
  %v2448 = vadd.f32 %v2373, %v2447
  %v2449 = vpop.f32.mrf.mxu0
  %2450 = vmatprep.mubr.f32.mxu0 0.0
  %2451 = vmatmul.mubr.f32.gmra.mxu0 %v2379
  %v2452 = vpop.f32.mrf.mxu0
  %v2453 = vadd.f32 %v2373, %v2452
  %v2454 = vpop.f32.mrf.mxu0
  %2455 = vdwg.mxu0
  %v2456 = vmul.f32 %v2448, %v2448
  %v2457 = vmul.f32 %v2453, %v2453
  %v2458 = vmul.f32 %v2448, %v2456
  %v2459 = vmul.f32 %v2453, %v2457
  %v2460 = vmul.f32 %v2458, 0.044715
  %v2461 = vmul.f32 %v2459, 0.044715
  %v2462 = vadd.f32 %v2448, %v2460
  %v2463 = vadd.f32 %v2453, %v2461
  %v2464 = vmul.f32 %v2462, 0.7978846
  %v2465 = vmul.f32 %v2463, 0.7978846
  %v2466 = vtanh.pop %v2464
  %v2467 = vtanh.pop %v2465
  %v2468 = vadd.f32 %v2466, 1.0
  %v2469 = vadd.f32 %v2467, 1.0
  %v2470 = vmul.f32 %v2468, 0.5
  %v2471 = vmul.f32 %v2469, 0.5
  %v2472 = vmul.f32 %v2448, %v2470
  %v2473 = vmul.f32 %v2453, %v2471
  %s2474 = scalar_lea.vmem %s15, 64
  %v2475 = vld [vmem:[%s2474] sm:$0xff]
  %v2476 = vld [vmem:[%s2474 + $0x8] sm:$0xff]
  %v2477 = vld [vmem:[%s2474 + $0x10] sm:$0xff]
  %v2478 = vld [vmem:[%s2474 + $0x18] sm:$0xff]
  %v2479 = vld [vmem:[%s2474 + $0x20] sm:$0xff]
  %v2480 = vld [vmem:[%s2474 + $0x28] sm:$0xff]
  %v2481 = vld [vmem:[%s2474 + $0x30] sm:$0xff]
  %v2482 = vld [vmem:[%s2474 + $0x38] sm:$0xff]
  %s2483 = scalar_lea.vmem %s16, 1
  %v2484 = vld [vmem:[%s2483] sm:$0x1]
  %v2486 = vlaneseq
  %v2487 = vshrl.u32 %v2486, 7
  %v2488 = vsub.s32 0, %v2487
  %v2489 = vrot.slane %v2484, %v2488
  %v2492 = vsel %vm1318, %v2472, 0
  %v2495 = vsel %vm1318, %v2473, 0
  %2497 = vmatprep.subr.mxu0 0.0
  %2498 = vmatpush1.msra.mxu0 0.0
  %2499 = vmatprep.subr.mxu0 0.0
  %2500 = vmatpush1.msra.mxu0 0.0
  %2501 = vmatprep.subr.mxu0 0.0
  %2502 = vmatpush1.msra.mxu0 0.0
  %2503 = vmatprep.subr.mxu0 0.0
  %2504 = vmatpush1.msra.mxu0 0.0
  %2505 = vmatprep.subr.mxu0 0.0
  %2506 = vmatpush1.msra.mxu0 0.0
  %2507 = vmatprep.subr.mxu0 0.0
  %2508 = vmatpush1.msra.mxu0 0.0
  %2509 = vmatprep.subr.mxu0 0.0
  %2510 = vmatpush1.msra.mxu0 0.0
  %2511 = vmatprep.subr.mxu0 0.0
  %2512 = vmatpush1.msra.mxu0 0.0
  %2513 = vmatprep.subr.mxu0 0.0
  %2514 = vmatpush1.msra.mxu0 %v2482
  %2515 = vmatprep.subr.mxu0 0.0
  %2516 = vmatpush1.msra.mxu0 %v2481
  %2517 = vmatprep.subr.mxu0 0.0
  %2518 = vmatpush1.msra.mxu0 %v2480
  %2519 = vmatprep.subr.mxu0 0.0
  %2520 = vmatpush1.msra.mxu0 %v2479
  %2521 = vmatprep.subr.mxu0 0.0
  %2522 = vmatpush1.msra.mxu0 %v2478
  %2523 = vmatprep.subr.mxu0 0.0
  %2524 = vmatpush1.msra.mxu0 %v2477
  %2525 = vmatprep.subr.mxu0 0.0
  %2526 = vmatpush1.msra.mxu0 %v2476
  %2527 = vmatprep.subr.mxu0 0.0
  %2528 = vmatpush1.msra.mxu0 %v2475
  %2529 = vmatprep.subr.mxu0 0.0
  %2530 = vmatpush2.msra.mxu0 0.0
  %2531 = vmatprep.subr.mxu0 0.0
  %2532 = vmatpush2.msra.mxu0 0.0
  %2533 = vmatprep.subr.mxu0 0.0
  %2534 = vmatpush2.msra.mxu0 0.0
  %2535 = vmatprep.subr.mxu0 0.0
  %2536 = vmatpush2.msra.mxu0 0.0
  %2537 = vmatprep.subr.mxu0 0.0
  %2538 = vmatpush2.msra.mxu0 0.0
  %2539 = vmatprep.subr.mxu0 0.0
  %2540 = vmatpush2.msra.mxu0 0.0
  %2541 = vmatprep.subr.mxu0 0.0
  %2542 = vmatpush2.msra.mxu0 0.0
  %2543 = vmatprep.subr.mxu0 0.0
  %2544 = vmatpush2.msra.mxu0 0.0
  %2545 = vmatprep.subr.mxu0 0.0
  %2546 = vmatpush2.msra.mxu0 0.0
  %2547 = vmatprep.subr.mxu0 0.0
  %2548 = vmatpush2.msra.mxu0 0.0
  %2549 = vmatprep.subr.mxu0 0.0
  %2550 = vmatpush2.msra.mxu0 0.0
  %2551 = vmatprep.subr.mxu0 0.0
  %2552 = vmatpush2.msra.mxu0 0.0
  %2553 = vmatprep.subr.mxu0 0.0
  %2554 = vmatpush2.msra.mxu0 0.0
  %2555 = vmatprep.subr.mxu0 0.0
  %2556 = vmatpush2.msra.mxu0 0.0
  %2557 = vmatprep.subr.mxu0 0.0
  %2558 = vmatpush2.msra.mxu0 0.0
  %2559 = vmatprep.subr.mxu0 0.0
  %2560 = vmatpush2.msra.mxu0 0.0
  %2561 = vmatprep.mubr.f32.mxu0 0.0
  %2562 = vmatmul.mubr.f32.gmra.mxu0 %v2492
  %v2563 = vpop.f32.mrf.mxu0
  %v2564 = vadd.f32 %v2489, %v2563
  %v2565 = vpop.f32.mrf.mxu0
  %2566 = vmatprep.mubr.f32.mxu0 0.0
  %2567 = vmatmul.mubr.f32.gmra.mxu0 %v2495
  %v2568 = vpop.f32.mrf.mxu0
  %v2569 = vadd.f32 %v2489, %v2568
  %v2570 = vpop.f32.mrf.mxu0
  %2571 = vdwg.mxu0
  %v2572 = vadd.f32 %v2360, %v2564
  %v2573 = vadd.f32 %v2361, %v2569
  %s2574 = scalar_lea.vmem %s17, 1
  %v2575 = vld [vmem:[%s2574] sm:$0x1]
  %s2576 = scalar_lea.vmem %s18, 1
  %v2577 = vld [vmem:[%s2576] sm:$0x1]
  %v2578 = vsel %vm201, %v2572, 0.0
  %2579 = vadd.xlane.f32.xlu0 %v2578
  %v2580 = vpop.xlane.xlu0 %2579
  %v2581 = vsel %vm201, %v2573, 0.0
  %2582 = vadd.xlane.f32.xlu0 %v2581
  %v2583 = vpop.xlane.xlu0 %2582
  %v2584 = vmul.f32 %v2580, %v208
  %v2585 = vmul.f32 %v2583, %v208
  %v2586 = vmul.f32 %v2572, %v2572
  %v2587 = vmul.f32 %v2573, %v2573
  %v2588 = vsel %vm201, %v2586, 0.0
  %2589 = vadd.xlane.f32.xlu0 %v2588
  %v2590 = vpop.xlane.xlu0 %2589
  %v2591 = vsel %vm201, %v2587, 0.0
  %2592 = vadd.xlane.f32.xlu0 %v2591
  %v2593 = vpop.xlane.xlu0 %2592
  %v2594 = vmul.f32 %v2590, %v208
  %v2595 = vmul.f32 %v2593, %v208
  %v2596 = vmul.f32 %v2584, %v2584
  %v2597 = vmul.f32 %v2585, %v2585
  %v2598 = vsub.f32 %v2594, %v2596
  %v2599 = vsub.f32 %v2595, %v2597
  %v2600 = vmax.f32 %v2598, 0.0
  %v2601 = vmax.f32 %v2599, 0.0
  %v2602 = vsub.f32 %v2572, %v2584
  %v2603 = vsub.f32 %v2573, %v2585
  %v2604 = vadd.f32 %v2600, 1e-12
  %v2605 = vadd.f32 %v2601, 1e-12
  %v2606 = vrsqrt.pop %v2604
  %v2607 = vrsqrt.pop %v2605
  %v2608 = vmul.f32 %v2602, %v2606
  %v2609 = vmul.f32 %v2603, %v2607
  %v2611 = vlaneseq
  %v2612 = vshrl.u32 %v2611, 7
  %v2613 = vsub.s32 0, %v2612
  %v2614 = vrot.slane %v2575, %v2613
  %v2616 = vmul.f32 %v2608, %v2614
  %v2617 = vmul.f32 %v2609, %v2614
  %v2619 = vlaneseq
  %v2620 = vshrl.u32 %v2619, 7
  %v2621 = vsub.s32 0, %v2620
  %v2622 = vrot.slane %v2577, %v2621
  %v2624 = vadd.f32 %v2616, %v2622
  %v2625 = vadd.f32 %v2617, %v2622
  %v2626 = vld [vmem:[%s19] sm:$0xff]
  %v2627 = vld [vmem:[%s19 + $0x8] sm:$0xff]
  %v2628 = vld [vmem:[%s19 + $0x10] sm:$0xff]
  %v2629 = vld [vmem:[%s19 + $0x18] sm:$0xff]
  %v2630 = vld [vmem:[%s20] sm:$0x1]
  %v2632 = vlaneseq
  %v2633 = vshrl.u32 %v2632, 7
  %v2634 = vsub.s32 0, %v2633
  %v2635 = vrot.slane %v2630, %v2634
  %v2639 = vrot.slane %v2625, 7
  %vm2640 = vcmask 1041409
  %v2641 = vsel %vm2640, %v2639, %v2624
  %v2642 = vsel %vm201, %v2641, 0
  %2644 = vmatprep.subr.mxu0 0.0
  %2645 = vmatpush1.msra.mxu0 0.0
  %2646 = vmatprep.subr.mxu0 0.0
  %2647 = vmatpush1.msra.mxu0 0.0
  %2648 = vmatprep.subr.mxu0 0.0
  %2649 = vmatpush1.msra.mxu0 0.0
  %2650 = vmatprep.subr.mxu0 0.0
  %2651 = vmatpush1.msra.mxu0 0.0
  %2652 = vmatprep.subr.mxu0 0.0
  %2653 = vmatpush1.msra.mxu0 0.0
  %2654 = vmatprep.subr.mxu0 0.0
  %2655 = vmatpush1.msra.mxu0 0.0
  %2656 = vmatprep.subr.mxu0 0.0
  %2657 = vmatpush1.msra.mxu0 0.0
  %2658 = vmatprep.subr.mxu0 0.0
  %2659 = vmatpush1.msra.mxu0 0.0
  %2660 = vmatprep.subr.mxu0 0.0
  %2661 = vmatpush1.msra.mxu0 0.0
  %2662 = vmatprep.subr.mxu0 0.0
  %2663 = vmatpush1.msra.mxu0 0.0
  %2664 = vmatprep.subr.mxu0 0.0
  %2665 = vmatpush1.msra.mxu0 0.0
  %2666 = vmatprep.subr.mxu0 0.0
  %2667 = vmatpush1.msra.mxu0 0.0
  %2668 = vmatprep.subr.mxu0 0.0
  %2669 = vmatpush1.msra.mxu0 %v2629
  %2670 = vmatprep.subr.mxu0 0.0
  %2671 = vmatpush1.msra.mxu0 %v2628
  %2672 = vmatprep.subr.mxu0 0.0
  %2673 = vmatpush1.msra.mxu0 %v2627
  %2674 = vmatprep.subr.mxu0 0.0
  %2675 = vmatpush1.msra.mxu0 %v2626
  %2676 = vmatprep.subr.mxu0 0.0
  %2677 = vmatpush2.msra.mxu0 0.0
  %2678 = vmatprep.subr.mxu0 0.0
  %2679 = vmatpush2.msra.mxu0 0.0
  %2680 = vmatprep.subr.mxu0 0.0
  %2681 = vmatpush2.msra.mxu0 0.0
  %2682 = vmatprep.subr.mxu0 0.0
  %2683 = vmatpush2.msra.mxu0 0.0
  %2684 = vmatprep.subr.mxu0 0.0
  %2685 = vmatpush2.msra.mxu0 0.0
  %2686 = vmatprep.subr.mxu0 0.0
  %2687 = vmatpush2.msra.mxu0 0.0
  %2688 = vmatprep.subr.mxu0 0.0
  %2689 = vmatpush2.msra.mxu0 0.0
  %2690 = vmatprep.subr.mxu0 0.0
  %2691 = vmatpush2.msra.mxu0 0.0
  %2692 = vmatprep.subr.mxu0 0.0
  %2693 = vmatpush2.msra.mxu0 0.0
  %2694 = vmatprep.subr.mxu0 0.0
  %2695 = vmatpush2.msra.mxu0 0.0
  %2696 = vmatprep.subr.mxu0 0.0
  %2697 = vmatpush2.msra.mxu0 0.0
  %2698 = vmatprep.subr.mxu0 0.0
  %2699 = vmatpush2.msra.mxu0 0.0
  %2700 = vmatprep.subr.mxu0 0.0
  %2701 = vmatpush2.msra.mxu0 0.0
  %2702 = vmatprep.subr.mxu0 0.0
  %2703 = vmatpush2.msra.mxu0 0.0
  %2704 = vmatprep.subr.mxu0 0.0
  %2705 = vmatpush2.msra.mxu0 0.0
  %2706 = vmatprep.subr.mxu0 0.0
  %2707 = vmatpush2.msra.mxu0 0.0
  %2708 = vmatprep.mubr.f32.mxu0 0.0
  %2709 = vmatmul.mubr.f32.gmra.mxu0 %v2642
  %v2710 = vpop.f32.mrf.mxu0
  %v2711 = vadd.f32 %v2635, %v2710
  %v2712 = vpop.f32.mrf.mxu0
  %2713 = vdwg.mxu0
  %2714 = vst [vmem:[%s21] sm:$0x3] %v2711
  // Predicated region
  $region86: #{_lambda_.1} parent=0 // pred_check
    _
  $region87: #{_lambda_.1} parent=0 // pred_check_branch
    %2716 = sbr.rel (0) target = $region89
  $region88: #{_lambda_.1} parent=0 // pred_region
    _
  $region89: #{_lambda_.1} parent=0 // pred_fallthru
    _
  // Predicated region
  $region90: #{_lambda_.1} parent=0 // pred_check
    _
  $region91: #{_lambda_.1} parent=0 // pred_check_branch
    %2718 = sbr.rel (0) target = $region93
  $region92: #{_lambda_.1} parent=0 // pred_region
    _
  $region93: #{_lambda_.1} parent=0 // pred_fallthru
    _

</llo_original>
